<compile_context>
chip_gen: v5e
topology: v5e:2x2
jax: 0.10.0
libtpu: 0.0.40
codegen_flags: <defaults>
</compile_context>

<pallas_src>
import functools

import jax
import jax.numpy as jnp
from jax import lax
from jax.experimental import pallas as pl
from jax.experimental.pallas import tpu as pltpu

# >= default scoped VMEM on all generations (16/32/32 MiB), < v7x 64 MiB physical.
_VMEM_LIMIT_BYTES = 40 * 1024 * 1024


def _mosaic_params(dims):
    return pltpu.CompilerParams(dimension_semantics=dims,
                                vmem_limit_bytes=_VMEM_LIMIT_BYTES)


# ----------------------------------------------------------------------------
# Fused q / k / v projection: ONE (C, 3C) matmul per row tile, weight resident
# ----------------------------------------------------------------------------
def _fused_qkv_kernel(x_ref, w_ref, q_ref, k_ref, v_ref, *, dim, k_scale):
    # Single wide matmul -> (tm, 3C) f32 accumulator; static lane slices for
    # the three stores.  Operands stay in the model dtype (bf16 => single-pass
    # MXU); accumulation is f32.
    acc = jnp.dot(x_ref[...], w_ref[...], preferred_element_type=jnp.float32)
    q_ref[...] = acc[:, :dim].astype(q_ref.dtype)
    # Fold the attention scale into k (k is only ever the RHS of the first
    # score matmul); the VPU multiply hides under the matmul.
    k_ref[...] = (acc[:, dim:2 * dim] * k_scale).astype(k_ref.dtype)
    v_ref[...] = acc[:, 2 * dim:].astype(v_ref.dtype)


def fused_qkv_projection(x, w_qkv, *, k_scale, row_tile=512):
    """x: (M, C); w_qkv: (C, 3C) = [w_q | w_k | w_v]  ->  q, k*scale, v, each (M, C)."""
    M, C = x.shape
    tm = M if M <= row_tile else row_tile          # tm % 8 == 0 when tm < M
    grid = (pl.cdiv(M, tm),)
    row_spec = pl.BlockSpec((tm, C), lambda i: (i, 0))
    out = jax.ShapeDtypeStruct((M, C), x.dtype)
    kernel = functools.partial(_fused_qkv_kernel, dim=C, k_scale=k_scale)
    return pl.pallas_call(
        kernel,
        out_shape=(out, out, out),
        grid=grid,
        in_specs=[row_spec,
                  pl.BlockSpec((C, 3 * C), lambda i: (0, 0))],   # resident weight
        out_specs=(row_spec, row_spec, row_spec),
        compiler_params=_mosaic_params(("parallel",)),
    )(x, w_qkv)


# ----------------------------------------------------------------------------
# Output projection: row-tiled linear with bias (weight + bias resident)
# ----------------------------------------------------------------------------
def _linear_bias_kernel(x_ref, w_ref, b_ref, o_ref):
    acc = jnp.dot(x_ref[...], w_ref[...], preferred_element_type=jnp.float32)
    o_ref[...] = (acc + b_ref[...].astype(jnp.float32)).astype(o_ref.dtype)


def linear_bias(x, w, bias, *, row_tile=512):
    """x: (M, K), w: (K, N), bias: (1, N) -> (M, N)."""
    M, K = x.shape
    N = w.shape[1]
    tm = M if M <= row_tile else row_tile
    grid = (pl.cdiv(M, tm),)
    return pl.pallas_call(
        _linear_bias_kernel,
        out_shape=jax.ShapeDtypeStruct((M, N), x.dtype),
        grid=grid,
        in_specs=[
            pl.BlockSpec((tm, K), lambda i: (i, 0)),
            pl.BlockSpec((K, N), lambda i: (0, 0)),   # resident weight
            pl.BlockSpec((1, N), lambda i: (0, 0)),   # resident bias
        ],
        out_specs=pl.BlockSpec((tm, N), lambda i: (i, 0)),
        compiler_params=_mosaic_params(("parallel",)),
    )(x, w, bias)


# ----------------------------------------------------------------------------
# Agent attention: one batch (all heads) per grid step, lane-dense blocks
# ----------------------------------------------------------------------------
def _softmax_rows_f32(s):
    """Row softmax in f32; denominator via the (free EUP-slot) approx reciprocal."""
    s = s - jnp.max(s, axis=-1, keepdims=True)
    p = jnp.exp(s)
    return p * pl.reciprocal(jnp.sum(p, axis=-1, keepdims=True), approx=True)


def _agent_attn_kernel(q_ref, k_ref, v_ref, agent_ref, bias_ref, o_ref, *,
                       num_heads, head_dim, scale):
    """One batch, all heads.

    q_ref / k_ref / v_ref / o_ref : (n, c)      lane-dense, head h = lanes h*hd..(h+1)*hd
    agent_ref                     : (H, A, hd)  raw contiguous reshape of q (A == n)
    bias_ref                      : (H, A, n)   an_bias + na_bias, param dtype, resident
    (k is pre-scaled by `scale` at projection time.)
    """
    dn_last = (((1,), (1,)), ((), ()))   # contract last (head_dim) axes, no .T
    outs = []
    for h in range(num_heads):           # static unroll: all slices/offsets static
        lo = h * head_dim
        q = q_ref[:, lo:lo + head_dim]   # (n, hd)   static lane slice
        k = k_ref[:, lo:lo + head_dim]   # (n, hd)   already scaled
        v = v_ref[:, lo:lo + head_dim]   # (n, hd)
        ag = agent_ref[h]                # (A, hd)
        bias = bias_ref[h].astype(jnp.float32)   # (A, n), per-head upcast

        # agent_attn = softmax(agent @ (k*scale)^T + bias)           -> (A, n)
        s1 = lax.dot_general(ag, k, dn_last,
                             preferred_element_type=jnp.float32) + bias
        p1 = _softmax_rows_f32(s1)
        agent_v = jnp.dot(p1.astype(v.dtype), v,
                          preferred_element_type=jnp.float32)         # (A, hd)

        # q_attn = softmax((q*scale) @ agent^T + bias)               -> (n, A)
        # (bias added in the same orientation as PyTorch; valid because A == n)
        s2 = lax.dot_general(q * scale, ag, dn_last,
                             preferred_element_type=jnp.float32) + bias
        p2 = _softmax_rows_f32(s2)
        outs.append(jnp.dot(p2.astype(v.dtype), agent_v.astype(v.dtype),
                            preferred_element_type=jnp.float32))      # (n, hd)

    # ONE lane-dense full-tile store (replaces H narrow masked stores).
    o_ref[...] = jnp.concatenate(outs, axis=-1).astype(o_ref.dtype)


def agent_attention_core(q, k, v, agent, bias, *, num_heads, head_dim, scale):
    """q/k/v: (b, n, c); agent: (b, H, A, hd); bias: (H, A, n) -> (b, n, c)."""
    b, n, c = q.shape
    A = agent.shape[2]
    kernel = functools.partial(_agent_attn_kernel, num_heads=num_heads,
                               head_dim=head_dim, scale=scale)
    tok_spec = pl.BlockSpec((None, n, c), lambda i: (i, 0, 0))
    return pl.pallas_call(
        kernel,
        out_shape=jax.ShapeDtypeStruct((b, n, c), q.dtype),
        grid=(b,),
        in_specs=[
            tok_spec,                                                     # q
            tok_spec,                                                     # k (pre-scaled)
            tok_spec,                                                     # v
            pl.BlockSpec((None, num_heads, A, head_dim),
                         lambda i: (i, 0, 0, 0)),                         # agent tokens
            pl.BlockSpec((num_heads, A, n), lambda i: (0, 0, 0)),         # bias: resident
        ],
        out_specs=tok_spec,
        compiler_params=_mosaic_params(("parallel",)),
    )(q, k, v, agent, bias)


# ----------------------------------------------------------------------------
# Full module forward (all reshapes below are contiguous == free; no transposes)
# ----------------------------------------------------------------------------
def agent_attention_forward(x, params, num_heads, *, row_tile=512):
    b, n, c = x.shape
    assert c % num_heads == 0, "dim must be divisible by num_heads"
    hd = c // num_heads
    scale = float(hd) ** -0.5
    A = n   # agent_num == seq_len in this module
    # Both the "pool is identity" shortcut and the un-transposed bias add rely
    # on agent_num == seq_len; make that assumption explicit.
    assert params["an_bias"].shape == (num_heads, A, n), "agent_num must equal seq_len"
    assert params["na_bias"].shape == (num_heads, A, n), "agent_num must equal seq_len"

    # Single (C, 3C) qkv weight: columns [0,C)=q, [C,2C)=k, [2C,3C)=v
    # (matches the PyTorch kv channel layout).  One small concat per call.
    w_qkv = jnp.concatenate([params["w_q"], params["w_kv"]], axis=1)

    x2d = x.reshape(b * n, c)
    q2d, k2d, v2d = fused_qkv_projection(x2d, w_qkv, k_scale=scale, row_tile=row_tile)

    # Free (contiguous) reshapes only -- no HBM transposes:
    q3 = q2d.reshape(b, n, c)
    k3 = k2d.reshape(b, n, c)
    v3 = v2d.reshape(b, n, c)
    # AdaptiveAvgPool1d(agent_num == n) is the identity, so agent_tokens == q.
    # The PyTorch code reshapes (b, A, c) straight to (b, H, A, hd) with no head
    # permute; that is exactly this contiguous reshape (deliberately replicated).
    agent_had = q2d.reshape(b, num_heads, A, hd)

    # Bias stays in the parameter dtype (bf16 params -> half the VMEM residency);
    # the kernel upcasts one (A, n) head slice at a time.
    bias = params["an_bias"] + params["na_bias"]                       # (H, A, n)

    out = agent_attention_core(q3, k3, v3, agent_had, bias,
                               num_heads=num_heads, head_dim=hd, scale=scale)
    out2d = out.reshape(b * n, c)                                      # free reshape

    out2d = linear_bias(out2d, params["w_proj"], params["b_proj"], row_tile=row_tile)
    return out2d.reshape(b, n, c)


# ----------------------------------------------------------------------------
# Pure-JAX reference (numerical sanity check, mirrors the PyTorch module)
# ----------------------------------------------------------------------------
def agent_attention_reference(x, params, num_heads):
    b, n, c = x.shape
    hd = c // num_heads
    scale = float(hd) ** -0.5
    A = n

    x2d = x.reshape(b * n, c)
    q = (x2d @ params["w_q"]).reshape(b, n, c)
    kv = (x2d @ params["w_kv"]).reshape(b, n, 2, num_heads, hd).transpose(2, 0, 3, 1, 4)
    k, v = kv[0], kv[1]

    agent_tokens = q                       # AdaptiveAvgPool1d(n) on length-n input
    q_h = q.reshape(b, n, num_heads, hd).transpose(0, 2, 1, 3)
    agent_h = agent_tokens.reshape(b, num_heads, A, hd)

    bias = (params["an_bias"] + params["na_bias"])[None]               # (1, H, A, n)

    agent_attn = jax.nn.softmax(
        (agent_h * scale) @ jnp.swapaxes(k, -2, -1) + bias, axis=-1)
    agent_v = agent_attn @ v
    q_attn = jax.nn.softmax(
        (q_h * scale) @ jnp.swapaxes(agent_h, -2, -1) + bias, axis=-1)
    out = q_attn @ agent_v
    out = out.transpose(0, 2, 1, 3).reshape(b * n, c)
    out = out @ params["w_proj"] + params["b_proj"]
    return out.reshape(b, n, c)


# ----------------------------------------------------------------------------
# Main
# ----------------------------------------------------------------------------
if __name__ == "__main__":
    # Small, module-consistent shapes (big enough that the row-tiled linears
    # actually run a multi-step pipelined grid with row_tile=128).
    b, seq_len, dim, num_heads = 2, 128, 64, 4
    n, c = seq_len, dim
    agent_num = seq_len
    dtype = jnp.float32

    key = jax.random.PRNGKey(0)
    ks = jax.random.split(key, 8)

    params = {
        # nn.Linear(dim, dim, bias=False) for q; stored as (in, out)
        "w_q": jax.random.normal(ks[0], (dim, dim), dtype) * 0.05,
        # nn.Linear(dim, 2*dim, bias=False) for kv
        "w_kv": jax.random.normal(ks[1], (dim, 2 * dim), dtype) * 0.05,
        # nn.Linear(dim, dim) for proj (has bias)
        "w_proj": jax.random.normal(ks[2], (dim, dim), dtype) * 0.05,
        "b_proj": jax.random.normal(ks[3], (1, dim), dtype) * 0.01,
        # trunc_normal_(std=0.02) position biases
        "an_bias": jax.random.truncated_normal(
            ks[4], -2.0, 2.0, (num_heads, agent_num, seq_len), dtype) * 0.02,
        "na_bias": jax.random.truncated_normal(
            ks[5], -2.0, 2.0, (num_heads, agent_num, seq_len), dtype) * 0.02,
    }

    x = jax.random.normal(ks[6], (b, n, c), dtype)

    fwd = jax.jit(functools.partial(
        agent_attention_forward, num_heads=num_heads, row_tile=128))
    out = fwd(x, params)
    jax.block_until_ready(out)

    ref = agent_attention_reference(x, params, num_heads)
    assert out.shape == (b, n, c), out.shape
    # Tolerance accounts for the EUP approximate-reciprocal softmax denominators.
    max_err = float(jnp.max(jnp.abs(out - ref)))
    assert jnp.allclose(out, ref, rtol=5e-3, atol=5e-3), max_err

    print("KERNEL_OK")
</pallas_src>

<mosaic_0001>
module attributes {stable_mosaic.version = 11 : i64} {
  func.func @_fused_qkv_kernel(%arg0: i32, %arg1: memref<128x64xf32, #tpu.memory_space<vmem>>, %arg2: memref<64x192xf32, #tpu.memory_space<vmem>>, %arg3: memref<128x64xf32, #tpu.memory_space<vmem>>, %arg4: memref<128x64xf32, #tpu.memory_space<vmem>>, %arg5: memref<128x64xf32, #tpu.memory_space<vmem>>) attributes {dimension_semantics = [#tpu.dimension_semantics<parallel>], iteration_bounds = array<i64: 2>, scalar_prefetch = 0 : i64, scratch_operands = 0 : i64, tpu.core_type = #tpu.core_type<tc>, window_params = [{transform_indices = @transform_0, window_bounds = array<i64: 128, 64>}, {pipeline_mode = #tpu.pipeline_mode<synchronous>, transform_indices = @transform_1, window_bounds = array<i64: 64, 192>}, {transform_indices = @transform_2, window_bounds = array<i64: 128, 64>}, {transform_indices = @transform_3, window_bounds = array<i64: 128, 64>}, {transform_indices = @transform_4, window_bounds = array<i64: 128, 64>}]} {
    %c0 = arith.constant 0 : index
    %c0_0 = arith.constant 0 : index
    %0 = vector.load %arg1[%c0, %c0_0] : memref<128x64xf32, #tpu.memory_space<vmem>>, vector<128x64xf32>
    %c0_1 = arith.constant 0 : index
    %c0_2 = arith.constant 0 : index
    %1 = vector.load %arg2[%c0_1, %c0_2] : memref<64x192xf32, #tpu.memory_space<vmem>>, vector<64x192xf32>
    %cst = arith.constant dense<0.000000e+00> : vector<128x192xf32>
    %2 = tpu.matmul %0, %1, %cst {dimension_numbers = #tpu.dot_dimension_numbers<[1], [0], [0], [1], [0, 0, 1, 1], [], []>} : vector<128x64xf32>, vector<64x192xf32>, vector<128x192xf32> -> vector<128x192xf32>
    %3 = vector.extract_strided_slice %2 {offsets = [0, 0], sizes = [128, 64], strides = [1, 1]} : vector<128x192xf32> to vector<128x64xf32>
    %c0_3 = arith.constant 0 : index
    %c0_4 = arith.constant 0 : index
    %4 = vector.load %arg3[%c0_3, %c0_4] : memref<128x64xf32, #tpu.memory_space<vmem>>, vector<128x64xf32>
    tpu.vector_store %arg3[%c0_3, %c0_4], %3 {strides = array<i32>} : memref<128x64xf32, #tpu.memory_space<vmem>>, vector<128x64xf32>,
    %5 = vector.extract_strided_slice %2 {offsets = [0, 64], sizes = [128, 64], strides = [1, 1]} : vector<128x192xf32> to vector<128x64xf32>
    %cst_5 = arith.constant 2.500000e-01 : f32
    %6 = vector.broadcast %cst_5 : f32 to vector<128x64xf32>
    %7 = arith.mulf %5, %6 : vector<128x64xf32>
    %c0_6 = arith.constant 0 : index
    %c0_7 = arith.constant 0 : index
    %8 = vector.load %arg4[%c0_6, %c0_7] : memref<128x64xf32, #tpu.memory_space<vmem>>, vector<128x64xf32>
    tpu.vector_store %arg4[%c0_6, %c0_7], %7 {strides = array<i32>} : memref<128x64xf32, #tpu.memory_space<vmem>>, vector<128x64xf32>,
    %9 = vector.extract_strided_slice %2 {offsets = [0, 128], sizes = [128, 64], strides = [1, 1]} : vector<128x192xf32> to vector<128x64xf32>
    %c0_8 = arith.constant 0 : index
    %c0_9 = arith.constant 0 : index
    %10 = vector.load %arg5[%c0_8, %c0_9] : memref<128x64xf32, #tpu.memory_space<vmem>>, vector<128x64xf32>
    tpu.vector_store %arg5[%c0_8, %c0_9], %9 {strides = array<i32>} : memref<128x64xf32, #tpu.memory_space<vmem>>, vector<128x64xf32>,
    return
  }
  func.func @transform_0(%arg0: i32) -> (i32, i32) {
    %c0_i32 = arith.constant 0 : i32
    %c0_i32_0 = arith.constant 0 : i32
    return %arg0, %c0_i32 : i32, i32
  }
  func.func @transform_1(%arg0: i32) -> (i32, i32) {
    %c0_i32 = arith.constant 0 : i32
    %c0_i32_0 = arith.constant 0 : i32
    %c0_i32_1 = arith.constant 0 : i32
    return %c0_i32, %c0_i32_0 : i32, i32
  }
  func.func @transform_2(%arg0: i32) -> (i32, i32) {
    %c0_i32 = arith.constant 0 : i32
    %c0_i32_0 = arith.constant 0 : i32
    return %arg0, %c0_i32 : i32, i32
  }
  func.func @transform_3(%arg0: i32) -> (i32, i32) {
    %c0_i32 = arith.constant 0 : i32
    %c0_i32_0 = arith.constant 0 : i32
    return %arg0, %c0_i32 : i32, i32
  }
  func.func @transform_4(%arg0: i32) -> (i32, i32) {
    %c0_i32 = arith.constant 0 : i32
    %c0_i32_0 = arith.constant 0 : i32
    return %arg0, %c0_i32 : i32, i32
  }
}

module attributes {stable_mosaic.version = 11 : i64} {
  func.func @_linear_bias_kernel(%arg0: i32, %arg1: memref<128x64xf32, #tpu.memory_space<vmem>>, %arg2: memref<64x64xf32, #tpu.memory_space<vmem>>, %arg3: memref<1x64xf32, #tpu.memory_space<vmem>>, %arg4: memref<128x64xf32, #tpu.memory_space<vmem>>) attributes {dimension_semantics = [#tpu.dimension_semantics<parallel>], iteration_bounds = array<i64: 2>, scalar_prefetch = 0 : i64, scratch_operands = 0 : i64, tpu.core_type = #tpu.core_type<tc>, window_params = [{transform_indices = @transform_0, window_bounds = array<i64: 128, 64>}, {pipeline_mode = #tpu.pipeline_mode<synchronous>, transform_indices = @transform_1, window_bounds = array<i64: 64, 64>}, {pipeline_mode = #tpu.pipeline_mode<synchronous>, transform_indices = @transform_2, window_bounds = array<i64: 1, 64>}, {transform_indices = @transform_3, window_bounds = array<i64: 128, 64>}]} {
    %c0 = arith.constant 0 : index
    %c0_0 = arith.constant 0 : index
    %0 = vector.load %arg1[%c0, %c0_0] : memref<128x64xf32, #tpu.memory_space<vmem>>, vector<128x64xf32>
    %c0_1 = arith.constant 0 : index
    %c0_2 = arith.constant 0 : index
    %1 = vector.load %arg2[%c0_1, %c0_2] : memref<64x64xf32, #tpu.memory_space<vmem>>, vector<64x64xf32>
    %cst = arith.constant dense<0.000000e+00> : vector<128x64xf32>
    %2 = tpu.matmul %0, %1, %cst {dimension_numbers = #tpu.dot_dimension_numbers<[1], [0], [0], [1], [0, 0, 1, 1], [], []>} : vector<128x64xf32>, vector<64x64xf32>, vector<128x64xf32> -> vector<128x64xf32>
    %c0_3 = arith.constant 0 : index
    %c0_4 = arith.constant 0 : index
    %3 = vector.load %arg3[%c0_3, %c0_4] : memref<1x64xf32, #tpu.memory_space<vmem>>, vector<1x64xf32>
    %4 = vector.broadcast %3 : vector<1x64xf32> to vector<128x64xf32>
    %5 = arith.addf %2, %4 : vector<128x64xf32>
    %c0_5 = arith.constant 0 : index
    %c0_6 = arith.constant 0 : index
    %6 = vector.load %arg4[%c0_5, %c0_6] : memref<128x64xf32, #tpu.memory_space<vmem>>, vector<128x64xf32>
    tpu.vector_store %arg4[%c0_5, %c0_6], %5 {strides = array<i32>} : memref<128x64xf32, #tpu.memory_space<vmem>>, vector<128x64xf32>,
    return
  }
  func.func @transform_0(%arg0: i32) -> (i32, i32) {
    %c0_i32 = arith.constant 0 : i32
    %c0_i32_0 = arith.constant 0 : i32
    return %arg0, %c0_i32 : i32, i32
  }
  func.func @transform_1(%arg0: i32) -> (i32, i32) {
    %c0_i32 = arith.constant 0 : i32
    %c0_i32_0 = arith.constant 0 : i32
    %c0_i32_1 = arith.constant 0 : i32
    return %c0_i32, %c0_i32_0 : i32, i32
  }
  func.func @transform_2(%arg0: i32) -> (i32, i32) {
    %c0_i32 = arith.constant 0 : i32
    %c0_i32_0 = arith.constant 0 : i32
    %c0_i32_1 = arith.constant 0 : i32
    return %c0_i32, %c0_i32_0 : i32, i32
  }
  func.func @transform_3(%arg0: i32) -> (i32, i32) {
    %c0_i32 = arith.constant 0 : i32
    %c0_i32_0 = arith.constant 0 : i32
    return %arg0, %c0_i32 : i32, i32
  }
}

module attributes {stable_mosaic.version = 11 : i64} {
  func.func @_agent_attn_kernel(%arg0: i32, %arg1: memref<1x128x64xf32, #tpu.memory_space<vmem>>, %arg2: memref<1x128x64xf32, #tpu.memory_space<vmem>>, %arg3: memref<1x128x64xf32, #tpu.memory_space<vmem>>, %arg4: memref<1x4x128x16xf32, #tpu.memory_space<vmem>>, %arg5: memref<4x128x128xf32, #tpu.memory_space<vmem>>, %arg6: memref<1x128x64xf32, #tpu.memory_space<vmem>>) attributes {dimension_semantics = [#tpu.dimension_semantics<parallel>], iteration_bounds = array<i64: 2>, scalar_prefetch = 0 : i64, scratch_operands = 0 : i64, tpu.core_type = #tpu.core_type<tc>, window_params = [{transform_indices = @transform_0, window_bounds = array<i64: 1, 128, 64>}, {transform_indices = @transform_1, window_bounds = array<i64: 1, 128, 64>}, {transform_indices = @transform_2, window_bounds = array<i64: 1, 128, 64>}, {transform_indices = @transform_3, window_bounds = array<i64: 1, 4, 128, 16>}, {pipeline_mode = #tpu.pipeline_mode<synchronous>, transform_indices = @transform_4, window_bounds = array<i64: 4, 128, 128>}, {transform_indices = @transform_5, window_bounds = array<i64: 1, 128, 64>}]} {
    %c0 = arith.constant 0 : index
    %c0_0 = arith.constant 0 : index
    %c0_1 = arith.constant 0 : index
    %0 = vector.load %arg1[%c0, %c0_0, %c0_1] : memref<1x128x64xf32, #tpu.memory_space<vmem>>, vector<1x128x16xf32>
    %1 = vector.shape_cast %0 : vector<1x128x16xf32> to vector<128x16xf32>
    %c0_2 = arith.constant 0 : index
    %c0_3 = arith.constant 0 : index
    %c0_4 = arith.constant 0 : index
    %2 = vector.load %arg2[%c0_2, %c0_3, %c0_4] : memref<1x128x64xf32, #tpu.memory_space<vmem>>, vector<1x128x16xf32>
    %3 = vector.shape_cast %2 : vector<1x128x16xf32> to vector<128x16xf32>
    %c0_5 = arith.constant 0 : index
    %c0_6 = arith.constant 0 : index
    %c0_7 = arith.constant 0 : index
    %4 = vector.load %arg3[%c0_5, %c0_6, %c0_7] : memref<1x128x64xf32, #tpu.memory_space<vmem>>, vector<1x128x16xf32>
    %5 = vector.shape_cast %4 : vector<1x128x16xf32> to vector<128x16xf32>
    %c0_8 = arith.constant 0 : index
    %c0_9 = arith.constant 0 : index
    %c0_10 = arith.constant 0 : index
    %c0_11 = arith.constant 0 : index
    %6 = vector.load %arg4[%c0_8, %c0_9, %c0_10, %c0_11] : memref<1x4x128x16xf32, #tpu.memory_space<vmem>>, vector<1x1x128x16xf32>
    %7 = vector.shape_cast %6 : vector<1x1x128x16xf32> to vector<128x16xf32>
    %c0_12 = arith.constant 0 : index
    %c0_13 = arith.constant 0 : index
    %c0_14 = arith.constant 0 : index
    %8 = vector.load %arg5[%c0_12, %c0_13, %c0_14] : memref<4x128x128xf32, #tpu.memory_space<vmem>>, vector<1x128x128xf32>
    %9 = vector.shape_cast %8 : vector<1x128x128xf32> to vector<128x128xf32>
    %cst = arith.constant dense<0.000000e+00> : vector<128x128xf32>
    %10 = tpu.matmul %7, %3, %cst {dimension_numbers = #tpu.dot_dimension_numbers<[1], [1], [0], [0], [0, 0, 1, 0], [], []>} : vector<128x16xf32>, vector<128x16xf32>, vector<128x128xf32> -> vector<128x128xf32>
    %11 = arith.addf %10, %9 : vector<128x128xf32>
    %cst_15 = arith.constant dense<0xFF800000> : vector<128xf32>
    %12 = vector.multi_reduction <maximumf>, %11, %cst_15 [1] : vector<128x128xf32> to vector<128xf32>
    %13 = vector.shape_cast %12 : vector<128xf32> to vector<128x1xf32>
    %14 = vector.broadcast %13 : vector<128x1xf32> to vector<128x128xf32>
    %15 = arith.subf %11, %14 : vector<128x128xf32>
    %16 = math.exp %15 : vector<128x128xf32>
    %cst_16 = arith.constant dense<0.000000e+00> : vector<128xf32>
    %17 = vector.multi_reduction <add>, %16, %cst_16 [1] : vector<128x128xf32> to vector<128xf32>
    %18 = vector.shape_cast %17 : vector<128xf32> to vector<128x1xf32>
    %19 = tpu.reciprocal %18 {approx = true} : vector<128x1xf32> -> vector<128x1xf32>
    %20 = vector.broadcast %19 : vector<128x1xf32> to vector<128x128xf32>
    %21 = arith.mulf %16, %20 : vector<128x128xf32>
    %cst_17 = arith.constant dense<0.000000e+00> : vector<128x16xf32>
    %22 = tpu.matmul %21, %5, %cst_17 {dimension_numbers = #tpu.dot_dimension_numbers<[1], [0], [0], [1], [0, 0, 1, 1], [], []>} : vector<128x128xf32>, vector<128x16xf32>, vector<128x16xf32> -> vector<128x16xf32>
    %cst_18 = arith.constant 2.500000e-01 : f32
    %23 = vector.broadcast %cst_18 : f32 to vector<128x16xf32>
    %24 = arith.mulf %1, %23 : vector<128x16xf32>
    %cst_19 = arith.constant dense<0.000000e+00> : vector<128x128xf32>
    %25 = tpu.matmul %24, %7, %cst_19 {dimension_numbers = #tpu.dot_dimension_numbers<[1], [1], [0], [0], [0, 0, 1, 0], [], []>} : vector<128x16xf32>, vector<128x16xf32>, vector<128x128xf32> -> vector<128x128xf32>
    %26 = arith.addf %25, %9 : vector<128x128xf32>
    %cst_20 = arith.constant dense<0xFF800000> : vector<128xf32>
    %27 = vector.multi_reduction <maximumf>, %26, %cst_20 [1] : vector<128x128xf32> to vector<128xf32>
    %28 = vector.shape_cast %27 : vector<128xf32> to vector<128x1xf32>
    %29 = vector.broadcast %28 : vector<128x1xf32> to vector<128x128xf32>
    %30 = arith.subf %26, %29 : vector<128x128xf32>
    %31 = math.exp %30 : vector<128x128xf32>
    %cst_21 = arith.constant dense<0.000000e+00> : vector<128xf32>
    %32 = vector.multi_reduction <add>, %31, %cst_21 [1] : vector<128x128xf32> to vector<128xf32>
    %33 = vector.shape_cast %32 : vector<128xf32> to vector<128x1xf32>
    %34 = tpu.reciprocal %33 {approx = true} : vector<128x1xf32> -> vector<128x1xf32>
    %35 = vector.broadcast %34 : vector<128x1xf32> to vector<128x128xf32>
    %36 = arith.mulf %31, %35 : vector<128x128xf32>
    %cst_22 = arith.constant dense<0.000000e+00> : vector<128x16xf32>
    %37 = tpu.matmul %36, %22, %cst_22 {dimension_numbers = #tpu.dot_dimension_numbers<[1], [0], [0], [1], [0, 0, 1, 1], [], []>} : vector<128x128xf32>, vector<128x16xf32>, vector<128x16xf32> -> vector<128x16xf32>
    %c0_23 = arith.constant 0 : index
    %c0_24 = arith.constant 0 : index
    %c16 = arith.constant 16 : index
    %38 = vector.load %arg1[%c0_23, %c0_24, %c16] : memref<1x128x64xf32, #tpu.memory_space<vmem>>, vector<1x128x16xf32>
    %39 = vector.shape_cast %38 : vector<1x128x16xf32> to vector<128x16xf32>
    %c0_25 = arith.constant 0 : index
    %c0_26 = arith.constant 0 : index
    %c16_27 = arith.constant 16 : index
    %40 = vector.load %arg2[%c0_25, %c0_26, %c16_27] : memref<1x128x64xf32, #tpu.memory_space<vmem>>, vector<1x128x16xf32>
    %41 = vector.shape_cast %40 : vector<1x128x16xf32> to vector<128x16xf32>
    %c0_28 = arith.constant 0 : index
    %c0_29 = arith.constant 0 : index
    %c16_30 = arith.constant 16 : index
    %42 = vector.load %arg3[%c0_28, %c0_29, %c16_30] : memref<1x128x64xf32, #tpu.memory_space<vmem>>, vector<1x128x16xf32>
    %43 = vector.shape_cast %42 : vector<1x128x16xf32> to vector<128x16xf32>
    %c0_31 = arith.constant 0 : index
    %c1 = arith.constant 1 : index
    %c0_32 = arith.constant 0 : index
    %c0_33 = arith.constant 0 : index
    %44 = vector.load %arg4[%c0_31, %c1, %c0_32, %c0_33] : memref<1x4x128x16xf32, #tpu.memory_space<vmem>>, vector<1x1x128x16xf32>
    %45 = vector.shape_cast %44 : vector<1x1x128x16xf32> to vector<128x16xf32>
    %c1_34 = arith.constant 1 : index
    %c0_35 = arith.constant 0 : index
    %c0_36 = arith.constant 0 : index
    %46 = vector.load %arg5[%c1_34, %c0_35, %c0_36] : memref<4x128x128xf32, #tpu.memory_space<vmem>>, vector<1x128x128xf32>
    %47 = vector.shape_cast %46 : vector<1x128x128xf32> to vector<128x128xf32>
    %cst_37 = arith.constant dense<0.000000e+00> : vector<128x128xf32>
    %48 = tpu.matmul %45, %41, %cst_37 {dimension_numbers = #tpu.dot_dimension_numbers<[1], [1], [0], [0], [0, 0, 1, 0], [], []>} : vector<128x16xf32>, vector<128x16xf32>, vector<128x128xf32> -> vector<128x128xf32>
    %49 = arith.addf %48, %47 : vector<128x128xf32>
    %cst_38 = arith.constant dense<0xFF800000> : vector<128xf32>
    %50 = vector.multi_reduction <maximumf>, %49, %cst_38 [1] : vector<128x128xf32> to vector<128xf32>
    %51 = vector.shape_cast %50 : vector<128xf32> to vector<128x1xf32>
    %52 = vector.broadcast %51 : vector<128x1xf32> to vector<128x128xf32>
    %53 = arith.subf %49, %52 : vector<128x128xf32>
    %54 = math.exp %53 : vector<128x128xf32>
    %cst_39 = arith.constant dense<0.000000e+00> : vector<128xf32>
    %55 = vector.multi_reduction <add>, %54, %cst_39 [1] : vector<128x128xf32> to vector<128xf32>
    %56 = vector.shape_cast %55 : vector<128xf32> to vector<128x1xf32>
    %57 = tpu.reciprocal %56 {approx = true} : vector<128x1xf32> -> vector<128x1xf32>
    %58 = vector.broadcast %57 : vector<128x1xf32> to vector<128x128xf32>
    %59 = arith.mulf %54, %58 : vector<128x128xf32>
    %cst_40 = arith.constant dense<0.000000e+00> : vector<128x16xf32>
    %60 = tpu.matmul %59, %43, %cst_40 {dimension_numbers = #tpu.dot_dimension_numbers<[1], [0], [0], [1], [0, 0, 1, 1], [], []>} : vector<128x128xf32>, vector<128x16xf32>, vector<128x16xf32> -> vector<128x16xf32>
    %cst_41 = arith.constant 2.500000e-01 : f32
    %61 = vector.broadcast %cst_41 : f32 to vector<128x16xf32>
    %62 = arith.mulf %39, %61 : vector<128x16xf32>
    %cst_42 = arith.constant dense<0.000000e+00> : vector<128x128xf32>
    %63 = tpu.matmul %62, %45, %cst_42 {dimension_numbers = #tpu.dot_dimension_numbers<[1], [1], [0], [0], [0, 0, 1, 0], [], []>} : vector<128x16xf32>, vector<128x16xf32>, vector<128x128xf32> -> vector<128x128xf32>
    %64 = arith.addf %63, %47 : vector<128x128xf32>
    %cst_43 = arith.constant dense<0xFF800000> : vector<128xf32>
    %65 = vector.multi_reduction <maximumf>, %64, %cst_43 [1] : vector<128x128xf32> to vector<128xf32>
    %66 = vector.shape_cast %65 : vector<128xf32> to vector<128x1xf32>
    %67 = vector.broadcast %66 : vector<128x1xf32> to vector<128x128xf32>
    %68 = arith.subf %64, %67 : vector<128x128xf32>
    %69 = math.exp %68 : vector<128x128xf32>
    %cst_44 = arith.constant dense<0.000000e+00> : vector<128xf32>
    %70 = vector.multi_reduction <add>, %69, %cst_44 [1] : vector<128x128xf32> to vector<128xf32>
    %71 = vector.shape_cast %70 : vector<128xf32> to vector<128x1xf32>
    %72 = tpu.reciprocal %71 {approx = true} : vector<128x1xf32> -> vector<128x1xf32>
    %73 = vector.broadcast %72 : vector<128x1xf32> to vector<128x128xf32>
    %74 = arith.mulf %69, %73 : vector<128x128xf32>
    %cst_45 = arith.constant dense<0.000000e+00> : vector<128x16xf32>
    %75 = tpu.matmul %74, %60, %cst_45 {dimension_numbers = #tpu.dot_dimension_numbers<[1], [0], [0], [1], [0, 0, 1, 1], [], []>} : vector<128x128xf32>, vector<128x16xf32>, vector<128x16xf32> -> vector<128x16xf32>
    %c0_46 = arith.constant 0 : index
    %c0_47 = arith.constant 0 : index
    %c32 = arith.constant 32 : index
    %76 = vector.load %arg1[%c0_46, %c0_47, %c32] : memref<1x128x64xf32, #tpu.memory_space<vmem>>, vector<1x128x16xf32>
    %77 = vector.shape_cast %76 : vector<1x128x16xf32> to vector<128x16xf32>
    %c0_48 = arith.constant 0 : index
    %c0_49 = arith.constant 0 : index
    %c32_50 = arith.constant 32 : index
    %78 = vector.load %arg2[%c0_48, %c0_49, %c32_50] : memref<1x128x64xf32, #tpu.memory_space<vmem>>, vector<1x128x16xf32>
    %79 = vector.shape_cast %78 : vector<1x128x16xf32> to vector<128x16xf32>
    %c0_51 = arith.constant 0 : index
    %c0_52 = arith.constant 0 : index
    %c32_53 = arith.constant 32 : index
    %80 = vector.load %arg3[%c0_51, %c0_52, %c32_53] : memref<1x128x64xf32, #tpu.memory_space<vmem>>, vector<1x128x16xf32>
    %81 = vector.shape_cast %80 : vector<1x128x16xf32> to vector<128x16xf32>
    %c0_54 = arith.constant 0 : index
    %c2 = arith.constant 2 : index
    %c0_55 = arith.constant 0 : index
    %c0_56 = arith.constant 0 : index
    %82 = vector.load %arg4[%c0_54, %c2, %c0_55, %c0_56] : memref<1x4x128x16xf32, #tpu.memory_space<vmem>>, vector<1x1x128x16xf32>
    %83 = vector.shape_cast %82 : vector<1x1x128x16xf32> to vector<128x16xf32>
    %c2_57 = arith.constant 2 : index
    %c0_58 = arith.constant 0 : index
    %c0_59 = arith.constant 0 : index
    %84 = vector.load %arg5[%c2_57, %c0_58, %c0_59] : memref<4x128x128xf32, #tpu.memory_space<vmem>>, vector<1x128x128xf32>
    %85 = vector.shape_cast %84 : vector<1x128x128xf32> to vector<128x128xf32>
    %cst_60 = arith.constant dense<0.000000e+00> : vector<128x128xf32>
    %86 = tpu.matmul %83, %79, %cst_60 {dimension_numbers = #tpu.dot_dimension_numbers<[1], [1], [0], [0], [0, 0, 1, 0], [], []>} : vector<128x16xf32>, vector<128x16xf32>, vector<128x128xf32> -> vector<128x128xf32>
    %87 = arith.addf %86, %85 : vector<128x128xf32>
    %cst_61 = arith.constant dense<0xFF800000> : vector<128xf32>
    %88 = vector.multi_reduction <maximumf>, %87, %cst_61 [1] : vector<128x128xf32> to vector<128xf32>
    %89 = vector.shape_cast %88 : vector<128xf32> to vector<128x1xf32>
    %90 = vector.broadcast %89 : vector<128x1xf32> to vector<128x128xf32>
    %91 = arith.subf %87, %90 : vector<128x128xf32>
    %92 = math.exp %91 : vector<128x128xf32>
    %cst_62 = arith.constant dense<0.000000e+00> : vector<128xf32>
    %93 = vector.multi_reduction <add>, %92, %cst_62 [1] : vector<128x128xf32> to vector<128xf32>
    %94 = vector.shape_cast %93 : vector<128xf32> to vector<128x1xf32>
    %95 = tpu.reciprocal %94 {approx = true} : vector<128x1xf32> -> vector<128x1xf32>
    %96 = vector.broadcast %95 : vector<128x1xf32> to vector<128x128xf32>
    %97 = arith.mulf %92, %96 : vector<128x128xf32>
    %cst_63 = arith.constant dense<0.000000e+00> : vector<128x16xf32>
    %98 = tpu.matmul %97, %81, %cst_63 {dimension_numbers = #tpu.dot_dimension_numbers<[1], [0], [0], [1], [0, 0, 1, 1], [], []>} : vector<128x128xf32>, vector<128x16xf32>, vector<128x16xf32> -> vector<128x16xf32>
    %cst_64 = arith.constant 2.500000e-01 : f32
    %99 = vector.broadcast %cst_64 : f32 to vector<128x16xf32>
    %100 = arith.mulf %77, %99 : vector<128x16xf32>
    %cst_65 = arith.constant dense<0.000000e+00> : vector<128x128xf32>
    %101 = tpu.matmul %100, %83, %cst_65 {dimension_numbers = #tpu.dot_dimension_numbers<[1], [1], [0], [0], [0, 0, 1, 0], [], []>} : vector<128x16xf32>, vector<128x16xf32>, vector<128x128xf32> -> vector<128x128xf32>
    %102 = arith.addf %101, %85 : vector<128x128xf32>
    %cst_66 = arith.constant dense<0xFF800000> : vector<128xf32>
    %103 = vector.multi_reduction <maximumf>, %102, %cst_66 [1] : vector<128x128xf32> to vector<128xf32>
    %104 = vector.shape_cast %103 : vector<128xf32> to vector<128x1xf32>
    %105 = vector.broadcast %104 : vector<128x1xf32> to vector<128x128xf32>
    %106 = arith.subf %102, %105 : vector<128x128xf32>
    %107 = math.exp %106 : vector<128x128xf32>
    %cst_67 = arith.constant dense<0.000000e+00> : vector<128xf32>
    %108 = vector.multi_reduction <add>, %107, %cst_67 [1] : vector<128x128xf32> to vector<128xf32>
    %109 = vector.shape_cast %108 : vector<128xf32> to vector<128x1xf32>
    %110 = tpu.reciprocal %109 {approx = true} : vector<128x1xf32> -> vector<128x1xf32>
    %111 = vector.broadcast %110 : vector<128x1xf32> to vector<128x128xf32>
    %112 = arith.mulf %107, %111 : vector<128x128xf32>
    %cst_68 = arith.constant dense<0.000000e+00> : vector<128x16xf32>
    %113 = tpu.matmul %112, %98, %cst_68 {dimension_numbers = #tpu.dot_dimension_numbers<[1], [0], [0], [1], [0, 0, 1, 1], [], []>} : vector<128x128xf32>, vector<128x16xf32>, vector<128x16xf32> -> vector<128x16xf32>
    %c0_69 = arith.constant 0 : index
    %c0_70 = arith.constant 0 : index
    %c48 = arith.constant 48 : index
    %114 = vector.load %arg1[%c0_69, %c0_70, %c48] : memref<1x128x64xf32, #tpu.memory_space<vmem>>, vector<1x128x16xf32>
    %115 = vector.shape_cast %114 : vector<1x128x16xf32> to vector<128x16xf32>
    %c0_71 = arith.constant 0 : index
    %c0_72 = arith.constant 0 : index
    %c48_73 = arith.constant 48 : index
    %116 = vector.load %arg2[%c0_71, %c0_72, %c48_73] : memref<1x128x64xf32, #tpu.memory_space<vmem>>, vector<1x128x16xf32>
    %117 = vector.shape_cast %116 : vector<1x128x16xf32> to vector<128x16xf32>
    %c0_74 = arith.constant 0 : index
    %c0_75 = arith.constant 0 : index
    %c48_76 = arith.constant 48 : index
    %118 = vector.load %arg3[%c0_74, %c0_75, %c48_76] : memref<1x128x64xf32, #tpu.memory_space<vmem>>, vector<1x128x16xf32>
    %119 = vector.shape_cast %118 : vector<1x128x16xf32> to vector<128x16xf32>
    %c0_77 = arith.constant 0 : index
    %c3 = arith.constant 3 : index
    %c0_78 = arith.constant 0 : index
    %c0_79 = arith.constant 0 : index
    %120 = vector.load %arg4[%c0_77, %c3, %c0_78, %c0_79] : memref<1x4x128x16xf32, #tpu.memory_space<vmem>>, vector<1x1x128x16xf32>
    %121 = vector.shape_cast %120 : vector<1x1x128x16xf32> to vector<128x16xf32>
    %c3_80 = arith.constant 3 : index
    %c0_81 = arith.constant 0 : index
    %c0_82 = arith.constant 0 : index
    %122 = vector.load %arg5[%c3_80, %c0_81, %c0_82] : memref<4x128x128xf32, #tpu.memory_space<vmem>>, vector<1x128x128xf32>
    %123 = vector.shape_cast %122 : vector<1x128x128xf32> to vector<128x128xf32>
    %cst_83 = arith.constant dense<0.000000e+00> : vector<128x128xf32>
    %124 = tpu.matmul %121, %117, %cst_83 {dimension_numbers = #tpu.dot_dimension_numbers<[1], [1], [0], [0], [0, 0, 1, 0], [], []>} : vector<128x16xf32>, vector<128x16xf32>, vector<128x128xf32> -> vector<128x128xf32>
    %125 = arith.addf %124, %123 : vector<128x128xf32>
    %cst_84 = arith.constant dense<0xFF800000> : vector<128xf32>
    %126 = vector.multi_reduction <maximumf>, %125, %cst_84 [1] : vector<128x128xf32> to vector<128xf32>
    %127 = vector.shape_cast %126 : vector<128xf32> to vector<128x1xf32>
    %128 = vector.broadcast %127 : vector<128x1xf32> to vector<128x128xf32>
    %129 = arith.subf %125, %128 : vector<128x128xf32>
    %130 = math.exp %129 : vector<128x128xf32>
    %cst_85 = arith.constant dense<0.000000e+00> : vector<128xf32>
    %131 = vector.multi_reduction <add>, %130, %cst_85 [1] : vector<128x128xf32> to vector<128xf32>
    %132 = vector.shape_cast %131 : vector<128xf32> to vector<128x1xf32>
    %133 = tpu.reciprocal %132 {approx = true} : vector<128x1xf32> -> vector<128x1xf32>
    %134 = vector.broadcast %133 : vector<128x1xf32> to vector<128x128xf32>
    %135 = arith.mulf %130, %134 : vector<128x128xf32>
    %cst_86 = arith.constant dense<0.000000e+00> : vector<128x16xf32>
    %136 = tpu.matmul %135, %119, %cst_86 {dimension_numbers = #tpu.dot_dimension_numbers<[1], [0], [0], [1], [0, 0, 1, 1], [], []>} : vector<128x128xf32>, vector<128x16xf32>, vector<128x16xf32> -> vector<128x16xf32>
    %cst_87 = arith.constant 2.500000e-01 : f32
    %137 = vector.broadcast %cst_87 : f32 to vector<128x16xf32>
    %138 = arith.mulf %115, %137 : vector<128x16xf32>
    %cst_88 = arith.constant dense<0.000000e+00> : vector<128x128xf32>
    %139 = tpu.matmul %138, %121, %cst_88 {dimension_numbers = #tpu.dot_dimension_numbers<[1], [1], [0], [0], [0, 0, 1, 0], [], []>} : vector<128x16xf32>, vector<128x16xf32>, vector<128x128xf32> -> vector<128x128xf32>
    %140 = arith.addf %139, %123 : vector<128x128xf32>
    %cst_89 = arith.constant dense<0xFF800000> : vector<128xf32>
    %141 = vector.multi_reduction <maximumf>, %140, %cst_89 [1] : vector<128x128xf32> to vector<128xf32>
    %142 = vector.shape_cast %141 : vector<128xf32> to vector<128x1xf32>
    %143 = vector.broadcast %142 : vector<128x1xf32> to vector<128x128xf32>
    %144 = arith.subf %140, %143 : vector<128x128xf32>
    %145 = math.exp %144 : vector<128x128xf32>
    %cst_90 = arith.constant dense<0.000000e+00> : vector<128xf32>
    %146 = vector.multi_reduction <add>, %145, %cst_90 [1] : vector<128x128xf32> to vector<128xf32>
    %147 = vector.shape_cast %146 : vector<128xf32> to vector<128x1xf32>
    %148 = tpu.reciprocal %147 {approx = true} : vector<128x1xf32> -> vector<128x1xf32>
    %149 = vector.broadcast %148 : vector<128x1xf32> to vector<128x128xf32>
    %150 = arith.mulf %145, %149 : vector<128x128xf32>
    %cst_91 = arith.constant dense<0.000000e+00> : vector<128x16xf32>
    %151 = tpu.matmul %150, %136, %cst_91 {dimension_numbers = #tpu.dot_dimension_numbers<[1], [0], [0], [1], [0, 0, 1, 1], [], []>} : vector<128x128xf32>, vector<128x16xf32>, vector<128x16xf32> -> vector<128x16xf32>
    %152 = tpu.concatenate %37, %75, %113, %151 in 1 : vector<128x16xf32>, vector<128x16xf32>, vector<128x16xf32>, vector<128x16xf32> -> vector<128x64xf32>
    %c0_92 = arith.constant 0 : index
    %c0_93 = arith.constant 0 : index
    %c0_94 = arith.constant 0 : index
    %153 = vector.load %arg6[%c0_92, %c0_93, %c0_94] : memref<1x128x64xf32, #tpu.memory_space<vmem>>, vector<1x128x64xf32>
    %154 = vector.shape_cast %153 : vector<1x128x64xf32> to vector<128x64xf32>
    %155 = vector.shape_cast %152 : vector<128x64xf32> to vector<1x128x64xf32>
    tpu.vector_store %arg6[%c0_92, %c0_93, %c0_94], %155 {strides = array<i32>} : memref<1x128x64xf32, #tpu.memory_space<vmem>>, vector<1x128x64xf32>,
    return
  }
  func.func @transform_0(%arg0: i32) -> (i32, i32, i32) {
    %c0_i32 = arith.constant 0 : i32
    %c0_i32_0 = arith.constant 0 : i32
    %c0_i32_1 = arith.constant 0 : i32
    return %arg0, %c0_i32, %c0_i32_0 : i32, i32, i32
  }
  func.func @transform_1(%arg0: i32) -> (i32, i32, i32) {
    %c0_i32 = arith.constant 0 : i32
    %c0_i32_0 = arith.constant 0 : i32
    %c0_i32_1 = arith.constant 0 : i32
    return %arg0, %c0_i32, %c0_i32_0 : i32, i32, i32
  }
  func.func @transform_2(%arg0: i32) -> (i32, i32, i32) {
    %c0_i32 = arith.constant 0 : i32
    %c0_i32_0 = arith.constant 0 : i32
    %c0_i32_1 = arith.constant 0 : i32
    return %arg0, %c0_i32, %c0_i32_0 : i32, i32, i32
  }
  func.func @transform_3(%arg0: i32) -> (i32, i32, i32, i32) {
    %c0_i32 = arith.constant 0 : i32
    %c0_i32_0 = arith.constant 0 : i32
    %c0_i32_1 = arith.constant 0 : i32
    %c0_i32_2 = arith.constant 0 : i32
    return %arg0, %c0_i32, %c0_i32_0, %c0_i32_1 : i32, i32, i32, i32
  }
  func.func @transform_4(%arg0: i32) -> (i32, i32, i32) {
    %c0_i32 = arith.constant 0 : i32
    %c0_i32_0 = arith.constant 0 : i32
    %c0_i32_1 = arith.constant 0 : i32
    %c0_i32_2 = arith.constant 0 : i32
    return %c0_i32, %c0_i32_0, %c0_i32_1 : i32, i32, i32
  }
  func.func @transform_5(%arg0: i32) -> (i32, i32, i32) {
    %c0_i32 = arith.constant 0 : i32
    %c0_i32_0 = arith.constant 0 : i32
    %c0_i32_1 = arith.constant 0 : i32
    return %arg0, %c0_i32, %c0_i32_0 : i32, i32, i32
  }
}

</mosaic_0001>

<llo_original>
// kernel: agent_attention_forward.3
$region0: #{agent_attention_forward.3}
  #allocation0 [shape = 'u32[]', space=smem, size = 0x4, offset = 0x4, fixed_abs, tag = 'smem constant byte address 0x4 - core index']
  #allocation1 [shape = 'u32[72,128]{1,0:T(1,128)}', space=vmem, size = 0x9000, scoped, tag = 'internal scratch']
  %s0 = inlined_call_operand.vmem [shape: f32[256,64], index: 0, kind: input, shape index: {}]
  %s1 = inlined_call_operand.vmem [shape: f32[64,192], index: 1, kind: input, shape index: {}]
  %s2 = inlined_call_operand.vmem [shape: f32[256,64], index: 2, kind: output, shape index: {0}]
  %s3 = inlined_call_operand.vmem [shape: f32[256,64], index: 3, kind: output, shape index: {1}]
  %s4 = inlined_call_operand.vmem [shape: f32[256,64], index: 4, kind: output, shape index: {2}]
  %5 = xla_tuple %s2, %s3, %s4
  %s6 = sld [smem:[#allocation0]]
  $region57: #{agent_attention_forward.3} parent=0
    _
  %s8 = ssub.s32 1, %s6
  %s9 = scalar_select 0, %s8, %s6
  loop: start=0, step=1, limit=4
  $region2: #{agent_attention_forward.3} parent=0 // loop_pre_header
    _
  $region3: #{agent_attention_forward.3} parent=0 // loop_header
    %s11 = sphi 0, %s15
    %p12 = scmp.ge.s32.totalorder %s11, 4
    %s21 = sphi 0, %s23
    %s24 = sphi 0, %s21
    %s25 = sphi 0, %s24
    %s41 = sphi 0, %s25
    %s45 = sphi 0, %s45
    %s47 = sphi 0, %s45
    %s48 = sphi 0, %s47
    %s62 = sphi 0, %s48
    %s68 = sphi 0, %s70
    %s71 = sphi 0, %s68
    %s72 = sphi 0, %s71
    %s88 = sphi 0, %s72
    %s94 = sphi 0, %s96
    %s97 = sphi 0, %s94
    %s98 = sphi 0, %s97
    %s114 = sphi 0, %s98
    %s120 = sphi 0, %s122
    %s123 = sphi 0, %s120
    %s124 = sphi 0, %s123
    %s140 = sphi 0, %s124
  $region4: #{agent_attention_forward.3} parent=0 // loop_header_branch
    %14 = sbr.rel (%p12) target = $region8
  $region5: #{agent_attention_forward.3} parent=0 // loop_body
    %s16 = ssub.s32 %s11, 1
    %s17 = ssub.s32 %s11, 2
    %s18 = sadd.s32 %s11, 1
    %s19 = ssub.s32 %s11, %s18
    %p20 = scmp.eq.s32.totalorder %s19, 0
    %s22 = sadd.s32 %s21, 1
    %s23 = scalar_select %p20, %s21, %s22
    %p26 = pneg %p20
    %p27 = scmp.eq.s32.totalorder %s11, 1
    %p28 = por %p26, %p27
    %p29 = scmp.ne.s32.totalorder %s21, %s24
    %p30 = scmp.eq.s32.totalorder %s11, 0
    %p31 = por %p29, %p30
    %p32 = scmp.ne.s32.totalorder %s21, %s24
    %p33 = scmp.eq.s32.totalorder %s16, 1
    %p34 = por %p32, %p33
    %p35 = scmp.ne.s32.totalorder %s24, %s25
    %p36 = scmp.eq.s32.totalorder %s16, 0
    %p37 = por %p35, %p36
    %p38 = scmp.ne.s32.totalorder %s24, %s25
    %p39 = scmp.eq.s32.totalorder %s17, 1
    %p40 = por %p38, %p39
    %p42 = scmp.ne.s32.totalorder %s25, %s41
    %p43 = scmp.eq.s32.totalorder %s17, 0
    %p44 = por %p42, %p43
    %s46 = sadd.s32 %s45, 1
    %p49 = scmp.eq.s32.totalorder %s11, 1
    %p50 = scmp.ne.s32.totalorder %s45, %s47
    %p51 = scmp.eq.s32.totalorder %s11, 0
    %p52 = por %p50, %p51
    %p53 = scmp.ne.s32.totalorder %s45, %s47
    %p54 = scmp.eq.s32.totalorder %s16, 1
    %p55 = por %p53, %p54
    %p56 = scmp.ne.s32.totalorder %s47, %s48
    %p57 = scmp.eq.s32.totalorder %s16, 0
    %p58 = por %p56, %p57
    %p59 = scmp.ne.s32.totalorder %s47, %s48
    %p60 = scmp.eq.s32.totalorder %s17, 1
    %p61 = por %p59, %p60
    %p63 = scmp.ne.s32.totalorder %s48, %s62
    %p64 = scmp.eq.s32.totalorder %s17, 0
    %p65 = por %p63, %p64
    %s66 = ssub.s32 %s11, %s18
    %p67 = scmp.eq.s32.totalorder %s66, 0
    %s69 = sadd.s32 %s68, 1
    %s70 = scalar_select %p67, %s68, %s69
    %p73 = pneg %p67
    %p74 = scmp.eq.s32.totalorder %s11, 1
    %p75 = por %p73, %p74
    %p76 = scmp.ne.s32.totalorder %s68, %s71
    %p77 = scmp.eq.s32.totalorder %s11, 0
    %p78 = por %p76, %p77
    %p79 = scmp.ne.s32.totalorder %s68, %s71
    %p80 = scmp.eq.s32.totalorder %s16, 1
    %p81 = por %p79, %p80
    %p82 = scmp.ne.s32.totalorder %s71, %s72
    %p83 = scmp.eq.s32.totalorder %s16, 0
    %p84 = por %p82, %p83
    %p85 = scmp.ne.s32.totalorder %s71, %s72
    %p86 = scmp.eq.s32.totalorder %s17, 1
    %p87 = por %p85, %p86
    %p89 = scmp.ne.s32.totalorder %s72, %s88
    %p90 = scmp.eq.s32.totalorder %s17, 0
    %p91 = por %p89, %p90
    %s92 = ssub.s32 %s11, %s18
    %p93 = scmp.eq.s32.totalorder %s92, 0
    %s95 = sadd.s32 %s94, 1
    %s96 = scalar_select %p93, %s94, %s95
    %p99 = pneg %p93
    %p100 = scmp.eq.s32.totalorder %s11, 1
    %p101 = por %p99, %p100
    %p102 = scmp.ne.s32.totalorder %s94, %s97
    %p103 = scmp.eq.s32.totalorder %s11, 0
    %p104 = por %p102, %p103
    %p105 = scmp.ne.s32.totalorder %s94, %s97
    %p106 = scmp.eq.s32.totalorder %s16, 1
    %p107 = por %p105, %p106
    %p108 = scmp.ne.s32.totalorder %s97, %s98
    %p109 = scmp.eq.s32.totalorder %s16, 0
    %p110 = por %p108, %p109
    %p111 = scmp.ne.s32.totalorder %s97, %s98
    %p112 = scmp.eq.s32.totalorder %s17, 1
    %p113 = por %p111, %p112
    %p115 = scmp.ne.s32.totalorder %s98, %s114
    %p116 = scmp.eq.s32.totalorder %s17, 0
    %p117 = por %p115, %p116
    %s118 = ssub.s32 %s11, %s18
    %p119 = scmp.eq.s32.totalorder %s118, 0
    %s121 = sadd.s32 %s120, 1
    %s122 = scalar_select %p119, %s120, %s121
    %p125 = pneg %p119
    %p126 = scmp.eq.s32.totalorder %s11, 1
    %p127 = por %p125, %p126
    %p128 = scmp.ne.s32.totalorder %s120, %s123
    %p129 = scmp.eq.s32.totalorder %s11, 0
    %p130 = por %p128, %p129
    %p131 = scmp.ne.s32.totalorder %s120, %s123
    %p132 = scmp.eq.s32.totalorder %s16, 1
    %p133 = por %p131, %p132
    %p134 = scmp.ne.s32.totalorder %s123, %s124
    %p135 = scmp.eq.s32.totalorder %s16, 0
    %p136 = por %p134, %p135
    %p137 = scmp.ne.s32.totalorder %s123, %s124
    %p138 = scmp.eq.s32.totalorder %s17, 1
    %p139 = por %p137, %p138
    %p141 = scmp.ne.s32.totalorder %s124, %s140
    %p142 = scmp.eq.s32.totalorder %s17, 0
    %p143 = por %p141, %p142
    %p144 = scmp.le.s32.totalorder 1, %s11
    %p145 = scmp.lt.s32.totalorder %s11, 3
    %p146 = pnand %p144, %p145
    %p147 = pneg %p146
    // Predicated region
    $region9: #{agent_attention_forward.3} parent=5 // pred_check
      _
    $region10: #{agent_attention_forward.3} parent=5 // pred_check_branch
      %149 = sbr.rel (%p146) target = $region12
    $region11: #{agent_attention_forward.3} parent=5 // pred_region
      %s150 = ssub.s32 %s11, 1
      // Predicated region
      $region13: #{agent_attention_forward.3} parent=11 // pred_check
        %p151 = pneg %p58
      $region14: #{agent_attention_forward.3} parent=11 // pred_check_branch
        %153 = sbr.rel (%p151) target = $region16
      $region15: #{agent_attention_forward.3} parent=11 // pred_region
        _
      $region16: #{agent_attention_forward.3} parent=11 // pred_fallthru
        _
    $region12: #{agent_attention_forward.3} parent=5 // pred_fallthru
      _
    %p154 = scmp.lt.s32.totalorder %s11, 2
    // Predicated region
    $region17: #{agent_attention_forward.3} parent=5 // pred_check
      %p155 = pneg %p154
    $region18: #{agent_attention_forward.3} parent=5 // pred_check_branch
      %157 = sbr.rel (%p155) target = $region20
    $region19: #{agent_attention_forward.3} parent=5 // pred_region
      // Predicated region
      $region21: #{agent_attention_forward.3} parent=19 // pred_check
        %p158 = pneg %p31
      $region22: #{agent_attention_forward.3} parent=19 // pred_check_branch
        %160 = sbr.rel (%p158) target = $region24
      $region23: #{agent_attention_forward.3} parent=19 // pred_region
        %s161 = smul.u32 16, %s11
        %p162 = scmp.lt.s32.totalorder %s161, 31
        %s163 = scalar_select %p162, %s161, 31
        %s164 = smul.addr %s163, 8
        %s165 = scalar_lea.vmem %s0, %s164
        %s166 = smul.u32 16, %s11
      $region24: #{agent_attention_forward.3} parent=19 // pred_fallthru
        _
    $region20: #{agent_attention_forward.3} parent=5 // pred_fallthru
      _
    %p167 = scmp.le.s32.totalorder 1, %s11
    %p168 = scmp.lt.s32.totalorder %s11, 3
    %p169 = pnand %p167, %p168
    %p170 = pneg %p169
    // Predicated region
    $region25: #{agent_attention_forward.3} parent=5 // pred_check
      _
    $region26: #{agent_attention_forward.3} parent=5 // pred_check_branch
      %172 = sbr.rel (%p169) target = $region28
    $region27: #{agent_attention_forward.3} parent=5 // pred_region
      %s173 = ssub.s32 %s11, 1
      %s174 = smul.u32 16, %s16
      %p175 = scmp.lt.s32.totalorder %s174, 31
      %s176 = scalar_select %p175, %s174, 31
      %s177 = smul.addr %s176, 8
      %s178 = scalar_lea.vmem %s0, %s177
      %p179 = pneg %p37
      %p180 = pneg %p34
      %p181 = pneg %p58
      %p182 = pneg %p55
      %p183 = pneg %p84
      %p184 = pneg %p81
      %s185 = smul.u32 16, %s16
      %p186 = scmp.lt.s32.totalorder %s185, 31
      %s187 = scalar_select %p186, %s185, 31
      %s188 = smul.addr %s187, 8
      %s189 = scalar_lea.vmem %s2, %s188
      %p190 = pneg %p110
      %p191 = pneg %p107
      %s192 = smul.u32 16, %s16
      %p193 = scmp.lt.s32.totalorder %s192, 31
      %s194 = scalar_select %p193, %s192, 31
      %s195 = smul.addr %s194, 8
      %s196 = scalar_lea.vmem %s3, %s195
      %p197 = pneg %p136
      %p198 = pneg %p133
      %s199 = smul.u32 16, %s16
      %p200 = scmp.lt.s32.totalorder %s199, 31
      %s201 = scalar_select %p200, %s199, 31
      %s202 = smul.addr %s201, 8
      %s203 = scalar_lea.vmem %s4, %s202
      %s204 = smul.u32 16, %s16
      %p205 = scmp.lt.s32.totalorder %s204, 31
      %s206 = scalar_select %p205, %s204, 31
      %s207 = smul.addr %s206, 8
      %s208 = scalar_lea.vmem %s0, %s207
      %s209 = smul.u32 16, %s16
      %s210 = smul.u32 16, %s16
      %p211 = scmp.lt.s32.totalorder %s210, 31
      %s212 = scalar_select %p211, %s210, 31
      %s213 = smul.addr %s212, 8
      %s214 = scalar_lea.vmem %s2, %s213
      %s215 = smul.u32 16, %s16
      %s216 = smul.u32 16, %s16
      %p217 = scmp.lt.s32.totalorder %s216, 31
      %s218 = scalar_select %p217, %s216, 31
      %s219 = smul.addr %s218, 8
      %s220 = scalar_lea.vmem %s3, %s219
      %s221 = smul.u32 16, %s16
      %s222 = smul.u32 16, %s16
      %p223 = scmp.lt.s32.totalorder %s222, 31
      %s224 = scalar_select %p223, %s222, 31
      %s225 = smul.addr %s224, 8
      %s226 = scalar_lea.vmem %s4, %s225
      %s227 = smul.u32 16, %s16
      %v228 = vld [vmem:[%s208] sm:$0xff]
      %v229 = vld [vmem:[%s208 + $0x8] sm:$0xff]
      %v230 = vld [vmem:[%s208 + $0x10] sm:$0xff]
      %v231 = vld [vmem:[%s208 + $0x18] sm:$0xff]
      %v232 = vld [vmem:[%s208 + $0x20] sm:$0xff]
      %v233 = vld [vmem:[%s208 + $0x28] sm:$0xff]
      %v234 = vld [vmem:[%s208 + $0x30] sm:$0xff]
      %v235 = vld [vmem:[%s208 + $0x38] sm:$0xff]
      %v236 = vld [vmem:[%s208 + $0x40] sm:$0xff]
      %v237 = vld [vmem:[%s208 + $0x48] sm:$0xff]
      %v238 = vld [vmem:[%s208 + $0x50] sm:$0xff]
      %v239 = vld [vmem:[%s208 + $0x58] sm:$0xff]
      %v240 = vld [vmem:[%s208 + $0x60] sm:$0xff]
      %v241 = vld [vmem:[%s208 + $0x68] sm:$0xff]
      %v242 = vld [vmem:[%s208 + $0x70] sm:$0xff]
      %v243 = vld [vmem:[%s208 + $0x78] sm:$0xff]
      %v244 = vld [vmem:[%s1] sm:$0xff]
      %v245 = vld [vmem:[%s1 + $0x8] sm:$0xff]
      %v246 = vld [vmem:[%s1 + $0x10] sm:$0xff]
      %v247 = vld [vmem:[%s1 + $0x18] sm:$0xff]
      %v248 = vld [vmem:[%s1 + $0x20] sm:$0xff]
      %v249 = vld [vmem:[%s1 + $0x28] sm:$0xff]
      %v250 = vld [vmem:[%s1 + $0x30] sm:$0xff]
      %v251 = vld [vmem:[%s1 + $0x38] sm:$0xff]
      %v252 = vld [vmem:[%s1 + $0x40] sm:$0xff]
      %v253 = vld [vmem:[%s1 + $0x48] sm:$0xff]
      %v254 = vld [vmem:[%s1 + $0x50] sm:$0xff]
      %v255 = vld [vmem:[%s1 + $0x58] sm:$0xff]
      %v256 = vld [vmem:[%s1 + $0x60] sm:$0xff]
      %v257 = vld [vmem:[%s1 + $0x68] sm:$0xff]
      %v258 = vld [vmem:[%s1 + $0x70] sm:$0xff]
      %v259 = vld [vmem:[%s1 + $0x78] sm:$0xff]
      %vm260 = vcmask 523264
      %v262 = vsel %vm260, %v228, 0
      %v265 = vsel %vm260, %v229, 0
      %v268 = vsel %vm260, %v230, 0
      %v271 = vsel %vm260, %v231, 0
      %v274 = vsel %vm260, %v232, 0
      %v277 = vsel %vm260, %v233, 0
      %v280 = vsel %vm260, %v234, 0
      %v283 = vsel %vm260, %v235, 0
      %v286 = vsel %vm260, %v236, 0
      %v289 = vsel %vm260, %v237, 0
      %v292 = vsel %vm260, %v238, 0
      %v295 = vsel %vm260, %v239, 0
      %v298 = vsel %vm260, %v240, 0
      %v301 = vsel %vm260, %v241, 0
      %v304 = vsel %vm260, %v242, 0
      %v307 = vsel %vm260, %v243, 0
      %309 = vmatpush.msra.mxu0 0.0
      %310 = vmatpush.msra.mxu0 0.0
      %311 = vmatpush.msra.mxu0 0.0
      %312 = vmatpush.msra.mxu0 0.0
      %313 = vmatpush.msra.mxu0 0.0
      %314 = vmatpush.msra.mxu0 0.0
      %315 = vmatpush.msra.mxu0 0.0
      %316 = vmatpush.msra.mxu0 0.0
      %317 = vmatpush.msra.mxu0 %v258
      %318 = vmatpush.msra.mxu0 %v256
      %319 = vmatpush.msra.mxu0 %v254
      %320 = vmatpush.msra.mxu0 %v252
      %321 = vmatpush.msra.mxu0 %v250
      %322 = vmatpush.msra.mxu0 %v248
      %323 = vmatpush.msra.mxu0 %v246
      %324 = vmatpush.msra.mxu0 %v244
      %325 = vmatmul.f32.gmra.mxu0 %v262
      %v326 = vpop.f32.mrf.mxu0
      %v327 = vadd.f32 0.0, %v326
      %328 = vmatmul.f32.gmra.mxu0 %v265
      %v329 = vpop.f32.mrf.mxu0
      %v330 = vadd.f32 0.0, %v329
      %331 = vmatmul.f32.gmra.mxu0 %v268
      %v332 = vpop.f32.mrf.mxu0
      %v333 = vadd.f32 0.0, %v332
      %334 = vmatmul.f32.gmra.mxu0 %v271
      %v335 = vpop.f32.mrf.mxu0
      %v336 = vadd.f32 0.0, %v335
      %337 = vmatmul.f32.gmra.mxu0 %v274
      %v338 = vpop.f32.mrf.mxu0
      %v339 = vadd.f32 0.0, %v338
      %340 = vmatmul.f32.gmra.mxu0 %v277
      %v341 = vpop.f32.mrf.mxu0
      %v342 = vadd.f32 0.0, %v341
      %343 = vmatmul.f32.gmra.mxu0 %v280
      %v344 = vpop.f32.mrf.mxu0
      %v345 = vadd.f32 0.0, %v344
      %346 = vmatmul.f32.gmra.mxu0 %v283
      %v347 = vpop.f32.mrf.mxu0
      %v348 = vadd.f32 0.0, %v347
      %349 = vmatmul.f32.gmra.mxu0 %v286
      %v350 = vpop.f32.mrf.mxu0
      %v351 = vadd.f32 0.0, %v350
      %352 = vmatmul.f32.gmra.mxu0 %v289
      %v353 = vpop.f32.mrf.mxu0
      %v354 = vadd.f32 0.0, %v353
      %355 = vmatmul.f32.gmra.mxu0 %v292
      %v356 = vpop.f32.mrf.mxu0
      %v357 = vadd.f32 0.0, %v356
      %358 = vmatmul.f32.gmra.mxu0 %v295
      %v359 = vpop.f32.mrf.mxu0
      %v360 = vadd.f32 0.0, %v359
      %361 = vmatmul.f32.gmra.mxu0 %v298
      %v362 = vpop.f32.mrf.mxu0
      %v363 = vadd.f32 0.0, %v362
      %364 = vmatmul.f32.gmra.mxu0 %v301
      %v365 = vpop.f32.mrf.mxu0
      %v366 = vadd.f32 0.0, %v365
      %367 = vmatmul.f32.gmra.mxu0 %v304
      %v368 = vpop.f32.mrf.mxu0
      %v369 = vadd.f32 0.0, %v368
      %370 = vmatmul.f32.gmra.mxu0 %v307
      %v371 = vpop.f32.mrf.mxu0
      %v372 = vadd.f32 0.0, %v371
      %373 = vdwg.mxu0
      %374 = vmatpush.msra.mxu0 0.0
      %375 = vmatpush.msra.mxu0 0.0
      %376 = vmatpush.msra.mxu0 0.0
      %377 = vmatpush.msra.mxu0 0.0
      %378 = vmatpush.msra.mxu0 0.0
      %379 = vmatpush.msra.mxu0 0.0
      %380 = vmatpush.msra.mxu0 0.0
      %381 = vmatpush.msra.mxu0 0.0
      %382 = vmatpush.msra.mxu0 %v259
      %383 = vmatpush.msra.mxu0 %v257
      %384 = vmatpush.msra.mxu0 %v255
      %385 = vmatpush.msra.mxu0 %v253
      %386 = vmatpush.msra.mxu0 %v251
      %387 = vmatpush.msra.mxu0 %v249
      %388 = vmatpush.msra.mxu0 %v247
      %389 = vmatpush.msra.mxu0 %v245
      %390 = vmatmul.f32.gmra.mxu0 %v262
      %v391 = vpop.f32.mrf.mxu0
      %v392 = vadd.f32 0.0, %v391
      %393 = vmatmul.f32.gmra.mxu0 %v265
      %v394 = vpop.f32.mrf.mxu0
      %v395 = vadd.f32 0.0, %v394
      %396 = vmatmul.f32.gmra.mxu0 %v268
      %v397 = vpop.f32.mrf.mxu0
      %v398 = vadd.f32 0.0, %v397
      %399 = vmatmul.f32.gmra.mxu0 %v271
      %v400 = vpop.f32.mrf.mxu0
      %v401 = vadd.f32 0.0, %v400
      %402 = vmatmul.f32.gmra.mxu0 %v274
      %v403 = vpop.f32.mrf.mxu0
      %v404 = vadd.f32 0.0, %v403
      %405 = vmatmul.f32.gmra.mxu0 %v277
      %v406 = vpop.f32.mrf.mxu0
      %v407 = vadd.f32 0.0, %v406
      %408 = vmatmul.f32.gmra.mxu0 %v280
      %v409 = vpop.f32.mrf.mxu0
      %v410 = vadd.f32 0.0, %v409
      %411 = vmatmul.f32.gmra.mxu0 %v283
      %v412 = vpop.f32.mrf.mxu0
      %v413 = vadd.f32 0.0, %v412
      %414 = vmatmul.f32.gmra.mxu0 %v286
      %v415 = vpop.f32.mrf.mxu0
      %v416 = vadd.f32 0.0, %v415
      %417 = vmatmul.f32.gmra.mxu0 %v289
      %v418 = vpop.f32.mrf.mxu0
      %v419 = vadd.f32 0.0, %v418
      %420 = vmatmul.f32.gmra.mxu0 %v292
      %v421 = vpop.f32.mrf.mxu0
      %v422 = vadd.f32 0.0, %v421
      %423 = vmatmul.f32.gmra.mxu0 %v295
      %v424 = vpop.f32.mrf.mxu0
      %v425 = vadd.f32 0.0, %v424
      %426 = vmatmul.f32.gmra.mxu0 %v298
      %v427 = vpop.f32.mrf.mxu0
      %v428 = vadd.f32 0.0, %v427
      %429 = vmatmul.f32.gmra.mxu0 %v301
      %v430 = vpop.f32.mrf.mxu0
      %v431 = vadd.f32 0.0, %v430
      %432 = vmatmul.f32.gmra.mxu0 %v304
      %v433 = vpop.f32.mrf.mxu0
      %v434 = vadd.f32 0.0, %v433
      %435 = vmatmul.f32.gmra.mxu0 %v307
      %v436 = vpop.f32.mrf.mxu0
      %v437 = vadd.f32 0.0, %v436
      %438 = vdwg.mxu0
      %439 = vst.msk [vmem:[%s214] sm:$0xff] %vm260, %v327
      %440 = vst.msk [vmem:[%s214 + $0x8] sm:$0xff] %vm260, %v330
      %441 = vst.msk [vmem:[%s214 + $0x10] sm:$0xff] %vm260, %v333
      %442 = vst.msk [vmem:[%s214 + $0x18] sm:$0xff] %vm260, %v336
      %443 = vst.msk [vmem:[%s214 + $0x20] sm:$0xff] %vm260, %v339
      %444 = vst.msk [vmem:[%s214 + $0x28] sm:$0xff] %vm260, %v342
      %445 = vst.msk [vmem:[%s214 + $0x30] sm:$0xff] %vm260, %v345
      %446 = vst.msk [vmem:[%s214 + $0x38] sm:$0xff] %vm260, %v348
      %447 = vst.msk [vmem:[%s214 + $0x40] sm:$0xff] %vm260, %v351
      %448 = vst.msk [vmem:[%s214 + $0x48] sm:$0xff] %vm260, %v354
      %449 = vst.msk [vmem:[%s214 + $0x50] sm:$0xff] %vm260, %v357
      %450 = vst.msk [vmem:[%s214 + $0x58] sm:$0xff] %vm260, %v360
      %451 = vst.msk [vmem:[%s214 + $0x60] sm:$0xff] %vm260, %v363
      %452 = vst.msk [vmem:[%s214 + $0x68] sm:$0xff] %vm260, %v366
      %453 = vst.msk [vmem:[%s214 + $0x70] sm:$0xff] %vm260, %v369
      %454 = vst.msk [vmem:[%s214 + $0x78] sm:$0xff] %vm260, %v372
      %v455 = vmul.f32 %v327, 0.25
      %v456 = vmul.f32 %v330, 0.25
      %v457 = vmul.f32 %v333, 0.25
      %v458 = vmul.f32 %v336, 0.25
      %v459 = vmul.f32 %v339, 0.25
      %v460 = vmul.f32 %v342, 0.25
      %v461 = vmul.f32 %v345, 0.25
      %v462 = vmul.f32 %v348, 0.25
      %v463 = vmul.f32 %v351, 0.25
      %v464 = vmul.f32 %v354, 0.25
      %v465 = vmul.f32 %v357, 0.25
      %v466 = vmul.f32 %v360, 0.25
      %v467 = vmul.f32 %v363, 0.25
      %v468 = vmul.f32 %v366, 0.25
      %v469 = vmul.f32 %v369, 0.25
      %v470 = vmul.f32 %v372, 0.25
      %487 = vrot.lane.b32.xlu0 %v455, 64
      %v488 = vpop.permute.xlu0 %487
      %489 = vrot.lane.b32.xlu0 %v456, 64
      %v490 = vpop.permute.xlu0 %489
      %491 = vrot.lane.b32.xlu0 %v457, 64
      %v492 = vpop.permute.xlu0 %491
      %493 = vrot.lane.b32.xlu0 %v458, 64
      %v494 = vpop.permute.xlu0 %493
      %495 = vrot.lane.b32.xlu0 %v459, 64
      %v496 = vpop.permute.xlu0 %495
      %497 = vrot.lane.b32.xlu0 %v460, 64
      %v498 = vpop.permute.xlu0 %497
      %499 = vrot.lane.b32.xlu0 %v461, 64
      %v500 = vpop.permute.xlu0 %499
      %501 = vrot.lane.b32.xlu0 %v462, 64
      %v502 = vpop.permute.xlu0 %501
      %503 = vrot.lane.b32.xlu0 %v463, 64
      %v504 = vpop.permute.xlu0 %503
      %505 = vrot.lane.b32.xlu0 %v464, 64
      %v506 = vpop.permute.xlu0 %505
      %507 = vrot.lane.b32.xlu0 %v465, 64
      %v508 = vpop.permute.xlu0 %507
      %509 = vrot.lane.b32.xlu0 %v466, 64
      %v510 = vpop.permute.xlu0 %509
      %511 = vrot.lane.b32.xlu0 %v467, 64
      %v512 = vpop.permute.xlu0 %511
      %513 = vrot.lane.b32.xlu0 %v468, 64
      %v514 = vpop.permute.xlu0 %513
      %515 = vrot.lane.b32.xlu0 %v469, 64
      %v516 = vpop.permute.xlu0 %515
      %517 = vrot.lane.b32.xlu0 %v470, 64
      %v518 = vpop.permute.xlu0 %517
      %535 = vst.msk [vmem:[%s220] sm:$0xff] %vm260, %v488
      %536 = vst.msk [vmem:[%s220 + $0x8] sm:$0xff] %vm260, %v490
      %537 = vst.msk [vmem:[%s220 + $0x10] sm:$0xff] %vm260, %v492
      %538 = vst.msk [vmem:[%s220 + $0x18] sm:$0xff] %vm260, %v494
      %539 = vst.msk [vmem:[%s220 + $0x20] sm:$0xff] %vm260, %v496
      %540 = vst.msk [vmem:[%s220 + $0x28] sm:$0xff] %vm260, %v498
      %541 = vst.msk [vmem:[%s220 + $0x30] sm:$0xff] %vm260, %v500
      %542 = vst.msk [vmem:[%s220 + $0x38] sm:$0xff] %vm260, %v502
      %543 = vst.msk [vmem:[%s220 + $0x40] sm:$0xff] %vm260, %v504
      %544 = vst.msk [vmem:[%s220 + $0x48] sm:$0xff] %vm260, %v506
      %545 = vst.msk [vmem:[%s220 + $0x50] sm:$0xff] %vm260, %v508
      %546 = vst.msk [vmem:[%s220 + $0x58] sm:$0xff] %vm260, %v510
      %547 = vst.msk [vmem:[%s220 + $0x60] sm:$0xff] %vm260, %v512
      %548 = vst.msk [vmem:[%s220 + $0x68] sm:$0xff] %vm260, %v514
      %549 = vst.msk [vmem:[%s220 + $0x70] sm:$0xff] %vm260, %v516
      %550 = vst.msk [vmem:[%s220 + $0x78] sm:$0xff] %vm260, %v518
      %551 = vst.msk [vmem:[%s226] sm:$0xff] %vm260, %v392
      %552 = vst.msk [vmem:[%s226 + $0x8] sm:$0xff] %vm260, %v395
      %553 = vst.msk [vmem:[%s226 + $0x10] sm:$0xff] %vm260, %v398
      %554 = vst.msk [vmem:[%s226 + $0x18] sm:$0xff] %vm260, %v401
      %555 = vst.msk [vmem:[%s226 + $0x20] sm:$0xff] %vm260, %v404
      %556 = vst.msk [vmem:[%s226 + $0x28] sm:$0xff] %vm260, %v407
      %557 = vst.msk [vmem:[%s226 + $0x30] sm:$0xff] %vm260, %v410
      %558 = vst.msk [vmem:[%s226 + $0x38] sm:$0xff] %vm260, %v413
      %559 = vst.msk [vmem:[%s226 + $0x40] sm:$0xff] %vm260, %v416
      %560 = vst.msk [vmem:[%s226 + $0x48] sm:$0xff] %vm260, %v419
      %561 = vst.msk [vmem:[%s226 + $0x50] sm:$0xff] %vm260, %v422
      %562 = vst.msk [vmem:[%s226 + $0x58] sm:$0xff] %vm260, %v425
      %563 = vst.msk [vmem:[%s226 + $0x60] sm:$0xff] %vm260, %v428
      %564 = vst.msk [vmem:[%s226 + $0x68] sm:$0xff] %vm260, %v431
      %565 = vst.msk [vmem:[%s226 + $0x70] sm:$0xff] %vm260, %v434
      %566 = vst.msk [vmem:[%s226 + $0x78] sm:$0xff] %vm260, %v437
      %s567 = smul.u32 16, %s16
      %p568 = scmp.lt.s32.totalorder %s567, 31
      %s569 = scalar_select %p568, %s567, 31
      %s570 = smul.addr %s569, 8
      %s571 = scalar_lea.vmem %s2, %s570
      %s572 = smul.u32 16, %s16
      %p573 = scmp.lt.s32.totalorder %s572, 31
      %s574 = scalar_select %p573, %s572, 31
      %s575 = smul.addr %s574, 8
      %s576 = scalar_lea.vmem %s3, %s575
      %s577 = smul.u32 16, %s16
      %p578 = scmp.lt.s32.totalorder %s577, 31
      %s579 = scalar_select %p578, %s577, 31
      %s580 = smul.addr %s579, 8
      %s581 = scalar_lea.vmem %s4, %s580
      // Predicated region
      $region29: #{agent_attention_forward.3} parent=27 // pred_check
        %p582 = pneg %p81
      $region30: #{agent_attention_forward.3} parent=27 // pred_check_branch
        %584 = sbr.rel (%p582) target = $region32
      $region31: #{agent_attention_forward.3} parent=27 // pred_region
        %s585 = smul.u32 16, %s16
      $region32: #{agent_attention_forward.3} parent=27 // pred_fallthru
        _
      // Predicated region
      $region33: #{agent_attention_forward.3} parent=27 // pred_check
        %p586 = pneg %p107
      $region34: #{agent_attention_forward.3} parent=27 // pred_check_branch
        %588 = sbr.rel (%p586) target = $region36
      $region35: #{agent_attention_forward.3} parent=27 // pred_region
        %s589 = smul.u32 16, %s16
      $region36: #{agent_attention_forward.3} parent=27 // pred_fallthru
        _
      // Predicated region
      $region37: #{agent_attention_forward.3} parent=27 // pred_check
        %p590 = pneg %p133
      $region38: #{agent_attention_forward.3} parent=27 // pred_check_branch
        %592 = sbr.rel (%p590) target = $region40
      $region39: #{agent_attention_forward.3} parent=27 // pred_region
        %s593 = smul.u32 16, %s16
      $region40: #{agent_attention_forward.3} parent=27 // pred_fallthru
        _
    $region28: #{agent_attention_forward.3} parent=5 // pred_fallthru
      _
    %p594 = scmp.le.s32.totalorder 2, %s11
    // Predicated region
    $region41: #{agent_attention_forward.3} parent=5 // pred_check
      %p595 = pneg %p594
    $region42: #{agent_attention_forward.3} parent=5 // pred_check_branch
      %597 = sbr.rel (%p595) target = $region44
    $region43: #{agent_attention_forward.3} parent=5 // pred_region
      %s598 = ssub.s32 %s11, 2
      // Predicated region
      $region45: #{agent_attention_forward.3} parent=43 // pred_check
        %p599 = pneg %p87
      $region46: #{agent_attention_forward.3} parent=43 // pred_check_branch
        %601 = sbr.rel (%p599) target = $region48
      $region47: #{agent_attention_forward.3} parent=43 // pred_region
        %s602 = smul.u32 16, %s17
        %p603 = scmp.lt.s32.totalorder %s602, 31
        %s604 = scalar_select %p603, %s602, 31
        %s605 = smul.addr %s604, 8
        %s606 = scalar_lea.vmem %s2, %s605
      $region48: #{agent_attention_forward.3} parent=43 // pred_fallthru
        _
      // Predicated region
      $region49: #{agent_attention_forward.3} parent=43 // pred_check
        %p607 = pneg %p113
      $region50: #{agent_attention_forward.3} parent=43 // pred_check_branch
        %609 = sbr.rel (%p607) target = $region52
      $region51: #{agent_attention_forward.3} parent=43 // pred_region
        %s610 = smul.u32 16, %s17
        %p611 = scmp.lt.s32.totalorder %s610, 31
        %s612 = scalar_select %p611, %s610, 31
        %s613 = smul.addr %s612, 8
        %s614 = scalar_lea.vmem %s3, %s613
      $region52: #{agent_attention_forward.3} parent=43 // pred_fallthru
        _
      // Predicated region
      $region53: #{agent_attention_forward.3} parent=43 // pred_check
        %p615 = pneg %p139
      $region54: #{agent_attention_forward.3} parent=43 // pred_check_branch
        %617 = sbr.rel (%p615) target = $region56
      $region55: #{agent_attention_forward.3} parent=43 // pred_region
        %s618 = smul.u32 16, %s17
        %p619 = scmp.lt.s32.totalorder %s618, 31
        %s620 = scalar_select %p619, %s618, 31
        %s621 = smul.addr %s620, 8
        %s622 = scalar_lea.vmem %s4, %s621
      $region56: #{agent_attention_forward.3} parent=43 // pred_fallthru
        _
    $region44: #{agent_attention_forward.3} parent=5 // pred_fallthru
      _
  $region6: #{agent_attention_forward.3} parent=0 // loop_footer
    %s15 = sadd.s32 1, %s11
  $region7: #{agent_attention_forward.3} parent=0 // loop_footer_branch
    %10 = sbr.rel target = $region3
  $region8: #{agent_attention_forward.3} parent=0 // loop_exit
    _

// kernel: agent_attention_forward.5
$region0: #{agent_attention_forward.5}
  #allocation0 [shape = 'u32[]', space=smem, size = 0x4, offset = 0x4, fixed_abs, tag = 'smem constant byte address 0x4 - core index']
  #allocation1 [shape = 'u32[72,128]{1,0:T(1,128)}', space=vmem, size = 0x9000, scoped, tag = 'internal scratch']
  %s0 = inlined_call_operand.vmem [shape: f32[256,64], index: 0, kind: input, shape index: {}]
  %s1 = inlined_call_operand.vmem [shape: f32[64,64], index: 1, kind: input, shape index: {}]
  %s2 = inlined_call_operand.vmem [shape: f32[1,64], index: 2, kind: input, shape index: {}]
  %s3 = inlined_call_operand.vmem [shape: f32[256,64], index: 3, kind: output, shape index: {}]
  %s4 = sld [smem:[#allocation0]]
  $region45: #{agent_attention_forward.5} parent=0
    _
  %s6 = ssub.s32 1, %s4
  %s7 = scalar_select 0, %s6, %s4
  loop: start=0, step=1, limit=4
  $region2: #{agent_attention_forward.5} parent=0 // loop_pre_header
    _
  $region3: #{agent_attention_forward.5} parent=0 // loop_header
    %s9 = sphi 0, %s13
    %p10 = scmp.ge.s32.totalorder %s9, 4
    %s19 = sphi 0, %s21
    %s22 = sphi 0, %s19
    %s23 = sphi 0, %s22
    %s39 = sphi 0, %s23
    %s43 = sphi 0, %s43
    %s45 = sphi 0, %s43
    %s46 = sphi 0, %s45
    %s60 = sphi 0, %s46
    %s64 = sphi 0, %s64
    %s66 = sphi 0, %s64
    %s67 = sphi 0, %s66
    %s81 = sphi 0, %s67
    %s87 = sphi 0, %s89
    %s90 = sphi 0, %s87
    %s91 = sphi 0, %s90
    %s107 = sphi 0, %s91
  $region4: #{agent_attention_forward.5} parent=0 // loop_header_branch
    %12 = sbr.rel (%p10) target = $region8
  $region5: #{agent_attention_forward.5} parent=0 // loop_body
    %s14 = ssub.s32 %s9, 1
    %s15 = ssub.s32 %s9, 2
    %s16 = sadd.s32 %s9, 1
    %s17 = ssub.s32 %s9, %s16
    %p18 = scmp.eq.s32.totalorder %s17, 0
    %s20 = sadd.s32 %s19, 1
    %s21 = scalar_select %p18, %s19, %s20
    %p24 = pneg %p18
    %p25 = scmp.eq.s32.totalorder %s9, 1
    %p26 = por %p24, %p25
    %p27 = scmp.ne.s32.totalorder %s19, %s22
    %p28 = scmp.eq.s32.totalorder %s9, 0
    %p29 = por %p27, %p28
    %p30 = scmp.ne.s32.totalorder %s19, %s22
    %p31 = scmp.eq.s32.totalorder %s14, 1
    %p32 = por %p30, %p31
    %p33 = scmp.ne.s32.totalorder %s22, %s23
    %p34 = scmp.eq.s32.totalorder %s14, 0
    %p35 = por %p33, %p34
    %p36 = scmp.ne.s32.totalorder %s22, %s23
    %p37 = scmp.eq.s32.totalorder %s15, 1
    %p38 = por %p36, %p37
    %p40 = scmp.ne.s32.totalorder %s23, %s39
    %p41 = scmp.eq.s32.totalorder %s15, 0
    %p42 = por %p40, %p41
    %s44 = sadd.s32 %s43, 1
    %p47 = scmp.eq.s32.totalorder %s9, 1
    %p48 = scmp.ne.s32.totalorder %s43, %s45
    %p49 = scmp.eq.s32.totalorder %s9, 0
    %p50 = por %p48, %p49
    %p51 = scmp.ne.s32.totalorder %s43, %s45
    %p52 = scmp.eq.s32.totalorder %s14, 1
    %p53 = por %p51, %p52
    %p54 = scmp.ne.s32.totalorder %s45, %s46
    %p55 = scmp.eq.s32.totalorder %s14, 0
    %p56 = por %p54, %p55
    %p57 = scmp.ne.s32.totalorder %s45, %s46
    %p58 = scmp.eq.s32.totalorder %s15, 1
    %p59 = por %p57, %p58
    %p61 = scmp.ne.s32.totalorder %s46, %s60
    %p62 = scmp.eq.s32.totalorder %s15, 0
    %p63 = por %p61, %p62
    %s65 = sadd.s32 %s64, 1
    %p68 = scmp.eq.s32.totalorder %s9, 1
    %p69 = scmp.ne.s32.totalorder %s64, %s66
    %p70 = scmp.eq.s32.totalorder %s9, 0
    %p71 = por %p69, %p70
    %p72 = scmp.ne.s32.totalorder %s64, %s66
    %p73 = scmp.eq.s32.totalorder %s14, 1
    %p74 = por %p72, %p73
    %p75 = scmp.ne.s32.totalorder %s66, %s67
    %p76 = scmp.eq.s32.totalorder %s14, 0
    %p77 = por %p75, %p76
    %p78 = scmp.ne.s32.totalorder %s66, %s67
    %p79 = scmp.eq.s32.totalorder %s15, 1
    %p80 = por %p78, %p79
    %p82 = scmp.ne.s32.totalorder %s67, %s81
    %p83 = scmp.eq.s32.totalorder %s15, 0
    %p84 = por %p82, %p83
    %s85 = ssub.s32 %s9, %s16
    %p86 = scmp.eq.s32.totalorder %s85, 0
    %s88 = sadd.s32 %s87, 1
    %s89 = scalar_select %p86, %s87, %s88
    %p92 = pneg %p86
    %p93 = scmp.eq.s32.totalorder %s9, 1
    %p94 = por %p92, %p93
    %p95 = scmp.ne.s32.totalorder %s87, %s90
    %p96 = scmp.eq.s32.totalorder %s9, 0
    %p97 = por %p95, %p96
    %p98 = scmp.ne.s32.totalorder %s87, %s90
    %p99 = scmp.eq.s32.totalorder %s14, 1
    %p100 = por %p98, %p99
    %p101 = scmp.ne.s32.totalorder %s90, %s91
    %p102 = scmp.eq.s32.totalorder %s14, 0
    %p103 = por %p101, %p102
    %p104 = scmp.ne.s32.totalorder %s90, %s91
    %p105 = scmp.eq.s32.totalorder %s15, 1
    %p106 = por %p104, %p105
    %p108 = scmp.ne.s32.totalorder %s91, %s107
    %p109 = scmp.eq.s32.totalorder %s15, 0
    %p110 = por %p108, %p109
    %p111 = scmp.le.s32.totalorder 1, %s9
    %p112 = scmp.lt.s32.totalorder %s9, 3
    %p113 = pnand %p111, %p112
    %p114 = pneg %p113
    // Predicated region
    $region9: #{agent_attention_forward.5} parent=5 // pred_check
      _
    $region10: #{agent_attention_forward.5} parent=5 // pred_check_branch
      %116 = sbr.rel (%p113) target = $region12
    $region11: #{agent_attention_forward.5} parent=5 // pred_region
      %s117 = ssub.s32 %s9, 1
      // Predicated region
      $region13: #{agent_attention_forward.5} parent=11 // pred_check
        %p118 = pneg %p56
      $region14: #{agent_attention_forward.5} parent=11 // pred_check_branch
        %120 = sbr.rel (%p118) target = $region16
      $region15: #{agent_attention_forward.5} parent=11 // pred_region
        _
      $region16: #{agent_attention_forward.5} parent=11 // pred_fallthru
        _
      // Predicated region
      $region17: #{agent_attention_forward.5} parent=11 // pred_check
        %p121 = pneg %p77
      $region18: #{agent_attention_forward.5} parent=11 // pred_check_branch
        %123 = sbr.rel (%p121) target = $region20
      $region19: #{agent_attention_forward.5} parent=11 // pred_region
        _
      $region20: #{agent_attention_forward.5} parent=11 // pred_fallthru
        _
    $region12: #{agent_attention_forward.5} parent=5 // pred_fallthru
      _
    %p124 = scmp.lt.s32.totalorder %s9, 2
    // Predicated region
    $region21: #{agent_attention_forward.5} parent=5 // pred_check
      %p125 = pneg %p124
    $region22: #{agent_attention_forward.5} parent=5 // pred_check_branch
      %127 = sbr.rel (%p125) target = $region24
    $region23: #{agent_attention_forward.5} parent=5 // pred_region
      // Predicated region
      $region25: #{agent_attention_forward.5} parent=23 // pred_check
        %p128 = pneg %p29
      $region26: #{agent_attention_forward.5} parent=23 // pred_check_branch
        %130 = sbr.rel (%p128) target = $region28
      $region27: #{agent_attention_forward.5} parent=23 // pred_region
        %s131 = smul.u32 16, %s9
        %p132 = scmp.lt.s32.totalorder %s131, 31
        %s133 = scalar_select %p132, %s131, 31
        %s134 = smul.addr %s133, 8
        %s135 = scalar_lea.vmem %s0, %s134
        %s136 = smul.u32 16, %s9
      $region28: #{agent_attention_forward.5} parent=23 // pred_fallthru
        _
    $region24: #{agent_attention_forward.5} parent=5 // pred_fallthru
      _
    %p137 = scmp.le.s32.totalorder 1, %s9
    %p138 = scmp.lt.s32.totalorder %s9, 3
    %p139 = pnand %p137, %p138
    %p140 = pneg %p139
    // Predicated region
    $region29: #{agent_attention_forward.5} parent=5 // pred_check
      _
    $region30: #{agent_attention_forward.5} parent=5 // pred_check_branch
      %142 = sbr.rel (%p139) target = $region32
    $region31: #{agent_attention_forward.5} parent=5 // pred_region
      %s143 = ssub.s32 %s9, 1
      %s144 = smul.u32 16, %s14
      %p145 = scmp.lt.s32.totalorder %s144, 31
      %s146 = scalar_select %p145, %s144, 31
      %s147 = smul.addr %s146, 8
      %s148 = scalar_lea.vmem %s0, %s147
      %p149 = pneg %p35
      %p150 = pneg %p32
      %p151 = pneg %p56
      %p152 = pneg %p53
      %p153 = pneg %p77
      %p154 = pneg %p74
      %p155 = pneg %p103
      %p156 = pneg %p100
      %s157 = smul.u32 16, %s14
      %p158 = scmp.lt.s32.totalorder %s157, 31
      %s159 = scalar_select %p158, %s157, 31
      %s160 = smul.addr %s159, 8
      %s161 = scalar_lea.vmem %s3, %s160
      %s162 = smul.u32 16, %s14
      %p163 = scmp.lt.s32.totalorder %s162, 31
      %s164 = scalar_select %p163, %s162, 31
      %s165 = smul.addr %s164, 8
      %s166 = scalar_lea.vmem %s0, %s165
      %s167 = smul.u32 16, %s14
      %s168 = smul.u32 16, %s14
      %p169 = scmp.lt.s32.totalorder %s168, 31
      %s170 = scalar_select %p169, %s168, 31
      %s171 = smul.addr %s170, 8
      %s172 = scalar_lea.vmem %s3, %s171
      %s173 = smul.u32 16, %s14
      %v174 = vld [vmem:[%s166] sm:$0xff]
      %v175 = vld [vmem:[%s166 + $0x8] sm:$0xff]
      %v176 = vld [vmem:[%s166 + $0x10] sm:$0xff]
      %v177 = vld [vmem:[%s166 + $0x18] sm:$0xff]
      %v178 = vld [vmem:[%s166 + $0x20] sm:$0xff]
      %v179 = vld [vmem:[%s166 + $0x28] sm:$0xff]
      %v180 = vld [vmem:[%s166 + $0x30] sm:$0xff]
      %v181 = vld [vmem:[%s166 + $0x38] sm:$0xff]
      %v182 = vld [vmem:[%s166 + $0x40] sm:$0xff]
      %v183 = vld [vmem:[%s166 + $0x48] sm:$0xff]
      %v184 = vld [vmem:[%s166 + $0x50] sm:$0xff]
      %v185 = vld [vmem:[%s166 + $0x58] sm:$0xff]
      %v186 = vld [vmem:[%s166 + $0x60] sm:$0xff]
      %v187 = vld [vmem:[%s166 + $0x68] sm:$0xff]
      %v188 = vld [vmem:[%s166 + $0x70] sm:$0xff]
      %v189 = vld [vmem:[%s166 + $0x78] sm:$0xff]
      %v190 = vld [vmem:[%s1] sm:$0xff]
      %v191 = vld [vmem:[%s1 + $0x8] sm:$0xff]
      %v192 = vld [vmem:[%s1 + $0x10] sm:$0xff]
      %v193 = vld [vmem:[%s1 + $0x18] sm:$0xff]
      %v194 = vld [vmem:[%s1 + $0x20] sm:$0xff]
      %v195 = vld [vmem:[%s1 + $0x28] sm:$0xff]
      %v196 = vld [vmem:[%s1 + $0x30] sm:$0xff]
      %v197 = vld [vmem:[%s1 + $0x38] sm:$0xff]
      %v198 = vld [vmem:[%s2] sm:$0x1]
      %v200 = vperm.slane %v198, 0
      %vm202 = vcmask 523264
      %v204 = vsel %vm202, %v174, 0
      %v207 = vsel %vm202, %v175, 0
      %v210 = vsel %vm202, %v176, 0
      %v213 = vsel %vm202, %v177, 0
      %v216 = vsel %vm202, %v178, 0
      %v219 = vsel %vm202, %v179, 0
      %v222 = vsel %vm202, %v180, 0
      %v225 = vsel %vm202, %v181, 0
      %v228 = vsel %vm202, %v182, 0
      %v231 = vsel %vm202, %v183, 0
      %v234 = vsel %vm202, %v184, 0
      %v237 = vsel %vm202, %v185, 0
      %v240 = vsel %vm202, %v186, 0
      %v243 = vsel %vm202, %v187, 0
      %v246 = vsel %vm202, %v188, 0
      %v249 = vsel %vm202, %v189, 0
      %251 = vmatpush.msra.mxu0 0.0
      %252 = vmatpush.msra.mxu0 0.0
      %253 = vmatpush.msra.mxu0 0.0
      %254 = vmatpush.msra.mxu0 0.0
      %255 = vmatpush.msra.mxu0 0.0
      %256 = vmatpush.msra.mxu0 0.0
      %257 = vmatpush.msra.mxu0 0.0
      %258 = vmatpush.msra.mxu0 0.0
      %259 = vmatpush.msra.mxu0 %v197
      %260 = vmatpush.msra.mxu0 %v196
      %261 = vmatpush.msra.mxu0 %v195
      %262 = vmatpush.msra.mxu0 %v194
      %263 = vmatpush.msra.mxu0 %v193
      %264 = vmatpush.msra.mxu0 %v192
      %265 = vmatpush.msra.mxu0 %v191
      %266 = vmatpush.msra.mxu0 %v190
      %267 = vmatmul.f32.gmra.mxu0 %v204
      %v268 = vpop.f32.mrf.mxu0
      %v269 = vadd.f32 %v200, %v268
      %270 = vmatmul.f32.gmra.mxu0 %v207
      %v271 = vpop.f32.mrf.mxu0
      %v272 = vadd.f32 %v200, %v271
      %273 = vmatmul.f32.gmra.mxu0 %v210
      %v274 = vpop.f32.mrf.mxu0
      %v275 = vadd.f32 %v200, %v274
      %276 = vmatmul.f32.gmra.mxu0 %v213
      %v277 = vpop.f32.mrf.mxu0
      %v278 = vadd.f32 %v200, %v277
      %279 = vmatmul.f32.gmra.mxu0 %v216
      %v280 = vpop.f32.mrf.mxu0
      %v281 = vadd.f32 %v200, %v280
      %282 = vmatmul.f32.gmra.mxu0 %v219
      %v283 = vpop.f32.mrf.mxu0
      %v284 = vadd.f32 %v200, %v283
      %285 = vmatmul.f32.gmra.mxu0 %v222
      %v286 = vpop.f32.mrf.mxu0
      %v287 = vadd.f32 %v200, %v286
      %288 = vmatmul.f32.gmra.mxu0 %v225
      %v289 = vpop.f32.mrf.mxu0
      %v290 = vadd.f32 %v200, %v289
      %291 = vmatmul.f32.gmra.mxu0 %v228
      %v292 = vpop.f32.mrf.mxu0
      %v293 = vadd.f32 %v200, %v292
      %294 = vmatmul.f32.gmra.mxu0 %v231
      %v295 = vpop.f32.mrf.mxu0
      %v296 = vadd.f32 %v200, %v295
      %297 = vmatmul.f32.gmra.mxu0 %v234
      %v298 = vpop.f32.mrf.mxu0
      %v299 = vadd.f32 %v200, %v298
      %300 = vmatmul.f32.gmra.mxu0 %v237
      %v301 = vpop.f32.mrf.mxu0
      %v302 = vadd.f32 %v200, %v301
      %303 = vmatmul.f32.gmra.mxu0 %v240
      %v304 = vpop.f32.mrf.mxu0
      %v305 = vadd.f32 %v200, %v304
      %306 = vmatmul.f32.gmra.mxu0 %v243
      %v307 = vpop.f32.mrf.mxu0
      %v308 = vadd.f32 %v200, %v307
      %309 = vmatmul.f32.gmra.mxu0 %v246
      %v310 = vpop.f32.mrf.mxu0
      %v311 = vadd.f32 %v200, %v310
      %312 = vmatmul.f32.gmra.mxu0 %v249
      %v313 = vpop.f32.mrf.mxu0
      %v314 = vadd.f32 %v200, %v313
      %315 = vdwg.mxu0
      %316 = vst.msk [vmem:[%s172] sm:$0xff] %vm202, %v269
      %317 = vst.msk [vmem:[%s172 + $0x8] sm:$0xff] %vm202, %v272
      %318 = vst.msk [vmem:[%s172 + $0x10] sm:$0xff] %vm202, %v275
      %319 = vst.msk [vmem:[%s172 + $0x18] sm:$0xff] %vm202, %v278
      %320 = vst.msk [vmem:[%s172 + $0x20] sm:$0xff] %vm202, %v281
      %321 = vst.msk [vmem:[%s172 + $0x28] sm:$0xff] %vm202, %v284
      %322 = vst.msk [vmem:[%s172 + $0x30] sm:$0xff] %vm202, %v287
      %323 = vst.msk [vmem:[%s172 + $0x38] sm:$0xff] %vm202, %v290
      %324 = vst.msk [vmem:[%s172 + $0x40] sm:$0xff] %vm202, %v293
      %325 = vst.msk [vmem:[%s172 + $0x48] sm:$0xff] %vm202, %v296
      %326 = vst.msk [vmem:[%s172 + $0x50] sm:$0xff] %vm202, %v299
      %327 = vst.msk [vmem:[%s172 + $0x58] sm:$0xff] %vm202, %v302
      %328 = vst.msk [vmem:[%s172 + $0x60] sm:$0xff] %vm202, %v305
      %329 = vst.msk [vmem:[%s172 + $0x68] sm:$0xff] %vm202, %v308
      %330 = vst.msk [vmem:[%s172 + $0x70] sm:$0xff] %vm202, %v311
      %331 = vst.msk [vmem:[%s172 + $0x78] sm:$0xff] %vm202, %v314
      %s332 = smul.u32 16, %s14
      %p333 = scmp.lt.s32.totalorder %s332, 31
      %s334 = scalar_select %p333, %s332, 31
      %s335 = smul.addr %s334, 8
      %s336 = scalar_lea.vmem %s3, %s335
      // Predicated region
      $region33: #{agent_attention_forward.5} parent=31 // pred_check
        %p337 = pneg %p100
      $region34: #{agent_attention_forward.5} parent=31 // pred_check_branch
        %339 = sbr.rel (%p337) target = $region36
      $region35: #{agent_attention_forward.5} parent=31 // pred_region
        %s340 = smul.u32 16, %s14
      $region36: #{agent_attention_forward.5} parent=31 // pred_fallthru
        _
    $region32: #{agent_attention_forward.5} parent=5 // pred_fallthru
      _
    %p341 = scmp.le.s32.totalorder 2, %s9
    // Predicated region
    $region37: #{agent_attention_forward.5} parent=5 // pred_check
      %p342 = pneg %p341
    $region38: #{agent_attention_forward.5} parent=5 // pred_check_branch
      %344 = sbr.rel (%p342) target = $region40
    $region39: #{agent_attention_forward.5} parent=5 // pred_region
      %s345 = ssub.s32 %s9, 2
      // Predicated region
      $region41: #{agent_attention_forward.5} parent=39 // pred_check
        %p346 = pneg %p106
      $region42: #{agent_attention_forward.5} parent=39 // pred_check_branch
        %348 = sbr.rel (%p346) target = $region44
      $region43: #{agent_attention_forward.5} parent=39 // pred_region
        %s349 = smul.u32 16, %s15
        %p350 = scmp.lt.s32.totalorder %s349, 31
        %s351 = scalar_select %p350, %s349, 31
        %s352 = smul.addr %s351, 8
        %s353 = scalar_lea.vmem %s3, %s352
      $region44: #{agent_attention_forward.5} parent=39 // pred_fallthru
        _
    $region40: #{agent_attention_forward.5} parent=5 // pred_fallthru
      _
  $region6: #{agent_attention_forward.5} parent=0 // loop_footer
    %s13 = sadd.s32 1, %s9
  $region7: #{agent_attention_forward.5} parent=0 // loop_footer_branch
    %8 = sbr.rel target = $region3
  $region8: #{agent_attention_forward.5} parent=0 // loop_exit
    _

// kernel: agent_attention_forward.4
$region0: #{agent_attention_forward.4}
  #allocation0 [shape = 'u32[]', space=smem, size = 0x4, offset = 0x4, fixed_abs, tag = 'smem constant byte address 0x4 - core index']
  #allocation1 [shape = 'u32[72,128]{1,0:T(1,128)}', space=vmem, size = 0x9000, scoped, tag = 'internal scratch']
  %s0 = inlined_call_operand.vmem [shape: f32[2,128,64], index: 0, kind: input, shape index: {}]
  %s1 = inlined_call_operand.vmem [shape: f32[2,128,64], index: 1, kind: input, shape index: {}]
  %s2 = inlined_call_operand.vmem [shape: f32[2,128,64], index: 2, kind: input, shape index: {}]
  %s3 = inlined_call_operand.vmem [shape: f32[2,4,128,16], index: 3, kind: input, shape index: {}]
  %s4 = inlined_call_operand.vmem [shape: f32[4,128,128], index: 4, kind: input, shape index: {}]
  %s5 = inlined_call_operand.vmem [shape: f32[2,128,64], index: 5, kind: output, shape index: {}]
  %s6 = sld [smem:[#allocation0]]
  $region53: #{agent_attention_forward.4} parent=0
    _
  %s8 = ssub.s32 1, %s6
  %s9 = scalar_select 0, %s8, %s6
  loop: start=0, step=1, limit=4
  $region2: #{agent_attention_forward.4} parent=0 // loop_pre_header
    _
  $region3: #{agent_attention_forward.4} parent=0 // loop_header
    %s11 = sphi 0, %s15
    %p12 = scmp.ge.s32.totalorder %s11, 4
    %s21 = sphi 0, %s23
    %s24 = sphi 0, %s21
    %s25 = sphi 0, %s24
    %s41 = sphi 0, %s25
    %s47 = sphi 0, %s49
    %s50 = sphi 0, %s47
    %s51 = sphi 0, %s50
    %s67 = sphi 0, %s51
    %s73 = sphi 0, %s75
    %s76 = sphi 0, %s73
    %s77 = sphi 0, %s76
    %s93 = sphi 0, %s77
    %s99 = sphi 0, %s101
    %s102 = sphi 0, %s99
    %s103 = sphi 0, %s102
    %s119 = sphi 0, %s103
    %s123 = sphi 0, %s123
    %s125 = sphi 0, %s123
    %s126 = sphi 0, %s125
    %s140 = sphi 0, %s126
    %s146 = sphi 0, %s148
    %s149 = sphi 0, %s146
    %s150 = sphi 0, %s149
    %s166 = sphi 0, %s150
  $region4: #{agent_attention_forward.4} parent=0 // loop_header_branch
    %14 = sbr.rel (%p12) target = $region8
  $region5: #{agent_attention_forward.4} parent=0 // loop_body
    %s16 = ssub.s32 %s11, 1
    %s17 = ssub.s32 %s11, 2
    %s18 = sadd.s32 %s11, 1
    %s19 = ssub.s32 %s11, %s18
    %p20 = scmp.eq.s32.totalorder %s19, 0
    %s22 = sadd.s32 %s21, 1
    %s23 = scalar_select %p20, %s21, %s22
    %p26 = pneg %p20
    %p27 = scmp.eq.s32.totalorder %s11, 1
    %p28 = por %p26, %p27
    %p29 = scmp.ne.s32.totalorder %s21, %s24
    %p30 = scmp.eq.s32.totalorder %s11, 0
    %p31 = por %p29, %p30
    %p32 = scmp.ne.s32.totalorder %s21, %s24
    %p33 = scmp.eq.s32.totalorder %s16, 1
    %p34 = por %p32, %p33
    %p35 = scmp.ne.s32.totalorder %s24, %s25
    %p36 = scmp.eq.s32.totalorder %s16, 0
    %p37 = por %p35, %p36
    %p38 = scmp.ne.s32.totalorder %s24, %s25
    %p39 = scmp.eq.s32.totalorder %s17, 1
    %p40 = por %p38, %p39
    %p42 = scmp.ne.s32.totalorder %s25, %s41
    %p43 = scmp.eq.s32.totalorder %s17, 0
    %p44 = por %p42, %p43
    %s45 = ssub.s32 %s11, %s18
    %p46 = scmp.eq.s32.totalorder %s45, 0
    %s48 = sadd.s32 %s47, 1
    %s49 = scalar_select %p46, %s47, %s48
    %p52 = pneg %p46
    %p53 = scmp.eq.s32.totalorder %s11, 1
    %p54 = por %p52, %p53
    %p55 = scmp.ne.s32.totalorder %s47, %s50
    %p56 = scmp.eq.s32.totalorder %s11, 0
    %p57 = por %p55, %p56
    %p58 = scmp.ne.s32.totalorder %s47, %s50
    %p59 = scmp.eq.s32.totalorder %s16, 1
    %p60 = por %p58, %p59
    %p61 = scmp.ne.s32.totalorder %s50, %s51
    %p62 = scmp.eq.s32.totalorder %s16, 0
    %p63 = por %p61, %p62
    %p64 = scmp.ne.s32.totalorder %s50, %s51
    %p65 = scmp.eq.s32.totalorder %s17, 1
    %p66 = por %p64, %p65
    %p68 = scmp.ne.s32.totalorder %s51, %s67
    %p69 = scmp.eq.s32.totalorder %s17, 0
    %p70 = por %p68, %p69
    %s71 = ssub.s32 %s11, %s18
    %p72 = scmp.eq.s32.totalorder %s71, 0
    %s74 = sadd.s32 %s73, 1
    %s75 = scalar_select %p72, %s73, %s74
    %p78 = pneg %p72
    %p79 = scmp.eq.s32.totalorder %s11, 1
    %p80 = por %p78, %p79
    %p81 = scmp.ne.s32.totalorder %s73, %s76
    %p82 = scmp.eq.s32.totalorder %s11, 0
    %p83 = por %p81, %p82
    %p84 = scmp.ne.s32.totalorder %s73, %s76
    %p85 = scmp.eq.s32.totalorder %s16, 1
    %p86 = por %p84, %p85
    %p87 = scmp.ne.s32.totalorder %s76, %s77
    %p88 = scmp.eq.s32.totalorder %s16, 0
    %p89 = por %p87, %p88
    %p90 = scmp.ne.s32.totalorder %s76, %s77
    %p91 = scmp.eq.s32.totalorder %s17, 1
    %p92 = por %p90, %p91
    %p94 = scmp.ne.s32.totalorder %s77, %s93
    %p95 = scmp.eq.s32.totalorder %s17, 0
    %p96 = por %p94, %p95
    %s97 = ssub.s32 %s11, %s18
    %p98 = scmp.eq.s32.totalorder %s97, 0
    %s100 = sadd.s32 %s99, 1
    %s101 = scalar_select %p98, %s99, %s100
    %p104 = pneg %p98
    %p105 = scmp.eq.s32.totalorder %s11, 1
    %p106 = por %p104, %p105
    %p107 = scmp.ne.s32.totalorder %s99, %s102
    %p108 = scmp.eq.s32.totalorder %s11, 0
    %p109 = por %p107, %p108
    %p110 = scmp.ne.s32.totalorder %s99, %s102
    %p111 = scmp.eq.s32.totalorder %s16, 1
    %p112 = por %p110, %p111
    %p113 = scmp.ne.s32.totalorder %s102, %s103
    %p114 = scmp.eq.s32.totalorder %s16, 0
    %p115 = por %p113, %p114
    %p116 = scmp.ne.s32.totalorder %s102, %s103
    %p117 = scmp.eq.s32.totalorder %s17, 1
    %p118 = por %p116, %p117
    %p120 = scmp.ne.s32.totalorder %s103, %s119
    %p121 = scmp.eq.s32.totalorder %s17, 0
    %p122 = por %p120, %p121
    %s124 = sadd.s32 %s123, 1
    %p127 = scmp.eq.s32.totalorder %s11, 1
    %p128 = scmp.ne.s32.totalorder %s123, %s125
    %p129 = scmp.eq.s32.totalorder %s11, 0
    %p130 = por %p128, %p129
    %p131 = scmp.ne.s32.totalorder %s123, %s125
    %p132 = scmp.eq.s32.totalorder %s16, 1
    %p133 = por %p131, %p132
    %p134 = scmp.ne.s32.totalorder %s125, %s126
    %p135 = scmp.eq.s32.totalorder %s16, 0
    %p136 = por %p134, %p135
    %p137 = scmp.ne.s32.totalorder %s125, %s126
    %p138 = scmp.eq.s32.totalorder %s17, 1
    %p139 = por %p137, %p138
    %p141 = scmp.ne.s32.totalorder %s126, %s140
    %p142 = scmp.eq.s32.totalorder %s17, 0
    %p143 = por %p141, %p142
    %s144 = ssub.s32 %s11, %s18
    %p145 = scmp.eq.s32.totalorder %s144, 0
    %s147 = sadd.s32 %s146, 1
    %s148 = scalar_select %p145, %s146, %s147
    %p151 = pneg %p145
    %p152 = scmp.eq.s32.totalorder %s11, 1
    %p153 = por %p151, %p152
    %p154 = scmp.ne.s32.totalorder %s146, %s149
    %p155 = scmp.eq.s32.totalorder %s11, 0
    %p156 = por %p154, %p155
    %p157 = scmp.ne.s32.totalorder %s146, %s149
    %p158 = scmp.eq.s32.totalorder %s16, 1
    %p159 = por %p157, %p158
    %p160 = scmp.ne.s32.totalorder %s149, %s150
    %p161 = scmp.eq.s32.totalorder %s16, 0
    %p162 = por %p160, %p161
    %p163 = scmp.ne.s32.totalorder %s149, %s150
    %p164 = scmp.eq.s32.totalorder %s17, 1
    %p165 = por %p163, %p164
    %p167 = scmp.ne.s32.totalorder %s150, %s166
    %p168 = scmp.eq.s32.totalorder %s17, 0
    %p169 = por %p167, %p168
    %p170 = scmp.le.s32.totalorder 1, %s11
    %p171 = scmp.lt.s32.totalorder %s11, 3
    %p172 = pnand %p170, %p171
    %p173 = pneg %p172
    // Predicated region
    $region9: #{agent_attention_forward.4} parent=5 // pred_check
      _
    $region10: #{agent_attention_forward.4} parent=5 // pred_check_branch
      %175 = sbr.rel (%p172) target = $region12
    $region11: #{agent_attention_forward.4} parent=5 // pred_region
      %s176 = ssub.s32 %s11, 1
      // Predicated region
      $region13: #{agent_attention_forward.4} parent=11 // pred_check
        %p177 = pneg %p136
      $region14: #{agent_attention_forward.4} parent=11 // pred_check_branch
        %179 = sbr.rel (%p177) target = $region16
      $region15: #{agent_attention_forward.4} parent=11 // pred_region
        _
      $region16: #{agent_attention_forward.4} parent=11 // pred_fallthru
        _
    $region12: #{agent_attention_forward.4} parent=5 // pred_fallthru
      _
    %p180 = scmp.lt.s32.totalorder %s11, 2
    // Predicated region
    $region17: #{agent_attention_forward.4} parent=5 // pred_check
      %p181 = pneg %p180
    $region18: #{agent_attention_forward.4} parent=5 // pred_check_branch
      %183 = sbr.rel (%p181) target = $region20
    $region19: #{agent_attention_forward.4} parent=5 // pred_region
      // Predicated region
      $region21: #{agent_attention_forward.4} parent=19 // pred_check
        %p184 = pneg %p31
      $region22: #{agent_attention_forward.4} parent=19 // pred_check_branch
        %186 = sbr.rel (%p184) target = $region24
      $region23: #{agent_attention_forward.4} parent=19 // pred_region
        %p187 = scmp.lt.s32.totalorder %s11, 1
        %s188 = scalar_select %p187, %s11, 1
        %s189 = smul.addr %s188, 16
        %s190 = smul.addr %s189, 8
        %s191 = scalar_lea.vmem %s0, %s190
      $region24: #{agent_attention_forward.4} parent=19 // pred_fallthru
        _
      // Predicated region
      $region25: #{agent_attention_forward.4} parent=19 // pred_check
        %p192 = pneg %p57
      $region26: #{agent_attention_forward.4} parent=19 // pred_check_branch
        %194 = sbr.rel (%p192) target = $region28
      $region27: #{agent_attention_forward.4} parent=19 // pred_region
        %p195 = scmp.lt.s32.totalorder %s11, 1
        %s196 = scalar_select %p195, %s11, 1
        %s197 = smul.addr %s196, 16
        %s198 = smul.addr %s197, 8
        %s199 = scalar_lea.vmem %s1, %s198
      $region28: #{agent_attention_forward.4} parent=19 // pred_fallthru
        _
      // Predicated region
      $region29: #{agent_attention_forward.4} parent=19 // pred_check
        %p200 = pneg %p83
      $region30: #{agent_attention_forward.4} parent=19 // pred_check_branch
        %202 = sbr.rel (%p200) target = $region32
      $region31: #{agent_attention_forward.4} parent=19 // pred_region
        %p203 = scmp.lt.s32.totalorder %s11, 1
        %s204 = scalar_select %p203, %s11, 1
        %s205 = smul.addr %s204, 16
        %s206 = smul.addr %s205, 8
        %s207 = scalar_lea.vmem %s2, %s206
      $region32: #{agent_attention_forward.4} parent=19 // pred_fallthru
        _
      // Predicated region
      $region33: #{agent_attention_forward.4} parent=19 // pred_check
        %p208 = pneg %p109
      $region34: #{agent_attention_forward.4} parent=19 // pred_check_branch
        %210 = sbr.rel (%p208) target = $region36
      $region35: #{agent_attention_forward.4} parent=19 // pred_region
        %p211 = scmp.lt.s32.totalorder %s11, 1
        %s212 = scalar_select %p211, %s11, 1
        %s213 = smul.addr %s212, 64
        %s214 = smul.addr %s213, 8
        %s215 = scalar_lea.vmem %s3, %s214
      $region36: #{agent_attention_forward.4} parent=19 // pred_fallthru
        _
    $region20: #{agent_attention_forward.4} parent=5 // pred_fallthru
      _
    %p216 = scmp.le.s32.totalorder 1, %s11
    %p217 = scmp.lt.s32.totalorder %s11, 3
    %p218 = pnand %p216, %p217
    %p219 = pneg %p218
    // Predicated region
    $region37: #{agent_attention_forward.4} parent=5 // pred_check
      _
    $region38: #{agent_attention_forward.4} parent=5 // pred_check_branch
      %221 = sbr.rel (%p218) target = $region40
    $region39: #{agent_attention_forward.4} parent=5 // pred_region
      %s222 = ssub.s32 %s11, 1
      %p223 = scmp.lt.s32.totalorder %s16, 1
      %s224 = scalar_select %p223, %s16, 1
      %s225 = smul.addr %s224, 16
      %s226 = smul.addr %s225, 8
      %s227 = scalar_lea.vmem %s0, %s226
      %p228 = pneg %p37
      %p229 = pneg %p34
      %p230 = scmp.lt.s32.totalorder %s16, 1
      %s231 = scalar_select %p230, %s16, 1
      %s232 = smul.addr %s231, 16
      %s233 = smul.addr %s232, 8
      %s234 = scalar_lea.vmem %s1, %s233
      %p235 = pneg %p63
      %p236 = pneg %p60
      %p237 = scmp.lt.s32.totalorder %s16, 1
      %s238 = scalar_select %p237, %s16, 1
      %s239 = smul.addr %s238, 16
      %s240 = smul.addr %s239, 8
      %s241 = scalar_lea.vmem %s2, %s240
      %p242 = pneg %p89
      %p243 = pneg %p86
      %p244 = scmp.lt.s32.totalorder %s16, 1
      %s245 = scalar_select %p244, %s16, 1
      %s246 = smul.addr %s245, 64
      %s247 = smul.addr %s246, 8
      %s248 = scalar_lea.vmem %s3, %s247
      %p249 = pneg %p115
      %p250 = pneg %p112
      %p251 = pneg %p136
      %p252 = pneg %p133
      %p253 = pneg %p162
      %p254 = pneg %p159
      %p255 = scmp.lt.s32.totalorder %s16, 1
      %s256 = scalar_select %p255, %s16, 1
      %s257 = smul.addr %s256, 16
      %s258 = smul.addr %s257, 8
      %s259 = scalar_lea.vmem %s5, %s258
      %p260 = scmp.lt.s32.totalorder %s16, 1
      %s261 = scalar_select %p260, %s16, 1
      %s262 = smul.addr %s261, 16
      %s263 = smul.addr %s262, 8
      %s264 = scalar_lea.vmem %s0, %s263
      %p265 = scmp.lt.s32.totalorder %s16, 1
      %s266 = scalar_select %p265, %s16, 1
      %s267 = smul.addr %s266, 16
      %s268 = smul.addr %s267, 8
      %s269 = scalar_lea.vmem %s1, %s268
      %p270 = scmp.lt.s32.totalorder %s16, 1
      %s271 = scalar_select %p270, %s16, 1
      %s272 = smul.addr %s271, 16
      %s273 = smul.addr %s272, 8
      %s274 = scalar_lea.vmem %s2, %s273
      %p275 = scmp.lt.s32.totalorder %s16, 1
      %s276 = scalar_select %p275, %s16, 1
      %s277 = smul.addr %s276, 64
      %s278 = smul.addr %s277, 8
      %s279 = scalar_lea.vmem %s3, %s278
      %p280 = scmp.lt.s32.totalorder %s16, 1
      %s281 = scalar_select %p280, %s16, 1
      %s282 = smul.addr %s281, 16
      %s283 = smul.addr %s282, 8
      %s284 = scalar_lea.vmem %s5, %s283
      %v285 = vld [vmem:[%s264] sm:$0xff]
      %v286 = vld [vmem:[%s264 + $0x8] sm:$0xff]
      %v287 = vld [vmem:[%s264 + $0x10] sm:$0xff]
      %v288 = vld [vmem:[%s264 + $0x18] sm:$0xff]
      %v289 = vld [vmem:[%s264 + $0x20] sm:$0xff]
      %v290 = vld [vmem:[%s264 + $0x28] sm:$0xff]
      %v291 = vld [vmem:[%s264 + $0x30] sm:$0xff]
      %v292 = vld [vmem:[%s264 + $0x38] sm:$0xff]
      %v293 = vld [vmem:[%s264 + $0x40] sm:$0xff]
      %v294 = vld [vmem:[%s264 + $0x48] sm:$0xff]
      %v295 = vld [vmem:[%s264 + $0x50] sm:$0xff]
      %v296 = vld [vmem:[%s264 + $0x58] sm:$0xff]
      %v297 = vld [vmem:[%s264 + $0x60] sm:$0xff]
      %v298 = vld [vmem:[%s264 + $0x68] sm:$0xff]
      %v299 = vld [vmem:[%s264 + $0x70] sm:$0xff]
      %v300 = vld [vmem:[%s264 + $0x78] sm:$0xff]
      %v301 = vld [vmem:[%s269] sm:$0xff]
      %v302 = vld [vmem:[%s269 + $0x8] sm:$0xff]
      %v303 = vld [vmem:[%s269 + $0x10] sm:$0xff]
      %v304 = vld [vmem:[%s269 + $0x18] sm:$0xff]
      %v305 = vld [vmem:[%s269 + $0x20] sm:$0xff]
      %v306 = vld [vmem:[%s269 + $0x28] sm:$0xff]
      %v307 = vld [vmem:[%s269 + $0x30] sm:$0xff]
      %v308 = vld [vmem:[%s269 + $0x38] sm:$0xff]
      %v309 = vld [vmem:[%s269 + $0x40] sm:$0xff]
      %v310 = vld [vmem:[%s269 + $0x48] sm:$0xff]
      %v311 = vld [vmem:[%s269 + $0x50] sm:$0xff]
      %v312 = vld [vmem:[%s269 + $0x58] sm:$0xff]
      %v313 = vld [vmem:[%s269 + $0x60] sm:$0xff]
      %v314 = vld [vmem:[%s269 + $0x68] sm:$0xff]
      %v315 = vld [vmem:[%s269 + $0x70] sm:$0xff]
      %v316 = vld [vmem:[%s269 + $0x78] sm:$0xff]
      %v317 = vld [vmem:[%s274] sm:$0xff]
      %v318 = vld [vmem:[%s274 + $0x8] sm:$0xff]
      %v319 = vld [vmem:[%s274 + $0x10] sm:$0xff]
      %v320 = vld [vmem:[%s274 + $0x18] sm:$0xff]
      %v321 = vld [vmem:[%s274 + $0x20] sm:$0xff]
      %v322 = vld [vmem:[%s274 + $0x28] sm:$0xff]
      %v323 = vld [vmem:[%s274 + $0x30] sm:$0xff]
      %v324 = vld [vmem:[%s274 + $0x38] sm:$0xff]
      %v325 = vld [vmem:[%s274 + $0x40] sm:$0xff]
      %v326 = vld [vmem:[%s274 + $0x48] sm:$0xff]
      %v327 = vld [vmem:[%s274 + $0x50] sm:$0xff]
      %v328 = vld [vmem:[%s274 + $0x58] sm:$0xff]
      %v329 = vld [vmem:[%s274 + $0x60] sm:$0xff]
      %v330 = vld [vmem:[%s274 + $0x68] sm:$0xff]
      %v331 = vld [vmem:[%s274 + $0x70] sm:$0xff]
      %v332 = vld [vmem:[%s274 + $0x78] sm:$0xff]
      %v333 = vld [vmem:[%s279] sm:$0xff]
      %v334 = vld [vmem:[%s279 + $0x8] sm:$0xff]
      %v335 = vld [vmem:[%s279 + $0x10] sm:$0xff]
      %v336 = vld [vmem:[%s279 + $0x18] sm:$0xff]
      %v337 = vld [vmem:[%s279 + $0x20] sm:$0xff]
      %v338 = vld [vmem:[%s279 + $0x28] sm:$0xff]
      %v339 = vld [vmem:[%s279 + $0x30] sm:$0xff]
      %v340 = vld [vmem:[%s279 + $0x38] sm:$0xff]
      %v341 = vld [vmem:[%s279 + $0x40] sm:$0xff]
      %v342 = vld [vmem:[%s279 + $0x48] sm:$0xff]
      %v343 = vld [vmem:[%s279 + $0x50] sm:$0xff]
      %v344 = vld [vmem:[%s279 + $0x58] sm:$0xff]
      %v345 = vld [vmem:[%s279 + $0x60] sm:$0xff]
      %v346 = vld [vmem:[%s279 + $0x68] sm:$0xff]
      %v347 = vld [vmem:[%s279 + $0x70] sm:$0xff]
      %v348 = vld [vmem:[%s279 + $0x78] sm:$0xff]
      %v349 = vld [vmem:[%s4] sm:$0xff]
      %v350 = vld [vmem:[%s4 + $0x8] sm:$0xff]
      %v351 = vld [vmem:[%s4 + $0x10] sm:$0xff]
      %v352 = vld [vmem:[%s4 + $0x18] sm:$0xff]
      %v353 = vld [vmem:[%s4 + $0x20] sm:$0xff]
      %v354 = vld [vmem:[%s4 + $0x28] sm:$0xff]
      %v355 = vld [vmem:[%s4 + $0x30] sm:$0xff]
      %v356 = vld [vmem:[%s4 + $0x38] sm:$0xff]
      %v357 = vld [vmem:[%s4 + $0x40] sm:$0xff]
      %v358 = vld [vmem:[%s4 + $0x48] sm:$0xff]
      %v359 = vld [vmem:[%s4 + $0x50] sm:$0xff]
      %v360 = vld [vmem:[%s4 + $0x58] sm:$0xff]
      %v361 = vld [vmem:[%s4 + $0x60] sm:$0xff]
      %v362 = vld [vmem:[%s4 + $0x68] sm:$0xff]
      %v363 = vld [vmem:[%s4 + $0x70] sm:$0xff]
      %v364 = vld [vmem:[%s4 + $0x78] sm:$0xff]
      %vm365 = vcmask 130048
      %v367 = vsel %vm365, %v333, 0
      %v370 = vsel %vm365, %v334, 0
      %v373 = vsel %vm365, %v335, 0
      %v376 = vsel %vm365, %v336, 0
      %v379 = vsel %vm365, %v337, 0
      %v382 = vsel %vm365, %v338, 0
      %v385 = vsel %vm365, %v339, 0
      %v388 = vsel %vm365, %v340, 0
      %v391 = vsel %vm365, %v341, 0
      %v394 = vsel %vm365, %v342, 0
      %v397 = vsel %vm365, %v343, 0
      %v400 = vsel %vm365, %v344, 0
      %v403 = vsel %vm365, %v345, 0
      %v406 = vsel %vm365, %v346, 0
      %v409 = vsel %vm365, %v347, 0
      %v412 = vsel %vm365, %v348, 0
      %v415 = vsel %vm365, %v301, 0
      %v418 = vsel %vm365, %v302, 0
      %v421 = vsel %vm365, %v303, 0
      %v424 = vsel %vm365, %v304, 0
      %v427 = vsel %vm365, %v305, 0
      %v430 = vsel %vm365, %v306, 0
      %v433 = vsel %vm365, %v307, 0
      %v436 = vsel %vm365, %v308, 0
      %v439 = vsel %vm365, %v309, 0
      %v442 = vsel %vm365, %v310, 0
      %v445 = vsel %vm365, %v311, 0
      %v448 = vsel %vm365, %v312, 0
      %v451 = vsel %vm365, %v313, 0
      %v454 = vsel %vm365, %v314, 0
      %v457 = vsel %vm365, %v315, 0
      %v460 = vsel %vm365, %v316, 0
      %462 = vmatpush.xpose.msra.mxu0 %v460
      %463 = vmatpush.xpose.msra.mxu0 %v457
      %464 = vmatpush.xpose.msra.mxu0 %v454
      %465 = vmatpush.xpose.msra.mxu0 %v451
      %466 = vmatpush.xpose.msra.mxu0 %v448
      %467 = vmatpush.xpose.msra.mxu0 %v445
      %468 = vmatpush.xpose.msra.mxu0 %v442
      %469 = vmatpush.xpose.msra.mxu0 %v439
      %470 = vmatpush.xpose.msra.mxu0 %v436
      %471 = vmatpush.xpose.msra.mxu0 %v433
      %472 = vmatpush.xpose.msra.mxu0 %v430
      %473 = vmatpush.xpose.msra.mxu0 %v427
      %474 = vmatpush.xpose.msra.mxu0 %v424
      %475 = vmatpush.xpose.msra.mxu0 %v421
      %476 = vmatpush.xpose.msra.mxu0 %v418
      %477 = vmatpush.xpose.msra.mxu0 %v415
      %478 = vmatmul.f32.gmra.mxu0 %v367
      %v479 = vpop.f32.mrf.mxu0
      %v480 = vadd.f32 %v349, %v479
      %481 = vmatmul.f32.gmra.mxu0 %v370
      %v482 = vpop.f32.mrf.mxu0
      %v483 = vadd.f32 %v350, %v482
      %484 = vmatmul.f32.gmra.mxu0 %v373
      %v485 = vpop.f32.mrf.mxu0
      %v486 = vadd.f32 %v351, %v485
      %487 = vmatmul.f32.gmra.mxu0 %v376
      %v488 = vpop.f32.mrf.mxu0
      %v489 = vadd.f32 %v352, %v488
      %490 = vmatmul.f32.gmra.mxu0 %v379
      %v491 = vpop.f32.mrf.mxu0
      %v492 = vadd.f32 %v353, %v491
      %493 = vmatmul.f32.gmra.mxu0 %v382
      %v494 = vpop.f32.mrf.mxu0
      %v495 = vadd.f32 %v354, %v494
      %496 = vmatmul.f32.gmra.mxu0 %v385
      %v497 = vpop.f32.mrf.mxu0
      %v498 = vadd.f32 %v355, %v497
      %499 = vmatmul.f32.gmra.mxu0 %v388
      %v500 = vpop.f32.mrf.mxu0
      %v501 = vadd.f32 %v356, %v500
      %502 = vmatmul.f32.gmra.mxu0 %v391
      %v503 = vpop.f32.mrf.mxu0
      %v504 = vadd.f32 %v357, %v503
      %505 = vmatmul.f32.gmra.mxu0 %v394
      %v506 = vpop.f32.mrf.mxu0
      %v507 = vadd.f32 %v358, %v506
      %508 = vmatmul.f32.gmra.mxu0 %v397
      %v509 = vpop.f32.mrf.mxu0
      %v510 = vadd.f32 %v359, %v509
      %511 = vmatmul.f32.gmra.mxu0 %v400
      %v512 = vpop.f32.mrf.mxu0
      %v513 = vadd.f32 %v360, %v512
      %514 = vmatmul.f32.gmra.mxu0 %v403
      %v515 = vpop.f32.mrf.mxu0
      %v516 = vadd.f32 %v361, %v515
      %517 = vmatmul.f32.gmra.mxu0 %v406
      %v518 = vpop.f32.mrf.mxu0
      %v519 = vadd.f32 %v362, %v518
      %520 = vmatmul.f32.gmra.mxu0 %v409
      %v521 = vpop.f32.mrf.mxu0
      %v522 = vadd.f32 %v363, %v521
      %523 = vmatmul.f32.gmra.mxu0 %v412
      %v524 = vpop.f32.mrf.mxu0
      %v525 = vadd.f32 %v364, %v524
      %526 = vdwg.mxu0
      %527 = vmax.xlane.f32.xlu0 %v480
      %v528 = vpop.xlane.xlu0 %527
      %529 = vmax.xlane.f32.xlu0 %v483
      %v530 = vpop.xlane.xlu0 %529
      %531 = vmax.xlane.f32.xlu0 %v486
      %v532 = vpop.xlane.xlu0 %531
      %533 = vmax.xlane.f32.xlu0 %v489
      %v534 = vpop.xlane.xlu0 %533
      %535 = vmax.xlane.f32.xlu0 %v492
      %v536 = vpop.xlane.xlu0 %535
      %537 = vmax.xlane.f32.xlu0 %v495
      %v538 = vpop.xlane.xlu0 %537
      %539 = vmax.xlane.f32.xlu0 %v498
      %v540 = vpop.xlane.xlu0 %539
      %541 = vmax.xlane.f32.xlu0 %v501
      %v542 = vpop.xlane.xlu0 %541
      %543 = vmax.xlane.f32.xlu0 %v504
      %v544 = vpop.xlane.xlu0 %543
      %545 = vmax.xlane.f32.xlu0 %v507
      %v546 = vpop.xlane.xlu0 %545
      %547 = vmax.xlane.f32.xlu0 %v510
      %v548 = vpop.xlane.xlu0 %547
      %549 = vmax.xlane.f32.xlu0 %v513
      %v550 = vpop.xlane.xlu0 %549
      %551 = vmax.xlane.f32.xlu0 %v516
      %v552 = vpop.xlane.xlu0 %551
      %553 = vmax.xlane.f32.xlu0 %v519
      %v554 = vpop.xlane.xlu0 %553
      %555 = vmax.xlane.f32.xlu0 %v522
      %v556 = vpop.xlane.xlu0 %555
      %557 = vmax.xlane.f32.xlu0 %v525
      %v558 = vpop.xlane.xlu0 %557
      %v559 = vsub.f32 %v480, %v528
      %v560 = vsub.f32 %v483, %v530
      %v561 = vsub.f32 %v486, %v532
      %v562 = vsub.f32 %v489, %v534
      %v563 = vsub.f32 %v492, %v536
      %v564 = vsub.f32 %v495, %v538
      %v565 = vsub.f32 %v498, %v540
      %v566 = vsub.f32 %v501, %v542
      %v567 = vsub.f32 %v504, %v544
      %v568 = vsub.f32 %v507, %v546
      %v569 = vsub.f32 %v510, %v548
      %v570 = vsub.f32 %v513, %v550
      %v571 = vsub.f32 %v516, %v552
      %v572 = vsub.f32 %v519, %v554
      %v573 = vsub.f32 %v522, %v556
      %v574 = vsub.f32 %v525, %v558
      %v575 = vmul.f32 %v559, 1.442695
      %v576 = vpow.pop %v575
      %v577 = vmul.f32 %v560, 1.442695
      %v578 = vpow.pop %v577
      %v579 = vmul.f32 %v561, 1.442695
      %v580 = vpow.pop %v579
      %v581 = vmul.f32 %v562, 1.442695
      %v582 = vpow.pop %v581
      %v583 = vmul.f32 %v563, 1.442695
      %v584 = vpow.pop %v583
      %v585 = vmul.f32 %v564, 1.442695
      %v586 = vpow.pop %v585
      %v587 = vmul.f32 %v565, 1.442695
      %v588 = vpow.pop %v587
      %v589 = vmul.f32 %v566, 1.442695
      %v590 = vpow.pop %v589
      %v591 = vmul.f32 %v567, 1.442695
      %v592 = vpow.pop %v591
      %v593 = vmul.f32 %v568, 1.442695
      %v594 = vpow.pop %v593
      %v595 = vmul.f32 %v569, 1.442695
      %v596 = vpow.pop %v595
      %v597 = vmul.f32 %v570, 1.442695
      %v598 = vpow.pop %v597
      %v599 = vmul.f32 %v571, 1.442695
      %v600 = vpow.pop %v599
      %v601 = vmul.f32 %v572, 1.442695
      %v602 = vpow.pop %v601
      %v603 = vmul.f32 %v573, 1.442695
      %v604 = vpow.pop %v603
      %v605 = vmul.f32 %v574, 1.442695
      %v606 = vpow.pop %v605
      %607 = vadd.xlane.f32.xlu0 %v576
      %v608 = vpop.xlane.xlu0 %607
      %609 = vadd.xlane.f32.xlu0 %v578
      %v610 = vpop.xlane.xlu0 %609
      %611 = vadd.xlane.f32.xlu0 %v580
      %v612 = vpop.xlane.xlu0 %611
      %613 = vadd.xlane.f32.xlu0 %v582
      %v614 = vpop.xlane.xlu0 %613
      %615 = vadd.xlane.f32.xlu0 %v584
      %v616 = vpop.xlane.xlu0 %615
      %617 = vadd.xlane.f32.xlu0 %v586
      %v618 = vpop.xlane.xlu0 %617
      %619 = vadd.xlane.f32.xlu0 %v588
      %v620 = vpop.xlane.xlu0 %619
      %621 = vadd.xlane.f32.xlu0 %v590
      %v622 = vpop.xlane.xlu0 %621
      %623 = vadd.xlane.f32.xlu0 %v592
      %v624 = vpop.xlane.xlu0 %623
      %625 = vadd.xlane.f32.xlu0 %v594
      %v626 = vpop.xlane.xlu0 %625
      %627 = vadd.xlane.f32.xlu0 %v596
      %v628 = vpop.xlane.xlu0 %627
      %629 = vadd.xlane.f32.xlu0 %v598
      %v630 = vpop.xlane.xlu0 %629
      %631 = vadd.xlane.f32.xlu0 %v600
      %v632 = vpop.xlane.xlu0 %631
      %633 = vadd.xlane.f32.xlu0 %v602
      %v634 = vpop.xlane.xlu0 %633
      %635 = vadd.xlane.f32.xlu0 %v604
      %v636 = vpop.xlane.xlu0 %635
      %637 = vadd.xlane.f32.xlu0 %v606
      %v638 = vpop.xlane.xlu0 %637
      %v639 = vrcp.pop %v608
      %v640 = vrcp.pop %v610
      %v641 = vrcp.pop %v612
      %v642 = vrcp.pop %v614
      %v643 = vrcp.pop %v616
      %v644 = vrcp.pop %v618
      %v645 = vrcp.pop %v620
      %v646 = vrcp.pop %v622
      %v647 = vrcp.pop %v624
      %v648 = vrcp.pop %v626
      %v649 = vrcp.pop %v628
      %v650 = vrcp.pop %v630
      %v651 = vrcp.pop %v632
      %v652 = vrcp.pop %v634
      %v653 = vrcp.pop %v636
      %v654 = vrcp.pop %v638
      %v655 = vmul.f32 %v576, %v639
      %v656 = vmul.f32 %v578, %v640
      %v657 = vmul.f32 %v580, %v641
      %v658 = vmul.f32 %v582, %v642
      %v659 = vmul.f32 %v584, %v643
      %v660 = vmul.f32 %v586, %v644
      %v661 = vmul.f32 %v588, %v645
      %v662 = vmul.f32 %v590, %v646
      %v663 = vmul.f32 %v592, %v647
      %v664 = vmul.f32 %v594, %v648
      %v665 = vmul.f32 %v596, %v649
      %v666 = vmul.f32 %v598, %v650
      %v667 = vmul.f32 %v600, %v651
      %v668 = vmul.f32 %v602, %v652
      %v669 = vmul.f32 %v604, %v653
      %v670 = vmul.f32 %v606, %v654
      %671 = vmatpush.msra.mxu0 %v332
      %672 = vmatpush.msra.mxu0 %v331
      %673 = vmatpush.msra.mxu0 %v330
      %674 = vmatpush.msra.mxu0 %v329
      %675 = vmatpush.msra.mxu0 %v328
      %676 = vmatpush.msra.mxu0 %v327
      %677 = vmatpush.msra.mxu0 %v326
      %678 = vmatpush.msra.mxu0 %v325
      %679 = vmatpush.msra.mxu0 %v324
      %680 = vmatpush.msra.mxu0 %v323
      %681 = vmatpush.msra.mxu0 %v322
      %682 = vmatpush.msra.mxu0 %v321
      %683 = vmatpush.msra.mxu0 %v320
      %684 = vmatpush.msra.mxu0 %v319
      %685 = vmatpush.msra.mxu0 %v318
      %686 = vmatpush.msra.mxu0 %v317
      %687 = vmatmul.f32.gmra.mxu0 %v655
      %v688 = vpop.f32.mrf.mxu0
      %v689 = vadd.f32 0.0, %v688
      %690 = vmatmul.f32.gmra.mxu0 %v656
      %v691 = vpop.f32.mrf.mxu0
      %v692 = vadd.f32 0.0, %v691
      %693 = vmatmul.f32.gmra.mxu0 %v657
      %v694 = vpop.f32.mrf.mxu0
      %v695 = vadd.f32 0.0, %v694
      %696 = vmatmul.f32.gmra.mxu0 %v658
      %v697 = vpop.f32.mrf.mxu0
      %v698 = vadd.f32 0.0, %v697
      %699 = vmatmul.f32.gmra.mxu0 %v659
      %v700 = vpop.f32.mrf.mxu0
      %v701 = vadd.f32 0.0, %v700
      %702 = vmatmul.f32.gmra.mxu0 %v660
      %v703 = vpop.f32.mrf.mxu0
      %v704 = vadd.f32 0.0, %v703
      %705 = vmatmul.f32.gmra.mxu0 %v661
      %v706 = vpop.f32.mrf.mxu0
      %v707 = vadd.f32 0.0, %v706
      %708 = vmatmul.f32.gmra.mxu0 %v662
      %v709 = vpop.f32.mrf.mxu0
      %v710 = vadd.f32 0.0, %v709
      %711 = vmatmul.f32.gmra.mxu0 %v663
      %v712 = vpop.f32.mrf.mxu0
      %v713 = vadd.f32 0.0, %v712
      %714 = vmatmul.f32.gmra.mxu0 %v664
      %v715 = vpop.f32.mrf.mxu0
      %v716 = vadd.f32 0.0, %v715
      %717 = vmatmul.f32.gmra.mxu0 %v665
      %v718 = vpop.f32.mrf.mxu0
      %v719 = vadd.f32 0.0, %v718
      %720 = vmatmul.f32.gmra.mxu0 %v666
      %v721 = vpop.f32.mrf.mxu0
      %v722 = vadd.f32 0.0, %v721
      %723 = vmatmul.f32.gmra.mxu0 %v667
      %v724 = vpop.f32.mrf.mxu0
      %v725 = vadd.f32 0.0, %v724
      %726 = vmatmul.f32.gmra.mxu0 %v668
      %v727 = vpop.f32.mrf.mxu0
      %v728 = vadd.f32 0.0, %v727
      %729 = vmatmul.f32.gmra.mxu0 %v669
      %v730 = vpop.f32.mrf.mxu0
      %v731 = vadd.f32 0.0, %v730
      %732 = vmatmul.f32.gmra.mxu0 %v670
      %v733 = vpop.f32.mrf.mxu0
      %v734 = vadd.f32 0.0, %v733
      %735 = vdwg.mxu0
      %v736 = vmul.f32 %v285, 0.25
      %v737 = vmul.f32 %v286, 0.25
      %v738 = vmul.f32 %v287, 0.25
      %v739 = vmul.f32 %v288, 0.25
      %v740 = vmul.f32 %v289, 0.25
      %v741 = vmul.f32 %v290, 0.25
      %v742 = vmul.f32 %v291, 0.25
      %v743 = vmul.f32 %v292, 0.25
      %v744 = vmul.f32 %v293, 0.25
      %v745 = vmul.f32 %v294, 0.25
      %v746 = vmul.f32 %v295, 0.25
      %v747 = vmul.f32 %v296, 0.25
      %v748 = vmul.f32 %v297, 0.25
      %v749 = vmul.f32 %v298, 0.25
      %v750 = vmul.f32 %v299, 0.25
      %v751 = vmul.f32 %v300, 0.25
      %v753 = vsel %vm365, %v736, 0
      %v756 = vsel %vm365, %v737, 0
      %v759 = vsel %vm365, %v738, 0
      %v762 = vsel %vm365, %v739, 0
      %v765 = vsel %vm365, %v740, 0
      %v768 = vsel %vm365, %v741, 0
      %v771 = vsel %vm365, %v742, 0
      %v774 = vsel %vm365, %v743, 0
      %v777 = vsel %vm365, %v744, 0
      %v780 = vsel %vm365, %v745, 0
      %v783 = vsel %vm365, %v746, 0
      %v786 = vsel %vm365, %v747, 0
      %v789 = vsel %vm365, %v748, 0
      %v792 = vsel %vm365, %v749, 0
      %v795 = vsel %vm365, %v750, 0
      %v798 = vsel %vm365, %v751, 0
      %800 = vmatpush.xpose.msra.mxu0 %v412
      %801 = vmatpush.xpose.msra.mxu0 %v409
      %802 = vmatpush.xpose.msra.mxu0 %v406
      %803 = vmatpush.xpose.msra.mxu0 %v403
      %804 = vmatpush.xpose.msra.mxu0 %v400
      %805 = vmatpush.xpose.msra.mxu0 %v397
      %806 = vmatpush.xpose.msra.mxu0 %v394
      %807 = vmatpush.xpose.msra.mxu0 %v391
      %808 = vmatpush.xpose.msra.mxu0 %v388
      %809 = vmatpush.xpose.msra.mxu0 %v385
      %810 = vmatpush.xpose.msra.mxu0 %v382
      %811 = vmatpush.xpose.msra.mxu0 %v379
      %812 = vmatpush.xpose.msra.mxu0 %v376
      %813 = vmatpush.xpose.msra.mxu0 %v373
      %814 = vmatpush.xpose.msra.mxu0 %v370
      %815 = vmatpush.xpose.msra.mxu0 %v367
      %816 = vmatmul.f32.gmra.mxu0 %v753
      %v817 = vpop.f32.mrf.mxu0
      %v818 = vadd.f32 %v349, %v817
      %819 = vmatmul.f32.gmra.mxu0 %v756
      %v820 = vpop.f32.mrf.mxu0
      %v821 = vadd.f32 %v350, %v820
      %822 = vmatmul.f32.gmra.mxu0 %v759
      %v823 = vpop.f32.mrf.mxu0
      %v824 = vadd.f32 %v351, %v823
      %825 = vmatmul.f32.gmra.mxu0 %v762
      %v826 = vpop.f32.mrf.mxu0
      %v827 = vadd.f32 %v352, %v826
      %828 = vmatmul.f32.gmra.mxu0 %v765
      %v829 = vpop.f32.mrf.mxu0
      %v830 = vadd.f32 %v353, %v829
      %831 = vmatmul.f32.gmra.mxu0 %v768
      %v832 = vpop.f32.mrf.mxu0
      %v833 = vadd.f32 %v354, %v832
      %834 = vmatmul.f32.gmra.mxu0 %v771
      %v835 = vpop.f32.mrf.mxu0
      %v836 = vadd.f32 %v355, %v835
      %837 = vmatmul.f32.gmra.mxu0 %v774
      %v838 = vpop.f32.mrf.mxu0
      %v839 = vadd.f32 %v356, %v838
      %840 = vmatmul.f32.gmra.mxu0 %v777
      %v841 = vpop.f32.mrf.mxu0
      %v842 = vadd.f32 %v357, %v841
      %843 = vmatmul.f32.gmra.mxu0 %v780
      %v844 = vpop.f32.mrf.mxu0
      %v845 = vadd.f32 %v358, %v844
      %846 = vmatmul.f32.gmra.mxu0 %v783
      %v847 = vpop.f32.mrf.mxu0
      %v848 = vadd.f32 %v359, %v847
      %849 = vmatmul.f32.gmra.mxu0 %v786
      %v850 = vpop.f32.mrf.mxu0
      %v851 = vadd.f32 %v360, %v850
      %852 = vmatmul.f32.gmra.mxu0 %v789
      %v853 = vpop.f32.mrf.mxu0
      %v854 = vadd.f32 %v361, %v853
      %855 = vmatmul.f32.gmra.mxu0 %v792
      %v856 = vpop.f32.mrf.mxu0
      %v857 = vadd.f32 %v362, %v856
      %858 = vmatmul.f32.gmra.mxu0 %v795
      %v859 = vpop.f32.mrf.mxu0
      %v860 = vadd.f32 %v363, %v859
      %861 = vmatmul.f32.gmra.mxu0 %v798
      %v862 = vpop.f32.mrf.mxu0
      %v863 = vadd.f32 %v364, %v862
      %864 = vdwg.mxu0
      %865 = vmax.xlane.f32.xlu0 %v818
      %v866 = vpop.xlane.xlu0 %865
      %867 = vmax.xlane.f32.xlu0 %v821
      %v868 = vpop.xlane.xlu0 %867
      %869 = vmax.xlane.f32.xlu0 %v824
      %v870 = vpop.xlane.xlu0 %869
      %871 = vmax.xlane.f32.xlu0 %v827
      %v872 = vpop.xlane.xlu0 %871
      %873 = vmax.xlane.f32.xlu0 %v830
      %v874 = vpop.xlane.xlu0 %873
      %875 = vmax.xlane.f32.xlu0 %v833
      %v876 = vpop.xlane.xlu0 %875
      %877 = vmax.xlane.f32.xlu0 %v836
      %v878 = vpop.xlane.xlu0 %877
      %879 = vmax.xlane.f32.xlu0 %v839
      %v880 = vpop.xlane.xlu0 %879
      %881 = vmax.xlane.f32.xlu0 %v842
      %v882 = vpop.xlane.xlu0 %881
      %883 = vmax.xlane.f32.xlu0 %v845
      %v884 = vpop.xlane.xlu0 %883
      %885 = vmax.xlane.f32.xlu0 %v848
      %v886 = vpop.xlane.xlu0 %885
      %887 = vmax.xlane.f32.xlu0 %v851
      %v888 = vpop.xlane.xlu0 %887
      %889 = vmax.xlane.f32.xlu0 %v854
      %v890 = vpop.xlane.xlu0 %889
      %891 = vmax.xlane.f32.xlu0 %v857
      %v892 = vpop.xlane.xlu0 %891
      %893 = vmax.xlane.f32.xlu0 %v860
      %v894 = vpop.xlane.xlu0 %893
      %895 = vmax.xlane.f32.xlu0 %v863
      %v896 = vpop.xlane.xlu0 %895
      %v897 = vsub.f32 %v818, %v866
      %v898 = vsub.f32 %v821, %v868
      %v899 = vsub.f32 %v824, %v870
      %v900 = vsub.f32 %v827, %v872
      %v901 = vsub.f32 %v830, %v874
      %v902 = vsub.f32 %v833, %v876
      %v903 = vsub.f32 %v836, %v878
      %v904 = vsub.f32 %v839, %v880
      %v905 = vsub.f32 %v842, %v882
      %v906 = vsub.f32 %v845, %v884
      %v907 = vsub.f32 %v848, %v886
      %v908 = vsub.f32 %v851, %v888
      %v909 = vsub.f32 %v854, %v890
      %v910 = vsub.f32 %v857, %v892
      %v911 = vsub.f32 %v860, %v894
      %v912 = vsub.f32 %v863, %v896
      %v913 = vmul.f32 %v897, 1.442695
      %v914 = vpow.pop %v913
      %v915 = vmul.f32 %v898, 1.442695
      %v916 = vpow.pop %v915
      %v917 = vmul.f32 %v899, 1.442695
      %v918 = vpow.pop %v917
      %v919 = vmul.f32 %v900, 1.442695
      %v920 = vpow.pop %v919
      %v921 = vmul.f32 %v901, 1.442695
      %v922 = vpow.pop %v921
      %v923 = vmul.f32 %v902, 1.442695
      %v924 = vpow.pop %v923
      %v925 = vmul.f32 %v903, 1.442695
      %v926 = vpow.pop %v925
      %v927 = vmul.f32 %v904, 1.442695
      %v928 = vpow.pop %v927
      %v929 = vmul.f32 %v905, 1.442695
      %v930 = vpow.pop %v929
      %v931 = vmul.f32 %v906, 1.442695
      %v932 = vpow.pop %v931
      %v933 = vmul.f32 %v907, 1.442695
      %v934 = vpow.pop %v933
      %v935 = vmul.f32 %v908, 1.442695
      %v936 = vpow.pop %v935
      %v937 = vmul.f32 %v909, 1.442695
      %v938 = vpow.pop %v937
      %v939 = vmul.f32 %v910, 1.442695
      %v940 = vpow.pop %v939
      %v941 = vmul.f32 %v911, 1.442695
      %v942 = vpow.pop %v941
      %v943 = vmul.f32 %v912, 1.442695
      %v944 = vpow.pop %v943
      %945 = vadd.xlane.f32.xlu0 %v914
      %v946 = vpop.xlane.xlu0 %945
      %947 = vadd.xlane.f32.xlu0 %v916
      %v948 = vpop.xlane.xlu0 %947
      %949 = vadd.xlane.f32.xlu0 %v918
      %v950 = vpop.xlane.xlu0 %949
      %951 = vadd.xlane.f32.xlu0 %v920
      %v952 = vpop.xlane.xlu0 %951
      %953 = vadd.xlane.f32.xlu0 %v922
      %v954 = vpop.xlane.xlu0 %953
      %955 = vadd.xlane.f32.xlu0 %v924
      %v956 = vpop.xlane.xlu0 %955
      %957 = vadd.xlane.f32.xlu0 %v926
      %v958 = vpop.xlane.xlu0 %957
      %959 = vadd.xlane.f32.xlu0 %v928
      %v960 = vpop.xlane.xlu0 %959
      %961 = vadd.xlane.f32.xlu0 %v930
      %v962 = vpop.xlane.xlu0 %961
      %963 = vadd.xlane.f32.xlu0 %v932
      %v964 = vpop.xlane.xlu0 %963
      %965 = vadd.xlane.f32.xlu0 %v934
      %v966 = vpop.xlane.xlu0 %965
      %967 = vadd.xlane.f32.xlu0 %v936
      %v968 = vpop.xlane.xlu0 %967
      %969 = vadd.xlane.f32.xlu0 %v938
      %v970 = vpop.xlane.xlu0 %969
      %971 = vadd.xlane.f32.xlu0 %v940
      %v972 = vpop.xlane.xlu0 %971
      %973 = vadd.xlane.f32.xlu0 %v942
      %v974 = vpop.xlane.xlu0 %973
      %975 = vadd.xlane.f32.xlu0 %v944
      %v976 = vpop.xlane.xlu0 %975
      %v977 = vrcp.pop %v946
      %v978 = vrcp.pop %v948
      %v979 = vrcp.pop %v950
      %v980 = vrcp.pop %v952
      %v981 = vrcp.pop %v954
      %v982 = vrcp.pop %v956
      %v983 = vrcp.pop %v958
      %v984 = vrcp.pop %v960
      %v985 = vrcp.pop %v962
      %v986 = vrcp.pop %v964
      %v987 = vrcp.pop %v966
      %v988 = vrcp.pop %v968
      %v989 = vrcp.pop %v970
      %v990 = vrcp.pop %v972
      %v991 = vrcp.pop %v974
      %v992 = vrcp.pop %v976
      %v993 = vmul.f32 %v914, %v977
      %v994 = vmul.f32 %v916, %v978
      %v995 = vmul.f32 %v918, %v979
      %v996 = vmul.f32 %v920, %v980
      %v997 = vmul.f32 %v922, %v981
      %v998 = vmul.f32 %v924, %v982
      %v999 = vmul.f32 %v926, %v983
      %v1000 = vmul.f32 %v928, %v984
      %v1001 = vmul.f32 %v930, %v985
      %v1002 = vmul.f32 %v932, %v986
      %v1003 = vmul.f32 %v934, %v987
      %v1004 = vmul.f32 %v936, %v988
      %v1005 = vmul.f32 %v938, %v989
      %v1006 = vmul.f32 %v940, %v990
      %v1007 = vmul.f32 %v942, %v991
      %v1008 = vmul.f32 %v944, %v992
      %1009 = vmatpush.msra.mxu0 %v734
      %1010 = vmatpush.msra.mxu0 %v731
      %1011 = vmatpush.msra.mxu0 %v728
      %1012 = vmatpush.msra.mxu0 %v725
      %1013 = vmatpush.msra.mxu0 %v722
      %1014 = vmatpush.msra.mxu0 %v719
      %1015 = vmatpush.msra.mxu0 %v716
      %1016 = vmatpush.msra.mxu0 %v713
      %1017 = vmatpush.msra.mxu0 %v710
      %1018 = vmatpush.msra.mxu0 %v707
      %1019 = vmatpush.msra.mxu0 %v704
      %1020 = vmatpush.msra.mxu0 %v701
      %1021 = vmatpush.msra.mxu0 %v698
      %1022 = vmatpush.msra.mxu0 %v695
      %1023 = vmatpush.msra.mxu0 %v692
      %1024 = vmatpush.msra.mxu0 %v689
      %1025 = vmatmul.f32.gmra.mxu0 %v993
      %v1026 = vpop.f32.mrf.mxu0
      %v1027 = vadd.f32 0.0, %v1026
      %1028 = vmatmul.f32.gmra.mxu0 %v994
      %v1029 = vpop.f32.mrf.mxu0
      %v1030 = vadd.f32 0.0, %v1029
      %1031 = vmatmul.f32.gmra.mxu0 %v995
      %v1032 = vpop.f32.mrf.mxu0
      %v1033 = vadd.f32 0.0, %v1032
      %1034 = vmatmul.f32.gmra.mxu0 %v996
      %v1035 = vpop.f32.mrf.mxu0
      %v1036 = vadd.f32 0.0, %v1035
      %1037 = vmatmul.f32.gmra.mxu0 %v997
      %v1038 = vpop.f32.mrf.mxu0
      %v1039 = vadd.f32 0.0, %v1038
      %1040 = vmatmul.f32.gmra.mxu0 %v998
      %v1041 = vpop.f32.mrf.mxu0
      %v1042 = vadd.f32 0.0, %v1041
      %1043 = vmatmul.f32.gmra.mxu0 %v999
      %v1044 = vpop.f32.mrf.mxu0
      %v1045 = vadd.f32 0.0, %v1044
      %1046 = vmatmul.f32.gmra.mxu0 %v1000
      %v1047 = vpop.f32.mrf.mxu0
      %v1048 = vadd.f32 0.0, %v1047
      %1049 = vmatmul.f32.gmra.mxu0 %v1001
      %v1050 = vpop.f32.mrf.mxu0
      %v1051 = vadd.f32 0.0, %v1050
      %1052 = vmatmul.f32.gmra.mxu0 %v1002
      %v1053 = vpop.f32.mrf.mxu0
      %v1054 = vadd.f32 0.0, %v1053
      %1055 = vmatmul.f32.gmra.mxu0 %v1003
      %v1056 = vpop.f32.mrf.mxu0
      %v1057 = vadd.f32 0.0, %v1056
      %1058 = vmatmul.f32.gmra.mxu0 %v1004
      %v1059 = vpop.f32.mrf.mxu0
      %v1060 = vadd.f32 0.0, %v1059
      %1061 = vmatmul.f32.gmra.mxu0 %v1005
      %v1062 = vpop.f32.mrf.mxu0
      %v1063 = vadd.f32 0.0, %v1062
      %1064 = vmatmul.f32.gmra.mxu0 %v1006
      %v1065 = vpop.f32.mrf.mxu0
      %v1066 = vadd.f32 0.0, %v1065
      %1067 = vmatmul.f32.gmra.mxu0 %v1007
      %v1068 = vpop.f32.mrf.mxu0
      %v1069 = vadd.f32 0.0, %v1068
      %1070 = vmatmul.f32.gmra.mxu0 %v1008
      %v1071 = vpop.f32.mrf.mxu0
      %v1072 = vadd.f32 0.0, %v1071
      %1073 = vdwg.mxu0
      %s1074 = scalar_lea.vmem %s279, 128
      %v1075 = vld [vmem:[%s1074] sm:$0xff]
      %v1076 = vld [vmem:[%s1074 + $0x8] sm:$0xff]
      %v1077 = vld [vmem:[%s1074 + $0x10] sm:$0xff]
      %v1078 = vld [vmem:[%s1074 + $0x18] sm:$0xff]
      %v1079 = vld [vmem:[%s1074 + $0x20] sm:$0xff]
      %v1080 = vld [vmem:[%s1074 + $0x28] sm:$0xff]
      %v1081 = vld [vmem:[%s1074 + $0x30] sm:$0xff]
      %v1082 = vld [vmem:[%s1074 + $0x38] sm:$0xff]
      %v1083 = vld [vmem:[%s1074 + $0x40] sm:$0xff]
      %v1084 = vld [vmem:[%s1074 + $0x48] sm:$0xff]
      %v1085 = vld [vmem:[%s1074 + $0x50] sm:$0xff]
      %v1086 = vld [vmem:[%s1074 + $0x58] sm:$0xff]
      %v1087 = vld [vmem:[%s1074 + $0x60] sm:$0xff]
      %v1088 = vld [vmem:[%s1074 + $0x68] sm:$0xff]
      %v1089 = vld [vmem:[%s1074 + $0x70] sm:$0xff]
      %v1090 = vld [vmem:[%s1074 + $0x78] sm:$0xff]
      %s1091 = scalar_lea.vmem %s4, 128
      %v1092 = vld [vmem:[%s1091] sm:$0xff]
      %v1093 = vld [vmem:[%s1091 + $0x8] sm:$0xff]
      %v1094 = vld [vmem:[%s1091 + $0x10] sm:$0xff]
      %v1095 = vld [vmem:[%s1091 + $0x18] sm:$0xff]
      %v1096 = vld [vmem:[%s1091 + $0x20] sm:$0xff]
      %v1097 = vld [vmem:[%s1091 + $0x28] sm:$0xff]
      %v1098 = vld [vmem:[%s1091 + $0x30] sm:$0xff]
      %v1099 = vld [vmem:[%s1091 + $0x38] sm:$0xff]
      %v1100 = vld [vmem:[%s1091 + $0x40] sm:$0xff]
      %v1101 = vld [vmem:[%s1091 + $0x48] sm:$0xff]
      %v1102 = vld [vmem:[%s1091 + $0x50] sm:$0xff]
      %v1103 = vld [vmem:[%s1091 + $0x58] sm:$0xff]
      %v1104 = vld [vmem:[%s1091 + $0x60] sm:$0xff]
      %v1105 = vld [vmem:[%s1091 + $0x68] sm:$0xff]
      %v1106 = vld [vmem:[%s1091 + $0x70] sm:$0xff]
      %v1107 = vld [vmem:[%s1091 + $0x78] sm:$0xff]
      %1108 = vrot.lane.b32.xlu0 %v301, 112
      %v1109 = vpop.permute.xlu0 %1108
      %1110 = vrot.lane.b32.xlu0 %v302, 112
      %v1111 = vpop.permute.xlu0 %1110
      %1112 = vrot.lane.b32.xlu0 %v303, 112
      %v1113 = vpop.permute.xlu0 %1112
      %1114 = vrot.lane.b32.xlu0 %v304, 112
      %v1115 = vpop.permute.xlu0 %1114
      %1116 = vrot.lane.b32.xlu0 %v305, 112
      %v1117 = vpop.permute.xlu0 %1116
      %1118 = vrot.lane.b32.xlu0 %v306, 112
      %v1119 = vpop.permute.xlu0 %1118
      %1120 = vrot.lane.b32.xlu0 %v307, 112
      %v1121 = vpop.permute.xlu0 %1120
      %1122 = vrot.lane.b32.xlu0 %v308, 112
      %v1123 = vpop.permute.xlu0 %1122
      %1124 = vrot.lane.b32.xlu0 %v309, 112
      %v1125 = vpop.permute.xlu0 %1124
      %1126 = vrot.lane.b32.xlu0 %v310, 112
      %v1127 = vpop.permute.xlu0 %1126
      %1128 = vrot.lane.b32.xlu0 %v311, 112
      %v1129 = vpop.permute.xlu0 %1128
      %1130 = vrot.lane.b32.xlu0 %v312, 112
      %v1131 = vpop.permute.xlu0 %1130
      %1132 = vrot.lane.b32.xlu0 %v313, 112
      %v1133 = vpop.permute.xlu0 %1132
      %1134 = vrot.lane.b32.xlu0 %v314, 112
      %v1135 = vpop.permute.xlu0 %1134
      %1136 = vrot.lane.b32.xlu0 %v315, 112
      %v1137 = vpop.permute.xlu0 %1136
      %1138 = vrot.lane.b32.xlu0 %v316, 112
      %v1139 = vpop.permute.xlu0 %1138
      %v1141 = vsel %vm365, %v1075, 0
      %v1144 = vsel %vm365, %v1076, 0
      %v1147 = vsel %vm365, %v1077, 0
      %v1150 = vsel %vm365, %v1078, 0
      %v1153 = vsel %vm365, %v1079, 0
      %v1156 = vsel %vm365, %v1080, 0
      %v1159 = vsel %vm365, %v1081, 0
      %v1162 = vsel %vm365, %v1082, 0
      %v1165 = vsel %vm365, %v1083, 0
      %v1168 = vsel %vm365, %v1084, 0
      %v1171 = vsel %vm365, %v1085, 0
      %v1174 = vsel %vm365, %v1086, 0
      %v1177 = vsel %vm365, %v1087, 0
      %v1180 = vsel %vm365, %v1088, 0
      %v1183 = vsel %vm365, %v1089, 0
      %v1186 = vsel %vm365, %v1090, 0
      %v1188 = vsel %vm365, %v1109, 0
      %v1190 = vsel %vm365, %v1111, 0
      %v1192 = vsel %vm365, %v1113, 0
      %v1194 = vsel %vm365, %v1115, 0
      %v1196 = vsel %vm365, %v1117, 0
      %v1198 = vsel %vm365, %v1119, 0
      %v1200 = vsel %vm365, %v1121, 0
      %v1202 = vsel %vm365, %v1123, 0
      %v1204 = vsel %vm365, %v1125, 0
      %v1206 = vsel %vm365, %v1127, 0
      %v1208 = vsel %vm365, %v1129, 0
      %v1210 = vsel %vm365, %v1131, 0
      %v1212 = vsel %vm365, %v1133, 0
      %v1214 = vsel %vm365, %v1135, 0
      %v1216 = vsel %vm365, %v1137, 0
      %v1218 = vsel %vm365, %v1139, 0
      %1220 = vmatpush.xpose.msra.mxu0 %v1218
      %1221 = vmatpush.xpose.msra.mxu0 %v1216
      %1222 = vmatpush.xpose.msra.mxu0 %v1214
      %1223 = vmatpush.xpose.msra.mxu0 %v1212
      %1224 = vmatpush.xpose.msra.mxu0 %v1210
      %1225 = vmatpush.xpose.msra.mxu0 %v1208
      %1226 = vmatpush.xpose.msra.mxu0 %v1206
      %1227 = vmatpush.xpose.msra.mxu0 %v1204
      %1228 = vmatpush.xpose.msra.mxu0 %v1202
      %1229 = vmatpush.xpose.msra.mxu0 %v1200
      %1230 = vmatpush.xpose.msra.mxu0 %v1198
      %1231 = vmatpush.xpose.msra.mxu0 %v1196
      %1232 = vmatpush.xpose.msra.mxu0 %v1194
      %1233 = vmatpush.xpose.msra.mxu0 %v1192
      %1234 = vmatpush.xpose.msra.mxu0 %v1190
      %1235 = vmatpush.xpose.msra.mxu0 %v1188
      %1236 = vmatmul.f32.gmra.mxu0 %v1141
      %v1237 = vpop.f32.mrf.mxu0
      %v1238 = vadd.f32 %v1092, %v1237
      %1239 = vmatmul.f32.gmra.mxu0 %v1144
      %v1240 = vpop.f32.mrf.mxu0
      %v1241 = vadd.f32 %v1093, %v1240
      %1242 = vmatmul.f32.gmra.mxu0 %v1147
      %v1243 = vpop.f32.mrf.mxu0
      %v1244 = vadd.f32 %v1094, %v1243
      %1245 = vmatmul.f32.gmra.mxu0 %v1150
      %v1246 = vpop.f32.mrf.mxu0
      %v1247 = vadd.f32 %v1095, %v1246
      %1248 = vmatmul.f32.gmra.mxu0 %v1153
      %v1249 = vpop.f32.mrf.mxu0
      %v1250 = vadd.f32 %v1096, %v1249
      %1251 = vmatmul.f32.gmra.mxu0 %v1156
      %v1252 = vpop.f32.mrf.mxu0
      %v1253 = vadd.f32 %v1097, %v1252
      %1254 = vmatmul.f32.gmra.mxu0 %v1159
      %v1255 = vpop.f32.mrf.mxu0
      %v1256 = vadd.f32 %v1098, %v1255
      %1257 = vmatmul.f32.gmra.mxu0 %v1162
      %v1258 = vpop.f32.mrf.mxu0
      %v1259 = vadd.f32 %v1099, %v1258
      %1260 = vmatmul.f32.gmra.mxu0 %v1165
      %v1261 = vpop.f32.mrf.mxu0
      %v1262 = vadd.f32 %v1100, %v1261
      %1263 = vmatmul.f32.gmra.mxu0 %v1168
      %v1264 = vpop.f32.mrf.mxu0
      %v1265 = vadd.f32 %v1101, %v1264
      %1266 = vmatmul.f32.gmra.mxu0 %v1171
      %v1267 = vpop.f32.mrf.mxu0
      %v1268 = vadd.f32 %v1102, %v1267
      %1269 = vmatmul.f32.gmra.mxu0 %v1174
      %v1270 = vpop.f32.mrf.mxu0
      %v1271 = vadd.f32 %v1103, %v1270
      %1272 = vmatmul.f32.gmra.mxu0 %v1177
      %v1273 = vpop.f32.mrf.mxu0
      %v1274 = vadd.f32 %v1104, %v1273
      %1275 = vmatmul.f32.gmra.mxu0 %v1180
      %v1276 = vpop.f32.mrf.mxu0
      %v1277 = vadd.f32 %v1105, %v1276
      %1278 = vmatmul.f32.gmra.mxu0 %v1183
      %v1279 = vpop.f32.mrf.mxu0
      %v1280 = vadd.f32 %v1106, %v1279
      %1281 = vmatmul.f32.gmra.mxu0 %v1186
      %v1282 = vpop.f32.mrf.mxu0
      %v1283 = vadd.f32 %v1107, %v1282
      %1284 = vdwg.mxu0
      %1285 = vmax.xlane.f32.xlu0 %v1238
      %v1286 = vpop.xlane.xlu0 %1285
      %1287 = vmax.xlane.f32.xlu0 %v1241
      %v1288 = vpop.xlane.xlu0 %1287
      %1289 = vmax.xlane.f32.xlu0 %v1244
      %v1290 = vpop.xlane.xlu0 %1289
      %1291 = vmax.xlane.f32.xlu0 %v1247
      %v1292 = vpop.xlane.xlu0 %1291
      %1293 = vmax.xlane.f32.xlu0 %v1250
      %v1294 = vpop.xlane.xlu0 %1293
      %1295 = vmax.xlane.f32.xlu0 %v1253
      %v1296 = vpop.xlane.xlu0 %1295
      %1297 = vmax.xlane.f32.xlu0 %v1256
      %v1298 = vpop.xlane.xlu0 %1297
      %1299 = vmax.xlane.f32.xlu0 %v1259
      %v1300 = vpop.xlane.xlu0 %1299
      %1301 = vmax.xlane.f32.xlu0 %v1262
      %v1302 = vpop.xlane.xlu0 %1301
      %1303 = vmax.xlane.f32.xlu0 %v1265
      %v1304 = vpop.xlane.xlu0 %1303
      %1305 = vmax.xlane.f32.xlu0 %v1268
      %v1306 = vpop.xlane.xlu0 %1305
      %1307 = vmax.xlane.f32.xlu0 %v1271
      %v1308 = vpop.xlane.xlu0 %1307
      %1309 = vmax.xlane.f32.xlu0 %v1274
      %v1310 = vpop.xlane.xlu0 %1309
      %1311 = vmax.xlane.f32.xlu0 %v1277
      %v1312 = vpop.xlane.xlu0 %1311
      %1313 = vmax.xlane.f32.xlu0 %v1280
      %v1314 = vpop.xlane.xlu0 %1313
      %1315 = vmax.xlane.f32.xlu0 %v1283
      %v1316 = vpop.xlane.xlu0 %1315
      %v1317 = vsub.f32 %v1238, %v1286
      %v1318 = vsub.f32 %v1241, %v1288
      %v1319 = vsub.f32 %v1244, %v1290
      %v1320 = vsub.f32 %v1247, %v1292
      %v1321 = vsub.f32 %v1250, %v1294
      %v1322 = vsub.f32 %v1253, %v1296
      %v1323 = vsub.f32 %v1256, %v1298
      %v1324 = vsub.f32 %v1259, %v1300
      %v1325 = vsub.f32 %v1262, %v1302
      %v1326 = vsub.f32 %v1265, %v1304
      %v1327 = vsub.f32 %v1268, %v1306
      %v1328 = vsub.f32 %v1271, %v1308
      %v1329 = vsub.f32 %v1274, %v1310
      %v1330 = vsub.f32 %v1277, %v1312
      %v1331 = vsub.f32 %v1280, %v1314
      %v1332 = vsub.f32 %v1283, %v1316
      %v1333 = vmul.f32 %v1317, 1.442695
      %v1334 = vpow.pop %v1333
      %v1335 = vmul.f32 %v1318, 1.442695
      %v1336 = vpow.pop %v1335
      %v1337 = vmul.f32 %v1319, 1.442695
      %v1338 = vpow.pop %v1337
      %v1339 = vmul.f32 %v1320, 1.442695
      %v1340 = vpow.pop %v1339
      %v1341 = vmul.f32 %v1321, 1.442695
      %v1342 = vpow.pop %v1341
      %v1343 = vmul.f32 %v1322, 1.442695
      %v1344 = vpow.pop %v1343
      %v1345 = vmul.f32 %v1323, 1.442695
      %v1346 = vpow.pop %v1345
      %v1347 = vmul.f32 %v1324, 1.442695
      %v1348 = vpow.pop %v1347
      %v1349 = vmul.f32 %v1325, 1.442695
      %v1350 = vpow.pop %v1349
      %v1351 = vmul.f32 %v1326, 1.442695
      %v1352 = vpow.pop %v1351
      %v1353 = vmul.f32 %v1327, 1.442695
      %v1354 = vpow.pop %v1353
      %v1355 = vmul.f32 %v1328, 1.442695
      %v1356 = vpow.pop %v1355
      %v1357 = vmul.f32 %v1329, 1.442695
      %v1358 = vpow.pop %v1357
      %v1359 = vmul.f32 %v1330, 1.442695
      %v1360 = vpow.pop %v1359
      %v1361 = vmul.f32 %v1331, 1.442695
      %v1362 = vpow.pop %v1361
      %v1363 = vmul.f32 %v1332, 1.442695
      %v1364 = vpow.pop %v1363
      %1365 = vadd.xlane.f32.xlu0 %v1334
      %v1366 = vpop.xlane.xlu0 %1365
      %1367 = vadd.xlane.f32.xlu0 %v1336
      %v1368 = vpop.xlane.xlu0 %1367
      %1369 = vadd.xlane.f32.xlu0 %v1338
      %v1370 = vpop.xlane.xlu0 %1369
      %1371 = vadd.xlane.f32.xlu0 %v1340
      %v1372 = vpop.xlane.xlu0 %1371
      %1373 = vadd.xlane.f32.xlu0 %v1342
      %v1374 = vpop.xlane.xlu0 %1373
      %1375 = vadd.xlane.f32.xlu0 %v1344
      %v1376 = vpop.xlane.xlu0 %1375
      %1377 = vadd.xlane.f32.xlu0 %v1346
      %v1378 = vpop.xlane.xlu0 %1377
      %1379 = vadd.xlane.f32.xlu0 %v1348
      %v1380 = vpop.xlane.xlu0 %1379
      %1381 = vadd.xlane.f32.xlu0 %v1350
      %v1382 = vpop.xlane.xlu0 %1381
      %1383 = vadd.xlane.f32.xlu0 %v1352
      %v1384 = vpop.xlane.xlu0 %1383
      %1385 = vadd.xlane.f32.xlu0 %v1354
      %v1386 = vpop.xlane.xlu0 %1385
      %1387 = vadd.xlane.f32.xlu0 %v1356
      %v1388 = vpop.xlane.xlu0 %1387
      %1389 = vadd.xlane.f32.xlu0 %v1358
      %v1390 = vpop.xlane.xlu0 %1389
      %1391 = vadd.xlane.f32.xlu0 %v1360
      %v1392 = vpop.xlane.xlu0 %1391
      %1393 = vadd.xlane.f32.xlu0 %v1362
      %v1394 = vpop.xlane.xlu0 %1393
      %1395 = vadd.xlane.f32.xlu0 %v1364
      %v1396 = vpop.xlane.xlu0 %1395
      %v1397 = vrcp.pop %v1366
      %v1398 = vrcp.pop %v1368
      %v1399 = vrcp.pop %v1370
      %v1400 = vrcp.pop %v1372
      %v1401 = vrcp.pop %v1374
      %v1402 = vrcp.pop %v1376
      %v1403 = vrcp.pop %v1378
      %v1404 = vrcp.pop %v1380
      %v1405 = vrcp.pop %v1382
      %v1406 = vrcp.pop %v1384
      %v1407 = vrcp.pop %v1386
      %v1408 = vrcp.pop %v1388
      %v1409 = vrcp.pop %v1390
      %v1410 = vrcp.pop %v1392
      %v1411 = vrcp.pop %v1394
      %v1412 = vrcp.pop %v1396
      %v1413 = vmul.f32 %v1334, %v1397
      %v1414 = vmul.f32 %v1336, %v1398
      %v1415 = vmul.f32 %v1338, %v1399
      %v1416 = vmul.f32 %v1340, %v1400
      %v1417 = vmul.f32 %v1342, %v1401
      %v1418 = vmul.f32 %v1344, %v1402
      %v1419 = vmul.f32 %v1346, %v1403
      %v1420 = vmul.f32 %v1348, %v1404
      %v1421 = vmul.f32 %v1350, %v1405
      %v1422 = vmul.f32 %v1352, %v1406
      %v1423 = vmul.f32 %v1354, %v1407
      %v1424 = vmul.f32 %v1356, %v1408
      %v1425 = vmul.f32 %v1358, %v1409
      %v1426 = vmul.f32 %v1360, %v1410
      %v1427 = vmul.f32 %v1362, %v1411
      %v1428 = vmul.f32 %v1364, %v1412
      %1445 = vrot.lane.b32.xlu0 %v317, 112
      %v1446 = vpop.permute.xlu0 %1445
      %1447 = vrot.lane.b32.xlu0 %v318, 112
      %v1448 = vpop.permute.xlu0 %1447
      %1449 = vrot.lane.b32.xlu0 %v319, 112
      %v1450 = vpop.permute.xlu0 %1449
      %1451 = vrot.lane.b32.xlu0 %v320, 112
      %v1452 = vpop.permute.xlu0 %1451
      %1453 = vrot.lane.b32.xlu0 %v321, 112
      %v1454 = vpop.permute.xlu0 %1453
      %1455 = vrot.lane.b32.xlu0 %v322, 112
      %v1456 = vpop.permute.xlu0 %1455
      %1457 = vrot.lane.b32.xlu0 %v323, 112
      %v1458 = vpop.permute.xlu0 %1457
      %1459 = vrot.lane.b32.xlu0 %v324, 112
      %v1460 = vpop.permute.xlu0 %1459
      %1461 = vrot.lane.b32.xlu0 %v325, 112
      %v1462 = vpop.permute.xlu0 %1461
      %1463 = vrot.lane.b32.xlu0 %v326, 112
      %v1464 = vpop.permute.xlu0 %1463
      %1465 = vrot.lane.b32.xlu0 %v327, 112
      %v1466 = vpop.permute.xlu0 %1465
      %1467 = vrot.lane.b32.xlu0 %v328, 112
      %v1468 = vpop.permute.xlu0 %1467
      %1469 = vrot.lane.b32.xlu0 %v329, 112
      %v1470 = vpop.permute.xlu0 %1469
      %1471 = vrot.lane.b32.xlu0 %v330, 112
      %v1472 = vpop.permute.xlu0 %1471
      %1473 = vrot.lane.b32.xlu0 %v331, 112
      %v1474 = vpop.permute.xlu0 %1473
      %1475 = vrot.lane.b32.xlu0 %v332, 112
      %v1476 = vpop.permute.xlu0 %1475
      %1493 = vmatpush.msra.mxu0 %v1476
      %1494 = vmatpush.msra.mxu0 %v1474
      %1495 = vmatpush.msra.mxu0 %v1472
      %1496 = vmatpush.msra.mxu0 %v1470
      %1497 = vmatpush.msra.mxu0 %v1468
      %1498 = vmatpush.msra.mxu0 %v1466
      %1499 = vmatpush.msra.mxu0 %v1464
      %1500 = vmatpush.msra.mxu0 %v1462
      %1501 = vmatpush.msra.mxu0 %v1460
      %1502 = vmatpush.msra.mxu0 %v1458
      %1503 = vmatpush.msra.mxu0 %v1456
      %1504 = vmatpush.msra.mxu0 %v1454
      %1505 = vmatpush.msra.mxu0 %v1452
      %1506 = vmatpush.msra.mxu0 %v1450
      %1507 = vmatpush.msra.mxu0 %v1448
      %1508 = vmatpush.msra.mxu0 %v1446
      %1509 = vmatmul.f32.gmra.mxu0 %v1413
      %v1510 = vpop.f32.mrf.mxu0
      %v1511 = vadd.f32 0.0, %v1510
      %1512 = vmatmul.f32.gmra.mxu0 %v1414
      %v1513 = vpop.f32.mrf.mxu0
      %v1514 = vadd.f32 0.0, %v1513
      %1515 = vmatmul.f32.gmra.mxu0 %v1415
      %v1516 = vpop.f32.mrf.mxu0
      %v1517 = vadd.f32 0.0, %v1516
      %1518 = vmatmul.f32.gmra.mxu0 %v1416
      %v1519 = vpop.f32.mrf.mxu0
      %v1520 = vadd.f32 0.0, %v1519
      %1521 = vmatmul.f32.gmra.mxu0 %v1417
      %v1522 = vpop.f32.mrf.mxu0
      %v1523 = vadd.f32 0.0, %v1522
      %1524 = vmatmul.f32.gmra.mxu0 %v1418
      %v1525 = vpop.f32.mrf.mxu0
      %v1526 = vadd.f32 0.0, %v1525
      %1527 = vmatmul.f32.gmra.mxu0 %v1419
      %v1528 = vpop.f32.mrf.mxu0
      %v1529 = vadd.f32 0.0, %v1528
      %1530 = vmatmul.f32.gmra.mxu0 %v1420
      %v1531 = vpop.f32.mrf.mxu0
      %v1532 = vadd.f32 0.0, %v1531
      %1533 = vmatmul.f32.gmra.mxu0 %v1421
      %v1534 = vpop.f32.mrf.mxu0
      %v1535 = vadd.f32 0.0, %v1534
      %1536 = vmatmul.f32.gmra.mxu0 %v1422
      %v1537 = vpop.f32.mrf.mxu0
      %v1538 = vadd.f32 0.0, %v1537
      %1539 = vmatmul.f32.gmra.mxu0 %v1423
      %v1540 = vpop.f32.mrf.mxu0
      %v1541 = vadd.f32 0.0, %v1540
      %1542 = vmatmul.f32.gmra.mxu0 %v1424
      %v1543 = vpop.f32.mrf.mxu0
      %v1544 = vadd.f32 0.0, %v1543
      %1545 = vmatmul.f32.gmra.mxu0 %v1425
      %v1546 = vpop.f32.mrf.mxu0
      %v1547 = vadd.f32 0.0, %v1546
      %1548 = vmatmul.f32.gmra.mxu0 %v1426
      %v1549 = vpop.f32.mrf.mxu0
      %v1550 = vadd.f32 0.0, %v1549
      %1551 = vmatmul.f32.gmra.mxu0 %v1427
      %v1552 = vpop.f32.mrf.mxu0
      %v1553 = vadd.f32 0.0, %v1552
      %1554 = vmatmul.f32.gmra.mxu0 %v1428
      %v1555 = vpop.f32.mrf.mxu0
      %v1556 = vadd.f32 0.0, %v1555
      %1557 = vdwg.mxu0
      %1558 = vrot.lane.b32.xlu0 %v736, 112
      %v1559 = vpop.permute.xlu0 %1558
      %1560 = vrot.lane.b32.xlu0 %v737, 112
      %v1561 = vpop.permute.xlu0 %1560
      %1562 = vrot.lane.b32.xlu0 %v738, 112
      %v1563 = vpop.permute.xlu0 %1562
      %1564 = vrot.lane.b32.xlu0 %v739, 112
      %v1565 = vpop.permute.xlu0 %1564
      %1566 = vrot.lane.b32.xlu0 %v740, 112
      %v1567 = vpop.permute.xlu0 %1566
      %1568 = vrot.lane.b32.xlu0 %v741, 112
      %v1569 = vpop.permute.xlu0 %1568
      %1570 = vrot.lane.b32.xlu0 %v742, 112
      %v1571 = vpop.permute.xlu0 %1570
      %1572 = vrot.lane.b32.xlu0 %v743, 112
      %v1573 = vpop.permute.xlu0 %1572
      %1574 = vrot.lane.b32.xlu0 %v744, 112
      %v1575 = vpop.permute.xlu0 %1574
      %1576 = vrot.lane.b32.xlu0 %v745, 112
      %v1577 = vpop.permute.xlu0 %1576
      %1578 = vrot.lane.b32.xlu0 %v746, 112
      %v1579 = vpop.permute.xlu0 %1578
      %1580 = vrot.lane.b32.xlu0 %v747, 112
      %v1581 = vpop.permute.xlu0 %1580
      %1582 = vrot.lane.b32.xlu0 %v748, 112
      %v1583 = vpop.permute.xlu0 %1582
      %1584 = vrot.lane.b32.xlu0 %v749, 112
      %v1585 = vpop.permute.xlu0 %1584
      %1586 = vrot.lane.b32.xlu0 %v750, 112
      %v1587 = vpop.permute.xlu0 %1586
      %1588 = vrot.lane.b32.xlu0 %v751, 112
      %v1589 = vpop.permute.xlu0 %1588
      %v1590 = vsel %vm365, %v1559, 0
      %v1592 = vsel %vm365, %v1561, 0
      %v1594 = vsel %vm365, %v1563, 0
      %v1596 = vsel %vm365, %v1565, 0
      %v1598 = vsel %vm365, %v1567, 0
      %v1600 = vsel %vm365, %v1569, 0
      %v1602 = vsel %vm365, %v1571, 0
      %v1604 = vsel %vm365, %v1573, 0
      %v1606 = vsel %vm365, %v1575, 0
      %v1608 = vsel %vm365, %v1577, 0
      %v1610 = vsel %vm365, %v1579, 0
      %v1612 = vsel %vm365, %v1581, 0
      %v1614 = vsel %vm365, %v1583, 0
      %v1616 = vsel %vm365, %v1585, 0
      %v1618 = vsel %vm365, %v1587, 0
      %v1620 = vsel %vm365, %v1589, 0
      %1622 = vmatpush.xpose.msra.mxu0 %v1186
      %1623 = vmatpush.xpose.msra.mxu0 %v1183
      %1624 = vmatpush.xpose.msra.mxu0 %v1180
      %1625 = vmatpush.xpose.msra.mxu0 %v1177
      %1626 = vmatpush.xpose.msra.mxu0 %v1174
      %1627 = vmatpush.xpose.msra.mxu0 %v1171
      %1628 = vmatpush.xpose.msra.mxu0 %v1168
      %1629 = vmatpush.xpose.msra.mxu0 %v1165
      %1630 = vmatpush.xpose.msra.mxu0 %v1162
      %1631 = vmatpush.xpose.msra.mxu0 %v1159
      %1632 = vmatpush.xpose.msra.mxu0 %v1156
      %1633 = vmatpush.xpose.msra.mxu0 %v1153
      %1634 = vmatpush.xpose.msra.mxu0 %v1150
      %1635 = vmatpush.xpose.msra.mxu0 %v1147
      %1636 = vmatpush.xpose.msra.mxu0 %v1144
      %1637 = vmatpush.xpose.msra.mxu0 %v1141
      %1638 = vmatmul.f32.gmra.mxu0 %v1590
      %v1639 = vpop.f32.mrf.mxu0
      %v1640 = vadd.f32 %v1092, %v1639
      %1641 = vmatmul.f32.gmra.mxu0 %v1592
      %v1642 = vpop.f32.mrf.mxu0
      %v1643 = vadd.f32 %v1093, %v1642
      %1644 = vmatmul.f32.gmra.mxu0 %v1594
      %v1645 = vpop.f32.mrf.mxu0
      %v1646 = vadd.f32 %v1094, %v1645
      %1647 = vmatmul.f32.gmra.mxu0 %v1596
      %v1648 = vpop.f32.mrf.mxu0
      %v1649 = vadd.f32 %v1095, %v1648
      %1650 = vmatmul.f32.gmra.mxu0 %v1598
      %v1651 = vpop.f32.mrf.mxu0
      %v1652 = vadd.f32 %v1096, %v1651
      %1653 = vmatmul.f32.gmra.mxu0 %v1600
      %v1654 = vpop.f32.mrf.mxu0
      %v1655 = vadd.f32 %v1097, %v1654
      %1656 = vmatmul.f32.gmra.mxu0 %v1602
      %v1657 = vpop.f32.mrf.mxu0
      %v1658 = vadd.f32 %v1098, %v1657
      %1659 = vmatmul.f32.gmra.mxu0 %v1604
      %v1660 = vpop.f32.mrf.mxu0
      %v1661 = vadd.f32 %v1099, %v1660
      %1662 = vmatmul.f32.gmra.mxu0 %v1606
      %v1663 = vpop.f32.mrf.mxu0
      %v1664 = vadd.f32 %v1100, %v1663
      %1665 = vmatmul.f32.gmra.mxu0 %v1608
      %v1666 = vpop.f32.mrf.mxu0
      %v1667 = vadd.f32 %v1101, %v1666
      %1668 = vmatmul.f32.gmra.mxu0 %v1610
      %v1669 = vpop.f32.mrf.mxu0
      %v1670 = vadd.f32 %v1102, %v1669
      %1671 = vmatmul.f32.gmra.mxu0 %v1612
      %v1672 = vpop.f32.mrf.mxu0
      %v1673 = vadd.f32 %v1103, %v1672
      %1674 = vmatmul.f32.gmra.mxu0 %v1614
      %v1675 = vpop.f32.mrf.mxu0
      %v1676 = vadd.f32 %v1104, %v1675
      %1677 = vmatmul.f32.gmra.mxu0 %v1616
      %v1678 = vpop.f32.mrf.mxu0
      %v1679 = vadd.f32 %v1105, %v1678
      %1680 = vmatmul.f32.gmra.mxu0 %v1618
      %v1681 = vpop.f32.mrf.mxu0
      %v1682 = vadd.f32 %v1106, %v1681
      %1683 = vmatmul.f32.gmra.mxu0 %v1620
      %v1684 = vpop.f32.mrf.mxu0
      %v1685 = vadd.f32 %v1107, %v1684
      %1686 = vdwg.mxu0
      %1687 = vmax.xlane.f32.xlu0 %v1640
      %v1688 = vpop.xlane.xlu0 %1687
      %1689 = vmax.xlane.f32.xlu0 %v1643
      %v1690 = vpop.xlane.xlu0 %1689
      %1691 = vmax.xlane.f32.xlu0 %v1646
      %v1692 = vpop.xlane.xlu0 %1691
      %1693 = vmax.xlane.f32.xlu0 %v1649
      %v1694 = vpop.xlane.xlu0 %1693
      %1695 = vmax.xlane.f32.xlu0 %v1652
      %v1696 = vpop.xlane.xlu0 %1695
      %1697 = vmax.xlane.f32.xlu0 %v1655
      %v1698 = vpop.xlane.xlu0 %1697
      %1699 = vmax.xlane.f32.xlu0 %v1658
      %v1700 = vpop.xlane.xlu0 %1699
      %1701 = vmax.xlane.f32.xlu0 %v1661
      %v1702 = vpop.xlane.xlu0 %1701
      %1703 = vmax.xlane.f32.xlu0 %v1664
      %v1704 = vpop.xlane.xlu0 %1703
      %1705 = vmax.xlane.f32.xlu0 %v1667
      %v1706 = vpop.xlane.xlu0 %1705
      %1707 = vmax.xlane.f32.xlu0 %v1670
      %v1708 = vpop.xlane.xlu0 %1707
      %1709 = vmax.xlane.f32.xlu0 %v1673
      %v1710 = vpop.xlane.xlu0 %1709
      %1711 = vmax.xlane.f32.xlu0 %v1676
      %v1712 = vpop.xlane.xlu0 %1711
      %1713 = vmax.xlane.f32.xlu0 %v1679
      %v1714 = vpop.xlane.xlu0 %1713
      %1715 = vmax.xlane.f32.xlu0 %v1682
      %v1716 = vpop.xlane.xlu0 %1715
      %1717 = vmax.xlane.f32.xlu0 %v1685
      %v1718 = vpop.xlane.xlu0 %1717
      %v1719 = vsub.f32 %v1640, %v1688
      %v1720 = vsub.f32 %v1643, %v1690
      %v1721 = vsub.f32 %v1646, %v1692
      %v1722 = vsub.f32 %v1649, %v1694
      %v1723 = vsub.f32 %v1652, %v1696
      %v1724 = vsub.f32 %v1655, %v1698
      %v1725 = vsub.f32 %v1658, %v1700
      %v1726 = vsub.f32 %v1661, %v1702
      %v1727 = vsub.f32 %v1664, %v1704
      %v1728 = vsub.f32 %v1667, %v1706
      %v1729 = vsub.f32 %v1670, %v1708
      %v1730 = vsub.f32 %v1673, %v1710
      %v1731 = vsub.f32 %v1676, %v1712
      %v1732 = vsub.f32 %v1679, %v1714
      %v1733 = vsub.f32 %v1682, %v1716
      %v1734 = vsub.f32 %v1685, %v1718
      %v1735 = vmul.f32 %v1719, 1.442695
      %v1736 = vpow.pop %v1735
      %v1737 = vmul.f32 %v1720, 1.442695
      %v1738 = vpow.pop %v1737
      %v1739 = vmul.f32 %v1721, 1.442695
      %v1740 = vpow.pop %v1739
      %v1741 = vmul.f32 %v1722, 1.442695
      %v1742 = vpow.pop %v1741
      %v1743 = vmul.f32 %v1723, 1.442695
      %v1744 = vpow.pop %v1743
      %v1745 = vmul.f32 %v1724, 1.442695
      %v1746 = vpow.pop %v1745
      %v1747 = vmul.f32 %v1725, 1.442695
      %v1748 = vpow.pop %v1747
      %v1749 = vmul.f32 %v1726, 1.442695
      %v1750 = vpow.pop %v1749
      %v1751 = vmul.f32 %v1727, 1.442695
      %v1752 = vpow.pop %v1751
      %v1753 = vmul.f32 %v1728, 1.442695
      %v1754 = vpow.pop %v1753
      %v1755 = vmul.f32 %v1729, 1.442695
      %v1756 = vpow.pop %v1755
      %v1757 = vmul.f32 %v1730, 1.442695
      %v1758 = vpow.pop %v1757
      %v1759 = vmul.f32 %v1731, 1.442695
      %v1760 = vpow.pop %v1759
      %v1761 = vmul.f32 %v1732, 1.442695
      %v1762 = vpow.pop %v1761
      %v1763 = vmul.f32 %v1733, 1.442695
      %v1764 = vpow.pop %v1763
      %v1765 = vmul.f32 %v1734, 1.442695
      %v1766 = vpow.pop %v1765
      %1767 = vadd.xlane.f32.xlu0 %v1736
      %v1768 = vpop.xlane.xlu0 %1767
      %1769 = vadd.xlane.f32.xlu0 %v1738
      %v1770 = vpop.xlane.xlu0 %1769
      %1771 = vadd.xlane.f32.xlu0 %v1740
      %v1772 = vpop.xlane.xlu0 %1771
      %1773 = vadd.xlane.f32.xlu0 %v1742
      %v1774 = vpop.xlane.xlu0 %1773
      %1775 = vadd.xlane.f32.xlu0 %v1744
      %v1776 = vpop.xlane.xlu0 %1775
      %1777 = vadd.xlane.f32.xlu0 %v1746
      %v1778 = vpop.xlane.xlu0 %1777
      %1779 = vadd.xlane.f32.xlu0 %v1748
      %v1780 = vpop.xlane.xlu0 %1779
      %1781 = vadd.xlane.f32.xlu0 %v1750
      %v1782 = vpop.xlane.xlu0 %1781
      %1783 = vadd.xlane.f32.xlu0 %v1752
      %v1784 = vpop.xlane.xlu0 %1783
      %1785 = vadd.xlane.f32.xlu0 %v1754
      %v1786 = vpop.xlane.xlu0 %1785
      %1787 = vadd.xlane.f32.xlu0 %v1756
      %v1788 = vpop.xlane.xlu0 %1787
      %1789 = vadd.xlane.f32.xlu0 %v1758
      %v1790 = vpop.xlane.xlu0 %1789
      %1791 = vadd.xlane.f32.xlu0 %v1760
      %v1792 = vpop.xlane.xlu0 %1791
      %1793 = vadd.xlane.f32.xlu0 %v1762
      %v1794 = vpop.xlane.xlu0 %1793
      %1795 = vadd.xlane.f32.xlu0 %v1764
      %v1796 = vpop.xlane.xlu0 %1795
      %1797 = vadd.xlane.f32.xlu0 %v1766
      %v1798 = vpop.xlane.xlu0 %1797
      %v1799 = vrcp.pop %v1768
      %v1800 = vrcp.pop %v1770
      %v1801 = vrcp.pop %v1772
      %v1802 = vrcp.pop %v1774
      %v1803 = vrcp.pop %v1776
      %v1804 = vrcp.pop %v1778
      %v1805 = vrcp.pop %v1780
      %v1806 = vrcp.pop %v1782
      %v1807 = vrcp.pop %v1784
      %v1808 = vrcp.pop %v1786
      %v1809 = vrcp.pop %v1788
      %v1810 = vrcp.pop %v1790
      %v1811 = vrcp.pop %v1792
      %v1812 = vrcp.pop %v1794
      %v1813 = vrcp.pop %v1796
      %v1814 = vrcp.pop %v1798
      %v1815 = vmul.f32 %v1736, %v1799
      %v1816 = vmul.f32 %v1738, %v1800
      %v1817 = vmul.f32 %v1740, %v1801
      %v1818 = vmul.f32 %v1742, %v1802
      %v1819 = vmul.f32 %v1744, %v1803
      %v1820 = vmul.f32 %v1746, %v1804
      %v1821 = vmul.f32 %v1748, %v1805
      %v1822 = vmul.f32 %v1750, %v1806
      %v1823 = vmul.f32 %v1752, %v1807
      %v1824 = vmul.f32 %v1754, %v1808
      %v1825 = vmul.f32 %v1756, %v1809
      %v1826 = vmul.f32 %v1758, %v1810
      %v1827 = vmul.f32 %v1760, %v1811
      %v1828 = vmul.f32 %v1762, %v1812
      %v1829 = vmul.f32 %v1764, %v1813
      %v1830 = vmul.f32 %v1766, %v1814
      %1831 = vmatpush.msra.mxu0 %v1556
      %1832 = vmatpush.msra.mxu0 %v1553
      %1833 = vmatpush.msra.mxu0 %v1550
      %1834 = vmatpush.msra.mxu0 %v1547
      %1835 = vmatpush.msra.mxu0 %v1544
      %1836 = vmatpush.msra.mxu0 %v1541
      %1837 = vmatpush.msra.mxu0 %v1538
      %1838 = vmatpush.msra.mxu0 %v1535
      %1839 = vmatpush.msra.mxu0 %v1532
      %1840 = vmatpush.msra.mxu0 %v1529
      %1841 = vmatpush.msra.mxu0 %v1526
      %1842 = vmatpush.msra.mxu0 %v1523
      %1843 = vmatpush.msra.mxu0 %v1520
      %1844 = vmatpush.msra.mxu0 %v1517
      %1845 = vmatpush.msra.mxu0 %v1514
      %1846 = vmatpush.msra.mxu0 %v1511
      %1847 = vmatmul.f32.gmra.mxu0 %v1815
      %v1848 = vpop.f32.mrf.mxu0
      %v1849 = vadd.f32 0.0, %v1848
      %1850 = vmatmul.f32.gmra.mxu0 %v1816
      %v1851 = vpop.f32.mrf.mxu0
      %v1852 = vadd.f32 0.0, %v1851
      %1853 = vmatmul.f32.gmra.mxu0 %v1817
      %v1854 = vpop.f32.mrf.mxu0
      %v1855 = vadd.f32 0.0, %v1854
      %1856 = vmatmul.f32.gmra.mxu0 %v1818
      %v1857 = vpop.f32.mrf.mxu0
      %v1858 = vadd.f32 0.0, %v1857
      %1859 = vmatmul.f32.gmra.mxu0 %v1819
      %v1860 = vpop.f32.mrf.mxu0
      %v1861 = vadd.f32 0.0, %v1860
      %1862 = vmatmul.f32.gmra.mxu0 %v1820
      %v1863 = vpop.f32.mrf.mxu0
      %v1864 = vadd.f32 0.0, %v1863
      %1865 = vmatmul.f32.gmra.mxu0 %v1821
      %v1866 = vpop.f32.mrf.mxu0
      %v1867 = vadd.f32 0.0, %v1866
      %1868 = vmatmul.f32.gmra.mxu0 %v1822
      %v1869 = vpop.f32.mrf.mxu0
      %v1870 = vadd.f32 0.0, %v1869
      %1871 = vmatmul.f32.gmra.mxu0 %v1823
      %v1872 = vpop.f32.mrf.mxu0
      %v1873 = vadd.f32 0.0, %v1872
      %1874 = vmatmul.f32.gmra.mxu0 %v1824
      %v1875 = vpop.f32.mrf.mxu0
      %v1876 = vadd.f32 0.0, %v1875
      %1877 = vmatmul.f32.gmra.mxu0 %v1825
      %v1878 = vpop.f32.mrf.mxu0
      %v1879 = vadd.f32 0.0, %v1878
      %1880 = vmatmul.f32.gmra.mxu0 %v1826
      %v1881 = vpop.f32.mrf.mxu0
      %v1882 = vadd.f32 0.0, %v1881
      %1883 = vmatmul.f32.gmra.mxu0 %v1827
      %v1884 = vpop.f32.mrf.mxu0
      %v1885 = vadd.f32 0.0, %v1884
      %1886 = vmatmul.f32.gmra.mxu0 %v1828
      %v1887 = vpop.f32.mrf.mxu0
      %v1888 = vadd.f32 0.0, %v1887
      %1889 = vmatmul.f32.gmra.mxu0 %v1829
      %v1890 = vpop.f32.mrf.mxu0
      %v1891 = vadd.f32 0.0, %v1890
      %1892 = vmatmul.f32.gmra.mxu0 %v1830
      %v1893 = vpop.f32.mrf.mxu0
      %v1894 = vadd.f32 0.0, %v1893
      %1895 = vdwg.mxu0
      %s1896 = scalar_lea.vmem %s279, 256
      %v1897 = vld [vmem:[%s1896] sm:$0xff]
      %v1898 = vld [vmem:[%s1896 + $0x8] sm:$0xff]
      %v1899 = vld [vmem:[%s1896 + $0x10] sm:$0xff]
      %v1900 = vld [vmem:[%s1896 + $0x18] sm:$0xff]
      %v1901 = vld [vmem:[%s1896 + $0x20] sm:$0xff]
      %v1902 = vld [vmem:[%s1896 + $0x28] sm:$0xff]
      %v1903 = vld [vmem:[%s1896 + $0x30] sm:$0xff]
      %v1904 = vld [vmem:[%s1896 + $0x38] sm:$0xff]
      %v1905 = vld [vmem:[%s1896 + $0x40] sm:$0xff]
      %v1906 = vld [vmem:[%s1896 + $0x48] sm:$0xff]
      %v1907 = vld [vmem:[%s1896 + $0x50] sm:$0xff]
      %v1908 = vld [vmem:[%s1896 + $0x58] sm:$0xff]
      %v1909 = vld [vmem:[%s1896 + $0x60] sm:$0xff]
      %v1910 = vld [vmem:[%s1896 + $0x68] sm:$0xff]
      %v1911 = vld [vmem:[%s1896 + $0x70] sm:$0xff]
      %v1912 = vld [vmem:[%s1896 + $0x78] sm:$0xff]
      %s1913 = scalar_lea.vmem %s4, 256
      %v1914 = vld [vmem:[%s1913] sm:$0xff]
      %v1915 = vld [vmem:[%s1913 + $0x8] sm:$0xff]
      %v1916 = vld [vmem:[%s1913 + $0x10] sm:$0xff]
      %v1917 = vld [vmem:[%s1913 + $0x18] sm:$0xff]
      %v1918 = vld [vmem:[%s1913 + $0x20] sm:$0xff]
      %v1919 = vld [vmem:[%s1913 + $0x28] sm:$0xff]
      %v1920 = vld [vmem:[%s1913 + $0x30] sm:$0xff]
      %v1921 = vld [vmem:[%s1913 + $0x38] sm:$0xff]
      %v1922 = vld [vmem:[%s1913 + $0x40] sm:$0xff]
      %v1923 = vld [vmem:[%s1913 + $0x48] sm:$0xff]
      %v1924 = vld [vmem:[%s1913 + $0x50] sm:$0xff]
      %v1925 = vld [vmem:[%s1913 + $0x58] sm:$0xff]
      %v1926 = vld [vmem:[%s1913 + $0x60] sm:$0xff]
      %v1927 = vld [vmem:[%s1913 + $0x68] sm:$0xff]
      %v1928 = vld [vmem:[%s1913 + $0x70] sm:$0xff]
      %v1929 = vld [vmem:[%s1913 + $0x78] sm:$0xff]
      %1930 = vrot.lane.b32.xlu0 %v301, 96
      %v1931 = vpop.permute.xlu0 %1930
      %1932 = vrot.lane.b32.xlu0 %v302, 96
      %v1933 = vpop.permute.xlu0 %1932
      %1934 = vrot.lane.b32.xlu0 %v303, 96
      %v1935 = vpop.permute.xlu0 %1934
      %1936 = vrot.lane.b32.xlu0 %v304, 96
      %v1937 = vpop.permute.xlu0 %1936
      %1938 = vrot.lane.b32.xlu0 %v305, 96
      %v1939 = vpop.permute.xlu0 %1938
      %1940 = vrot.lane.b32.xlu0 %v306, 96
      %v1941 = vpop.permute.xlu0 %1940
      %1942 = vrot.lane.b32.xlu0 %v307, 96
      %v1943 = vpop.permute.xlu0 %1942
      %1944 = vrot.lane.b32.xlu0 %v308, 96
      %v1945 = vpop.permute.xlu0 %1944
      %1946 = vrot.lane.b32.xlu0 %v309, 96
      %v1947 = vpop.permute.xlu0 %1946
      %1948 = vrot.lane.b32.xlu0 %v310, 96
      %v1949 = vpop.permute.xlu0 %1948
      %1950 = vrot.lane.b32.xlu0 %v311, 96
      %v1951 = vpop.permute.xlu0 %1950
      %1952 = vrot.lane.b32.xlu0 %v312, 96
      %v1953 = vpop.permute.xlu0 %1952
      %1954 = vrot.lane.b32.xlu0 %v313, 96
      %v1955 = vpop.permute.xlu0 %1954
      %1956 = vrot.lane.b32.xlu0 %v314, 96
      %v1957 = vpop.permute.xlu0 %1956
      %1958 = vrot.lane.b32.xlu0 %v315, 96
      %v1959 = vpop.permute.xlu0 %1958
      %1960 = vrot.lane.b32.xlu0 %v316, 96
      %v1961 = vpop.permute.xlu0 %1960
      %v1963 = vsel %vm365, %v1897, 0
      %v1966 = vsel %vm365, %v1898, 0
      %v1969 = vsel %vm365, %v1899, 0
      %v1972 = vsel %vm365, %v1900, 0
      %v1975 = vsel %vm365, %v1901, 0
      %v1978 = vsel %vm365, %v1902, 0
      %v1981 = vsel %vm365, %v1903, 0
      %v1984 = vsel %vm365, %v1904, 0
      %v1987 = vsel %vm365, %v1905, 0
      %v1990 = vsel %vm365, %v1906, 0
      %v1993 = vsel %vm365, %v1907, 0
      %v1996 = vsel %vm365, %v1908, 0
      %v1999 = vsel %vm365, %v1909, 0
      %v2002 = vsel %vm365, %v1910, 0
      %v2005 = vsel %vm365, %v1911, 0
      %v2008 = vsel %vm365, %v1912, 0
      %v2010 = vsel %vm365, %v1931, 0
      %v2012 = vsel %vm365, %v1933, 0
      %v2014 = vsel %vm365, %v1935, 0
      %v2016 = vsel %vm365, %v1937, 0
      %v2018 = vsel %vm365, %v1939, 0
      %v2020 = vsel %vm365, %v1941, 0
      %v2022 = vsel %vm365, %v1943, 0
      %v2024 = vsel %vm365, %v1945, 0
      %v2026 = vsel %vm365, %v1947, 0
      %v2028 = vsel %vm365, %v1949, 0
      %v2030 = vsel %vm365, %v1951, 0
      %v2032 = vsel %vm365, %v1953, 0
      %v2034 = vsel %vm365, %v1955, 0
      %v2036 = vsel %vm365, %v1957, 0
      %v2038 = vsel %vm365, %v1959, 0
      %v2040 = vsel %vm365, %v1961, 0
      %2042 = vmatpush.xpose.msra.mxu0 %v2040
      %2043 = vmatpush.xpose.msra.mxu0 %v2038
      %2044 = vmatpush.xpose.msra.mxu0 %v2036
      %2045 = vmatpush.xpose.msra.mxu0 %v2034
      %2046 = vmatpush.xpose.msra.mxu0 %v2032
      %2047 = vmatpush.xpose.msra.mxu0 %v2030
      %2048 = vmatpush.xpose.msra.mxu0 %v2028
      %2049 = vmatpush.xpose.msra.mxu0 %v2026
      %2050 = vmatpush.xpose.msra.mxu0 %v2024
      %2051 = vmatpush.xpose.msra.mxu0 %v2022
      %2052 = vmatpush.xpose.msra.mxu0 %v2020
      %2053 = vmatpush.xpose.msra.mxu0 %v2018
      %2054 = vmatpush.xpose.msra.mxu0 %v2016
      %2055 = vmatpush.xpose.msra.mxu0 %v2014
      %2056 = vmatpush.xpose.msra.mxu0 %v2012
      %2057 = vmatpush.xpose.msra.mxu0 %v2010
      %2058 = vmatmul.f32.gmra.mxu0 %v1963
      %v2059 = vpop.f32.mrf.mxu0
      %v2060 = vadd.f32 %v1914, %v2059
      %2061 = vmatmul.f32.gmra.mxu0 %v1966
      %v2062 = vpop.f32.mrf.mxu0
      %v2063 = vadd.f32 %v1915, %v2062
      %2064 = vmatmul.f32.gmra.mxu0 %v1969
      %v2065 = vpop.f32.mrf.mxu0
      %v2066 = vadd.f32 %v1916, %v2065
      %2067 = vmatmul.f32.gmra.mxu0 %v1972
      %v2068 = vpop.f32.mrf.mxu0
      %v2069 = vadd.f32 %v1917, %v2068
      %2070 = vmatmul.f32.gmra.mxu0 %v1975
      %v2071 = vpop.f32.mrf.mxu0
      %v2072 = vadd.f32 %v1918, %v2071
      %2073 = vmatmul.f32.gmra.mxu0 %v1978
      %v2074 = vpop.f32.mrf.mxu0
      %v2075 = vadd.f32 %v1919, %v2074
      %2076 = vmatmul.f32.gmra.mxu0 %v1981
      %v2077 = vpop.f32.mrf.mxu0
      %v2078 = vadd.f32 %v1920, %v2077
      %2079 = vmatmul.f32.gmra.mxu0 %v1984
      %v2080 = vpop.f32.mrf.mxu0
      %v2081 = vadd.f32 %v1921, %v2080
      %2082 = vmatmul.f32.gmra.mxu0 %v1987
      %v2083 = vpop.f32.mrf.mxu0
      %v2084 = vadd.f32 %v1922, %v2083
      %2085 = vmatmul.f32.gmra.mxu0 %v1990
      %v2086 = vpop.f32.mrf.mxu0
      %v2087 = vadd.f32 %v1923, %v2086
      %2088 = vmatmul.f32.gmra.mxu0 %v1993
      %v2089 = vpop.f32.mrf.mxu0
      %v2090 = vadd.f32 %v1924, %v2089
      %2091 = vmatmul.f32.gmra.mxu0 %v1996
      %v2092 = vpop.f32.mrf.mxu0
      %v2093 = vadd.f32 %v1925, %v2092
      %2094 = vmatmul.f32.gmra.mxu0 %v1999
      %v2095 = vpop.f32.mrf.mxu0
      %v2096 = vadd.f32 %v1926, %v2095
      %2097 = vmatmul.f32.gmra.mxu0 %v2002
      %v2098 = vpop.f32.mrf.mxu0
      %v2099 = vadd.f32 %v1927, %v2098
      %2100 = vmatmul.f32.gmra.mxu0 %v2005
      %v2101 = vpop.f32.mrf.mxu0
      %v2102 = vadd.f32 %v1928, %v2101
      %2103 = vmatmul.f32.gmra.mxu0 %v2008
      %v2104 = vpop.f32.mrf.mxu0
      %v2105 = vadd.f32 %v1929, %v2104
      %2106 = vdwg.mxu0
      %2107 = vmax.xlane.f32.xlu0 %v2060
      %v2108 = vpop.xlane.xlu0 %2107
      %2109 = vmax.xlane.f32.xlu0 %v2063
      %v2110 = vpop.xlane.xlu0 %2109
      %2111 = vmax.xlane.f32.xlu0 %v2066
      %v2112 = vpop.xlane.xlu0 %2111
      %2113 = vmax.xlane.f32.xlu0 %v2069
      %v2114 = vpop.xlane.xlu0 %2113
      %2115 = vmax.xlane.f32.xlu0 %v2072
      %v2116 = vpop.xlane.xlu0 %2115
      %2117 = vmax.xlane.f32.xlu0 %v2075
      %v2118 = vpop.xlane.xlu0 %2117
      %2119 = vmax.xlane.f32.xlu0 %v2078
      %v2120 = vpop.xlane.xlu0 %2119
      %2121 = vmax.xlane.f32.xlu0 %v2081
      %v2122 = vpop.xlane.xlu0 %2121
      %2123 = vmax.xlane.f32.xlu0 %v2084
      %v2124 = vpop.xlane.xlu0 %2123
      %2125 = vmax.xlane.f32.xlu0 %v2087
      %v2126 = vpop.xlane.xlu0 %2125
      %2127 = vmax.xlane.f32.xlu0 %v2090
      %v2128 = vpop.xlane.xlu0 %2127
      %2129 = vmax.xlane.f32.xlu0 %v2093
      %v2130 = vpop.xlane.xlu0 %2129
      %2131 = vmax.xlane.f32.xlu0 %v2096
      %v2132 = vpop.xlane.xlu0 %2131
      %2133 = vmax.xlane.f32.xlu0 %v2099
      %v2134 = vpop.xlane.xlu0 %2133
      %2135 = vmax.xlane.f32.xlu0 %v2102
      %v2136 = vpop.xlane.xlu0 %2135
      %2137 = vmax.xlane.f32.xlu0 %v2105
      %v2138 = vpop.xlane.xlu0 %2137
      %v2139 = vsub.f32 %v2060, %v2108
      %v2140 = vsub.f32 %v2063, %v2110
      %v2141 = vsub.f32 %v2066, %v2112
      %v2142 = vsub.f32 %v2069, %v2114
      %v2143 = vsub.f32 %v2072, %v2116
      %v2144 = vsub.f32 %v2075, %v2118
      %v2145 = vsub.f32 %v2078, %v2120
      %v2146 = vsub.f32 %v2081, %v2122
      %v2147 = vsub.f32 %v2084, %v2124
      %v2148 = vsub.f32 %v2087, %v2126
      %v2149 = vsub.f32 %v2090, %v2128
      %v2150 = vsub.f32 %v2093, %v2130
      %v2151 = vsub.f32 %v2096, %v2132
      %v2152 = vsub.f32 %v2099, %v2134
      %v2153 = vsub.f32 %v2102, %v2136
      %v2154 = vsub.f32 %v2105, %v2138
      %v2155 = vmul.f32 %v2139, 1.442695
      %v2156 = vpow.pop %v2155
      %v2157 = vmul.f32 %v2140, 1.442695
      %v2158 = vpow.pop %v2157
      %v2159 = vmul.f32 %v2141, 1.442695
      %v2160 = vpow.pop %v2159
      %v2161 = vmul.f32 %v2142, 1.442695
      %v2162 = vpow.pop %v2161
      %v2163 = vmul.f32 %v2143, 1.442695
      %v2164 = vpow.pop %v2163
      %v2165 = vmul.f32 %v2144, 1.442695
      %v2166 = vpow.pop %v2165
      %v2167 = vmul.f32 %v2145, 1.442695
      %v2168 = vpow.pop %v2167
      %v2169 = vmul.f32 %v2146, 1.442695
      %v2170 = vpow.pop %v2169
      %v2171 = vmul.f32 %v2147, 1.442695
      %v2172 = vpow.pop %v2171
      %v2173 = vmul.f32 %v2148, 1.442695
      %v2174 = vpow.pop %v2173
      %v2175 = vmul.f32 %v2149, 1.442695
      %v2176 = vpow.pop %v2175
      %v2177 = vmul.f32 %v2150, 1.442695
      %v2178 = vpow.pop %v2177
      %v2179 = vmul.f32 %v2151, 1.442695
      %v2180 = vpow.pop %v2179
      %v2181 = vmul.f32 %v2152, 1.442695
      %v2182 = vpow.pop %v2181
      %v2183 = vmul.f32 %v2153, 1.442695
      %v2184 = vpow.pop %v2183
      %v2185 = vmul.f32 %v2154, 1.442695
      %v2186 = vpow.pop %v2185
      %2187 = vadd.xlane.f32.xlu0 %v2156
      %v2188 = vpop.xlane.xlu0 %2187
      %2189 = vadd.xlane.f32.xlu0 %v2158
      %v2190 = vpop.xlane.xlu0 %2189
      %2191 = vadd.xlane.f32.xlu0 %v2160
      %v2192 = vpop.xlane.xlu0 %2191
      %2193 = vadd.xlane.f32.xlu0 %v2162
      %v2194 = vpop.xlane.xlu0 %2193
      %2195 = vadd.xlane.f32.xlu0 %v2164
      %v2196 = vpop.xlane.xlu0 %2195
      %2197 = vadd.xlane.f32.xlu0 %v2166
      %v2198 = vpop.xlane.xlu0 %2197
      %2199 = vadd.xlane.f32.xlu0 %v2168
      %v2200 = vpop.xlane.xlu0 %2199
      %2201 = vadd.xlane.f32.xlu0 %v2170
      %v2202 = vpop.xlane.xlu0 %2201
      %2203 = vadd.xlane.f32.xlu0 %v2172
      %v2204 = vpop.xlane.xlu0 %2203
      %2205 = vadd.xlane.f32.xlu0 %v2174
      %v2206 = vpop.xlane.xlu0 %2205
      %2207 = vadd.xlane.f32.xlu0 %v2176
      %v2208 = vpop.xlane.xlu0 %2207
      %2209 = vadd.xlane.f32.xlu0 %v2178
      %v2210 = vpop.xlane.xlu0 %2209
      %2211 = vadd.xlane.f32.xlu0 %v2180
      %v2212 = vpop.xlane.xlu0 %2211
      %2213 = vadd.xlane.f32.xlu0 %v2182
      %v2214 = vpop.xlane.xlu0 %2213
      %2215 = vadd.xlane.f32.xlu0 %v2184
      %v2216 = vpop.xlane.xlu0 %2215
      %2217 = vadd.xlane.f32.xlu0 %v2186
      %v2218 = vpop.xlane.xlu0 %2217
      %v2219 = vrcp.pop %v2188
      %v2220 = vrcp.pop %v2190
      %v2221 = vrcp.pop %v2192
      %v2222 = vrcp.pop %v2194
      %v2223 = vrcp.pop %v2196
      %v2224 = vrcp.pop %v2198
      %v2225 = vrcp.pop %v2200
      %v2226 = vrcp.pop %v2202
      %v2227 = vrcp.pop %v2204
      %v2228 = vrcp.pop %v2206
      %v2229 = vrcp.pop %v2208
      %v2230 = vrcp.pop %v2210
      %v2231 = vrcp.pop %v2212
      %v2232 = vrcp.pop %v2214
      %v2233 = vrcp.pop %v2216
      %v2234 = vrcp.pop %v2218
      %v2235 = vmul.f32 %v2156, %v2219
      %v2236 = vmul.f32 %v2158, %v2220
      %v2237 = vmul.f32 %v2160, %v2221
      %v2238 = vmul.f32 %v2162, %v2222
      %v2239 = vmul.f32 %v2164, %v2223
      %v2240 = vmul.f32 %v2166, %v2224
      %v2241 = vmul.f32 %v2168, %v2225
      %v2242 = vmul.f32 %v2170, %v2226
      %v2243 = vmul.f32 %v2172, %v2227
      %v2244 = vmul.f32 %v2174, %v2228
      %v2245 = vmul.f32 %v2176, %v2229
      %v2246 = vmul.f32 %v2178, %v2230
      %v2247 = vmul.f32 %v2180, %v2231
      %v2248 = vmul.f32 %v2182, %v2232
      %v2249 = vmul.f32 %v2184, %v2233
      %v2250 = vmul.f32 %v2186, %v2234
      %2251 = vrot.lane.b32.xlu0 %v317, 96
      %v2252 = vpop.permute.xlu0 %2251
      %2253 = vrot.lane.b32.xlu0 %v318, 96
      %v2254 = vpop.permute.xlu0 %2253
      %2255 = vrot.lane.b32.xlu0 %v319, 96
      %v2256 = vpop.permute.xlu0 %2255
      %2257 = vrot.lane.b32.xlu0 %v320, 96
      %v2258 = vpop.permute.xlu0 %2257
      %2259 = vrot.lane.b32.xlu0 %v321, 96
      %v2260 = vpop.permute.xlu0 %2259
      %2261 = vrot.lane.b32.xlu0 %v322, 96
      %v2262 = vpop.permute.xlu0 %2261
      %2263 = vrot.lane.b32.xlu0 %v323, 96
      %v2264 = vpop.permute.xlu0 %2263
      %2265 = vrot.lane.b32.xlu0 %v324, 96
      %v2266 = vpop.permute.xlu0 %2265
      %2267 = vrot.lane.b32.xlu0 %v325, 96
      %v2268 = vpop.permute.xlu0 %2267
      %2269 = vrot.lane.b32.xlu0 %v326, 96
      %v2270 = vpop.permute.xlu0 %2269
      %2271 = vrot.lane.b32.xlu0 %v327, 96
      %v2272 = vpop.permute.xlu0 %2271
      %2273 = vrot.lane.b32.xlu0 %v328, 96
      %v2274 = vpop.permute.xlu0 %2273
      %2275 = vrot.lane.b32.xlu0 %v329, 96
      %v2276 = vpop.permute.xlu0 %2275
      %2277 = vrot.lane.b32.xlu0 %v330, 96
      %v2278 = vpop.permute.xlu0 %2277
      %2279 = vrot.lane.b32.xlu0 %v331, 96
      %v2280 = vpop.permute.xlu0 %2279
      %2281 = vrot.lane.b32.xlu0 %v332, 96
      %v2282 = vpop.permute.xlu0 %2281
      %2299 = vmatpush.msra.mxu0 %v2282
      %2300 = vmatpush.msra.mxu0 %v2280
      %2301 = vmatpush.msra.mxu0 %v2278
      %2302 = vmatpush.msra.mxu0 %v2276
      %2303 = vmatpush.msra.mxu0 %v2274
      %2304 = vmatpush.msra.mxu0 %v2272
      %2305 = vmatpush.msra.mxu0 %v2270
      %2306 = vmatpush.msra.mxu0 %v2268
      %2307 = vmatpush.msra.mxu0 %v2266
      %2308 = vmatpush.msra.mxu0 %v2264
      %2309 = vmatpush.msra.mxu0 %v2262
      %2310 = vmatpush.msra.mxu0 %v2260
      %2311 = vmatpush.msra.mxu0 %v2258
      %2312 = vmatpush.msra.mxu0 %v2256
      %2313 = vmatpush.msra.mxu0 %v2254
      %2314 = vmatpush.msra.mxu0 %v2252
      %2315 = vmatmul.f32.gmra.mxu0 %v2235
      %v2316 = vpop.f32.mrf.mxu0
      %v2317 = vadd.f32 0.0, %v2316
      %2318 = vmatmul.f32.gmra.mxu0 %v2236
      %v2319 = vpop.f32.mrf.mxu0
      %v2320 = vadd.f32 0.0, %v2319
      %2321 = vmatmul.f32.gmra.mxu0 %v2237
      %v2322 = vpop.f32.mrf.mxu0
      %v2323 = vadd.f32 0.0, %v2322
      %2324 = vmatmul.f32.gmra.mxu0 %v2238
      %v2325 = vpop.f32.mrf.mxu0
      %v2326 = vadd.f32 0.0, %v2325
      %2327 = vmatmul.f32.gmra.mxu0 %v2239
      %v2328 = vpop.f32.mrf.mxu0
      %v2329 = vadd.f32 0.0, %v2328
      %2330 = vmatmul.f32.gmra.mxu0 %v2240
      %v2331 = vpop.f32.mrf.mxu0
      %v2332 = vadd.f32 0.0, %v2331
      %2333 = vmatmul.f32.gmra.mxu0 %v2241
      %v2334 = vpop.f32.mrf.mxu0
      %v2335 = vadd.f32 0.0, %v2334
      %2336 = vmatmul.f32.gmra.mxu0 %v2242
      %v2337 = vpop.f32.mrf.mxu0
      %v2338 = vadd.f32 0.0, %v2337
      %2339 = vmatmul.f32.gmra.mxu0 %v2243
      %v2340 = vpop.f32.mrf.mxu0
      %v2341 = vadd.f32 0.0, %v2340
      %2342 = vmatmul.f32.gmra.mxu0 %v2244
      %v2343 = vpop.f32.mrf.mxu0
      %v2344 = vadd.f32 0.0, %v2343
      %2345 = vmatmul.f32.gmra.mxu0 %v2245
      %v2346 = vpop.f32.mrf.mxu0
      %v2347 = vadd.f32 0.0, %v2346
      %2348 = vmatmul.f32.gmra.mxu0 %v2246
      %v2349 = vpop.f32.mrf.mxu0
      %v2350 = vadd.f32 0.0, %v2349
      %2351 = vmatmul.f32.gmra.mxu0 %v2247
      %v2352 = vpop.f32.mrf.mxu0
      %v2353 = vadd.f32 0.0, %v2352
      %2354 = vmatmul.f32.gmra.mxu0 %v2248
      %v2355 = vpop.f32.mrf.mxu0
      %v2356 = vadd.f32 0.0, %v2355
      %2357 = vmatmul.f32.gmra.mxu0 %v2249
      %v2358 = vpop.f32.mrf.mxu0
      %v2359 = vadd.f32 0.0, %v2358
      %2360 = vmatmul.f32.gmra.mxu0 %v2250
      %v2361 = vpop.f32.mrf.mxu0
      %v2362 = vadd.f32 0.0, %v2361
      %2363 = vdwg.mxu0
      %2364 = vrot.lane.b32.xlu0 %v736, 96
      %v2365 = vpop.permute.xlu0 %2364
      %2366 = vrot.lane.b32.xlu0 %v737, 96
      %v2367 = vpop.permute.xlu0 %2366
      %2368 = vrot.lane.b32.xlu0 %v738, 96
      %v2369 = vpop.permute.xlu0 %2368
      %2370 = vrot.lane.b32.xlu0 %v739, 96
      %v2371 = vpop.permute.xlu0 %2370
      %2372 = vrot.lane.b32.xlu0 %v740, 96
      %v2373 = vpop.permute.xlu0 %2372
      %2374 = vrot.lane.b32.xlu0 %v741, 96
      %v2375 = vpop.permute.xlu0 %2374
      %2376 = vrot.lane.b32.xlu0 %v742, 96
      %v2377 = vpop.permute.xlu0 %2376
      %2378 = vrot.lane.b32.xlu0 %v743, 96
      %v2379 = vpop.permute.xlu0 %2378
      %2380 = vrot.lane.b32.xlu0 %v744, 96
      %v2381 = vpop.permute.xlu0 %2380
      %2382 = vrot.lane.b32.xlu0 %v745, 96
      %v2383 = vpop.permute.xlu0 %2382
      %2384 = vrot.lane.b32.xlu0 %v746, 96
      %v2385 = vpop.permute.xlu0 %2384
      %2386 = vrot.lane.b32.xlu0 %v747, 96
      %v2387 = vpop.permute.xlu0 %2386
      %2388 = vrot.lane.b32.xlu0 %v748, 96
      %v2389 = vpop.permute.xlu0 %2388
      %2390 = vrot.lane.b32.xlu0 %v749, 96
      %v2391 = vpop.permute.xlu0 %2390
      %2392 = vrot.lane.b32.xlu0 %v750, 96
      %v2393 = vpop.permute.xlu0 %2392
      %2394 = vrot.lane.b32.xlu0 %v751, 96
      %v2395 = vpop.permute.xlu0 %2394
      %v2396 = vsel %vm365, %v2365, 0
      %v2398 = vsel %vm365, %v2367, 0
      %v2400 = vsel %vm365, %v2369, 0
      %v2402 = vsel %vm365, %v2371, 0
      %v2404 = vsel %vm365, %v2373, 0
      %v2406 = vsel %vm365, %v2375, 0
      %v2408 = vsel %vm365, %v2377, 0
      %v2410 = vsel %vm365, %v2379, 0
      %v2412 = vsel %vm365, %v2381, 0
      %v2414 = vsel %vm365, %v2383, 0
      %v2416 = vsel %vm365, %v2385, 0
      %v2418 = vsel %vm365, %v2387, 0
      %v2420 = vsel %vm365, %v2389, 0
      %v2422 = vsel %vm365, %v2391, 0
      %v2424 = vsel %vm365, %v2393, 0
      %v2426 = vsel %vm365, %v2395, 0
      %2428 = vmatpush.xpose.msra.mxu0 %v2008
      %2429 = vmatpush.xpose.msra.mxu0 %v2005
      %2430 = vmatpush.xpose.msra.mxu0 %v2002
      %2431 = vmatpush.xpose.msra.mxu0 %v1999
      %2432 = vmatpush.xpose.msra.mxu0 %v1996
      %2433 = vmatpush.xpose.msra.mxu0 %v1993
      %2434 = vmatpush.xpose.msra.mxu0 %v1990
      %2435 = vmatpush.xpose.msra.mxu0 %v1987
      %2436 = vmatpush.xpose.msra.mxu0 %v1984
      %2437 = vmatpush.xpose.msra.mxu0 %v1981
      %2438 = vmatpush.xpose.msra.mxu0 %v1978
      %2439 = vmatpush.xpose.msra.mxu0 %v1975
      %2440 = vmatpush.xpose.msra.mxu0 %v1972
      %2441 = vmatpush.xpose.msra.mxu0 %v1969
      %2442 = vmatpush.xpose.msra.mxu0 %v1966
      %2443 = vmatpush.xpose.msra.mxu0 %v1963
      %2444 = vmatmul.f32.gmra.mxu0 %v2396
      %v2445 = vpop.f32.mrf.mxu0
      %v2446 = vadd.f32 %v1914, %v2445
      %2447 = vmatmul.f32.gmra.mxu0 %v2398
      %v2448 = vpop.f32.mrf.mxu0
      %v2449 = vadd.f32 %v1915, %v2448
      %2450 = vmatmul.f32.gmra.mxu0 %v2400
      %v2451 = vpop.f32.mrf.mxu0
      %v2452 = vadd.f32 %v1916, %v2451
      %2453 = vmatmul.f32.gmra.mxu0 %v2402
      %v2454 = vpop.f32.mrf.mxu0
      %v2455 = vadd.f32 %v1917, %v2454
      %2456 = vmatmul.f32.gmra.mxu0 %v2404
      %v2457 = vpop.f32.mrf.mxu0
      %v2458 = vadd.f32 %v1918, %v2457
      %2459 = vmatmul.f32.gmra.mxu0 %v2406
      %v2460 = vpop.f32.mrf.mxu0
      %v2461 = vadd.f32 %v1919, %v2460
      %2462 = vmatmul.f32.gmra.mxu0 %v2408
      %v2463 = vpop.f32.mrf.mxu0
      %v2464 = vadd.f32 %v1920, %v2463
      %2465 = vmatmul.f32.gmra.mxu0 %v2410
      %v2466 = vpop.f32.mrf.mxu0
      %v2467 = vadd.f32 %v1921, %v2466
      %2468 = vmatmul.f32.gmra.mxu0 %v2412
      %v2469 = vpop.f32.mrf.mxu0
      %v2470 = vadd.f32 %v1922, %v2469
      %2471 = vmatmul.f32.gmra.mxu0 %v2414
      %v2472 = vpop.f32.mrf.mxu0
      %v2473 = vadd.f32 %v1923, %v2472
      %2474 = vmatmul.f32.gmra.mxu0 %v2416
      %v2475 = vpop.f32.mrf.mxu0
      %v2476 = vadd.f32 %v1924, %v2475
      %2477 = vmatmul.f32.gmra.mxu0 %v2418
      %v2478 = vpop.f32.mrf.mxu0
      %v2479 = vadd.f32 %v1925, %v2478
      %2480 = vmatmul.f32.gmra.mxu0 %v2420
      %v2481 = vpop.f32.mrf.mxu0
      %v2482 = vadd.f32 %v1926, %v2481
      %2483 = vmatmul.f32.gmra.mxu0 %v2422
      %v2484 = vpop.f32.mrf.mxu0
      %v2485 = vadd.f32 %v1927, %v2484
      %2486 = vmatmul.f32.gmra.mxu0 %v2424
      %v2487 = vpop.f32.mrf.mxu0
      %v2488 = vadd.f32 %v1928, %v2487
      %2489 = vmatmul.f32.gmra.mxu0 %v2426
      %v2490 = vpop.f32.mrf.mxu0
      %v2491 = vadd.f32 %v1929, %v2490
      %2492 = vdwg.mxu0
      %2493 = vmax.xlane.f32.xlu0 %v2446
      %v2494 = vpop.xlane.xlu0 %2493
      %2495 = vmax.xlane.f32.xlu0 %v2449
      %v2496 = vpop.xlane.xlu0 %2495
      %2497 = vmax.xlane.f32.xlu0 %v2452
      %v2498 = vpop.xlane.xlu0 %2497
      %2499 = vmax.xlane.f32.xlu0 %v2455
      %v2500 = vpop.xlane.xlu0 %2499
      %2501 = vmax.xlane.f32.xlu0 %v2458
      %v2502 = vpop.xlane.xlu0 %2501
      %2503 = vmax.xlane.f32.xlu0 %v2461
      %v2504 = vpop.xlane.xlu0 %2503
      %2505 = vmax.xlane.f32.xlu0 %v2464
      %v2506 = vpop.xlane.xlu0 %2505
      %2507 = vmax.xlane.f32.xlu0 %v2467
      %v2508 = vpop.xlane.xlu0 %2507
      %2509 = vmax.xlane.f32.xlu0 %v2470
      %v2510 = vpop.xlane.xlu0 %2509
      %2511 = vmax.xlane.f32.xlu0 %v2473
      %v2512 = vpop.xlane.xlu0 %2511
      %2513 = vmax.xlane.f32.xlu0 %v2476
      %v2514 = vpop.xlane.xlu0 %2513
      %2515 = vmax.xlane.f32.xlu0 %v2479
      %v2516 = vpop.xlane.xlu0 %2515
      %2517 = vmax.xlane.f32.xlu0 %v2482
      %v2518 = vpop.xlane.xlu0 %2517
      %2519 = vmax.xlane.f32.xlu0 %v2485
      %v2520 = vpop.xlane.xlu0 %2519
      %2521 = vmax.xlane.f32.xlu0 %v2488
      %v2522 = vpop.xlane.xlu0 %2521
      %2523 = vmax.xlane.f32.xlu0 %v2491
      %v2524 = vpop.xlane.xlu0 %2523
      %v2525 = vsub.f32 %v2446, %v2494
      %v2526 = vsub.f32 %v2449, %v2496
      %v2527 = vsub.f32 %v2452, %v2498
      %v2528 = vsub.f32 %v2455, %v2500
      %v2529 = vsub.f32 %v2458, %v2502
      %v2530 = vsub.f32 %v2461, %v2504
      %v2531 = vsub.f32 %v2464, %v2506
      %v2532 = vsub.f32 %v2467, %v2508
      %v2533 = vsub.f32 %v2470, %v2510
      %v2534 = vsub.f32 %v2473, %v2512
      %v2535 = vsub.f32 %v2476, %v2514
      %v2536 = vsub.f32 %v2479, %v2516
      %v2537 = vsub.f32 %v2482, %v2518
      %v2538 = vsub.f32 %v2485, %v2520
      %v2539 = vsub.f32 %v2488, %v2522
      %v2540 = vsub.f32 %v2491, %v2524
      %v2541 = vmul.f32 %v2525, 1.442695
      %v2542 = vpow.pop %v2541
      %v2543 = vmul.f32 %v2526, 1.442695
      %v2544 = vpow.pop %v2543
      %v2545 = vmul.f32 %v2527, 1.442695
      %v2546 = vpow.pop %v2545
      %v2547 = vmul.f32 %v2528, 1.442695
      %v2548 = vpow.pop %v2547
      %v2549 = vmul.f32 %v2529, 1.442695
      %v2550 = vpow.pop %v2549
      %v2551 = vmul.f32 %v2530, 1.442695
      %v2552 = vpow.pop %v2551
      %v2553 = vmul.f32 %v2531, 1.442695
      %v2554 = vpow.pop %v2553
      %v2555 = vmul.f32 %v2532, 1.442695
      %v2556 = vpow.pop %v2555
      %v2557 = vmul.f32 %v2533, 1.442695
      %v2558 = vpow.pop %v2557
      %v2559 = vmul.f32 %v2534, 1.442695
      %v2560 = vpow.pop %v2559
      %v2561 = vmul.f32 %v2535, 1.442695
      %v2562 = vpow.pop %v2561
      %v2563 = vmul.f32 %v2536, 1.442695
      %v2564 = vpow.pop %v2563
      %v2565 = vmul.f32 %v2537, 1.442695
      %v2566 = vpow.pop %v2565
      %v2567 = vmul.f32 %v2538, 1.442695
      %v2568 = vpow.pop %v2567
      %v2569 = vmul.f32 %v2539, 1.442695
      %v2570 = vpow.pop %v2569
      %v2571 = vmul.f32 %v2540, 1.442695
      %v2572 = vpow.pop %v2571
      %2573 = vadd.xlane.f32.xlu0 %v2542
      %v2574 = vpop.xlane.xlu0 %2573
      %2575 = vadd.xlane.f32.xlu0 %v2544
      %v2576 = vpop.xlane.xlu0 %2575
      %2577 = vadd.xlane.f32.xlu0 %v2546
      %v2578 = vpop.xlane.xlu0 %2577
      %2579 = vadd.xlane.f32.xlu0 %v2548
      %v2580 = vpop.xlane.xlu0 %2579
      %2581 = vadd.xlane.f32.xlu0 %v2550
      %v2582 = vpop.xlane.xlu0 %2581
      %2583 = vadd.xlane.f32.xlu0 %v2552
      %v2584 = vpop.xlane.xlu0 %2583
      %2585 = vadd.xlane.f32.xlu0 %v2554
      %v2586 = vpop.xlane.xlu0 %2585
      %2587 = vadd.xlane.f32.xlu0 %v2556
      %v2588 = vpop.xlane.xlu0 %2587
      %2589 = vadd.xlane.f32.xlu0 %v2558
      %v2590 = vpop.xlane.xlu0 %2589
      %2591 = vadd.xlane.f32.xlu0 %v2560
      %v2592 = vpop.xlane.xlu0 %2591
      %2593 = vadd.xlane.f32.xlu0 %v2562
      %v2594 = vpop.xlane.xlu0 %2593
      %2595 = vadd.xlane.f32.xlu0 %v2564
      %v2596 = vpop.xlane.xlu0 %2595
      %2597 = vadd.xlane.f32.xlu0 %v2566
      %v2598 = vpop.xlane.xlu0 %2597
      %2599 = vadd.xlane.f32.xlu0 %v2568
      %v2600 = vpop.xlane.xlu0 %2599
      %2601 = vadd.xlane.f32.xlu0 %v2570
      %v2602 = vpop.xlane.xlu0 %2601
      %2603 = vadd.xlane.f32.xlu0 %v2572
      %v2604 = vpop.xlane.xlu0 %2603
      %v2605 = vrcp.pop %v2574
      %v2606 = vrcp.pop %v2576
      %v2607 = vrcp.pop %v2578
      %v2608 = vrcp.pop %v2580
      %v2609 = vrcp.pop %v2582
      %v2610 = vrcp.pop %v2584
      %v2611 = vrcp.pop %v2586
      %v2612 = vrcp.pop %v2588
      %v2613 = vrcp.pop %v2590
      %v2614 = vrcp.pop %v2592
      %v2615 = vrcp.pop %v2594
      %v2616 = vrcp.pop %v2596
      %v2617 = vrcp.pop %v2598
      %v2618 = vrcp.pop %v2600
      %v2619 = vrcp.pop %v2602
      %v2620 = vrcp.pop %v2604
      %v2621 = vmul.f32 %v2542, %v2605
      %v2622 = vmul.f32 %v2544, %v2606
      %v2623 = vmul.f32 %v2546, %v2607
      %v2624 = vmul.f32 %v2548, %v2608
      %v2625 = vmul.f32 %v2550, %v2609
      %v2626 = vmul.f32 %v2552, %v2610
      %v2627 = vmul.f32 %v2554, %v2611
      %v2628 = vmul.f32 %v2556, %v2612
      %v2629 = vmul.f32 %v2558, %v2613
      %v2630 = vmul.f32 %v2560, %v2614
      %v2631 = vmul.f32 %v2562, %v2615
      %v2632 = vmul.f32 %v2564, %v2616
      %v2633 = vmul.f32 %v2566, %v2617
      %v2634 = vmul.f32 %v2568, %v2618
      %v2635 = vmul.f32 %v2570, %v2619
      %v2636 = vmul.f32 %v2572, %v2620
      %2637 = vmatpush.msra.mxu0 %v2362
      %2638 = vmatpush.msra.mxu0 %v2359
      %2639 = vmatpush.msra.mxu0 %v2356
      %2640 = vmatpush.msra.mxu0 %v2353
      %2641 = vmatpush.msra.mxu0 %v2350
      %2642 = vmatpush.msra.mxu0 %v2347
      %2643 = vmatpush.msra.mxu0 %v2344
      %2644 = vmatpush.msra.mxu0 %v2341
      %2645 = vmatpush.msra.mxu0 %v2338
      %2646 = vmatpush.msra.mxu0 %v2335
      %2647 = vmatpush.msra.mxu0 %v2332
      %2648 = vmatpush.msra.mxu0 %v2329
      %2649 = vmatpush.msra.mxu0 %v2326
      %2650 = vmatpush.msra.mxu0 %v2323
      %2651 = vmatpush.msra.mxu0 %v2320
      %2652 = vmatpush.msra.mxu0 %v2317
      %2653 = vmatmul.f32.gmra.mxu0 %v2621
      %v2654 = vpop.f32.mrf.mxu0
      %v2655 = vadd.f32 0.0, %v2654
      %2656 = vmatmul.f32.gmra.mxu0 %v2622
      %v2657 = vpop.f32.mrf.mxu0
      %v2658 = vadd.f32 0.0, %v2657
      %2659 = vmatmul.f32.gmra.mxu0 %v2623
      %v2660 = vpop.f32.mrf.mxu0
      %v2661 = vadd.f32 0.0, %v2660
      %2662 = vmatmul.f32.gmra.mxu0 %v2624
      %v2663 = vpop.f32.mrf.mxu0
      %v2664 = vadd.f32 0.0, %v2663
      %2665 = vmatmul.f32.gmra.mxu0 %v2625
      %v2666 = vpop.f32.mrf.mxu0
      %v2667 = vadd.f32 0.0, %v2666
      %2668 = vmatmul.f32.gmra.mxu0 %v2626
      %v2669 = vpop.f32.mrf.mxu0
      %v2670 = vadd.f32 0.0, %v2669
      %2671 = vmatmul.f32.gmra.mxu0 %v2627
      %v2672 = vpop.f32.mrf.mxu0
      %v2673 = vadd.f32 0.0, %v2672
      %2674 = vmatmul.f32.gmra.mxu0 %v2628
      %v2675 = vpop.f32.mrf.mxu0
      %v2676 = vadd.f32 0.0, %v2675
      %2677 = vmatmul.f32.gmra.mxu0 %v2629
      %v2678 = vpop.f32.mrf.mxu0
      %v2679 = vadd.f32 0.0, %v2678
      %2680 = vmatmul.f32.gmra.mxu0 %v2630
      %v2681 = vpop.f32.mrf.mxu0
      %v2682 = vadd.f32 0.0, %v2681
      %2683 = vmatmul.f32.gmra.mxu0 %v2631
      %v2684 = vpop.f32.mrf.mxu0
      %v2685 = vadd.f32 0.0, %v2684
      %2686 = vmatmul.f32.gmra.mxu0 %v2632
      %v2687 = vpop.f32.mrf.mxu0
      %v2688 = vadd.f32 0.0, %v2687
      %2689 = vmatmul.f32.gmra.mxu0 %v2633
      %v2690 = vpop.f32.mrf.mxu0
      %v2691 = vadd.f32 0.0, %v2690
      %2692 = vmatmul.f32.gmra.mxu0 %v2634
      %v2693 = vpop.f32.mrf.mxu0
      %v2694 = vadd.f32 0.0, %v2693
      %2695 = vmatmul.f32.gmra.mxu0 %v2635
      %v2696 = vpop.f32.mrf.mxu0
      %v2697 = vadd.f32 0.0, %v2696
      %2698 = vmatmul.f32.gmra.mxu0 %v2636
      %v2699 = vpop.f32.mrf.mxu0
      %v2700 = vadd.f32 0.0, %v2699
      %2701 = vdwg.mxu0
      %s2702 = scalar_lea.vmem %s279, 384
      %v2703 = vld [vmem:[%s2702] sm:$0xff]
      %v2704 = vld [vmem:[%s2702 + $0x8] sm:$0xff]
      %v2705 = vld [vmem:[%s2702 + $0x10] sm:$0xff]
      %v2706 = vld [vmem:[%s2702 + $0x18] sm:$0xff]
      %v2707 = vld [vmem:[%s2702 + $0x20] sm:$0xff]
      %v2708 = vld [vmem:[%s2702 + $0x28] sm:$0xff]
      %v2709 = vld [vmem:[%s2702 + $0x30] sm:$0xff]
      %v2710 = vld [vmem:[%s2702 + $0x38] sm:$0xff]
      %v2711 = vld [vmem:[%s2702 + $0x40] sm:$0xff]
      %v2712 = vld [vmem:[%s2702 + $0x48] sm:$0xff]
      %v2713 = vld [vmem:[%s2702 + $0x50] sm:$0xff]
      %v2714 = vld [vmem:[%s2702 + $0x58] sm:$0xff]
      %v2715 = vld [vmem:[%s2702 + $0x60] sm:$0xff]
      %v2716 = vld [vmem:[%s2702 + $0x68] sm:$0xff]
      %v2717 = vld [vmem:[%s2702 + $0x70] sm:$0xff]
      %v2718 = vld [vmem:[%s2702 + $0x78] sm:$0xff]
      %s2719 = scalar_lea.vmem %s4, 384
      %v2720 = vld [vmem:[%s2719] sm:$0xff]
      %v2721 = vld [vmem:[%s2719 + $0x8] sm:$0xff]
      %v2722 = vld [vmem:[%s2719 + $0x10] sm:$0xff]
      %v2723 = vld [vmem:[%s2719 + $0x18] sm:$0xff]
      %v2724 = vld [vmem:[%s2719 + $0x20] sm:$0xff]
      %v2725 = vld [vmem:[%s2719 + $0x28] sm:$0xff]
      %v2726 = vld [vmem:[%s2719 + $0x30] sm:$0xff]
      %v2727 = vld [vmem:[%s2719 + $0x38] sm:$0xff]
      %v2728 = vld [vmem:[%s2719 + $0x40] sm:$0xff]
      %v2729 = vld [vmem:[%s2719 + $0x48] sm:$0xff]
      %v2730 = vld [vmem:[%s2719 + $0x50] sm:$0xff]
      %v2731 = vld [vmem:[%s2719 + $0x58] sm:$0xff]
      %v2732 = vld [vmem:[%s2719 + $0x60] sm:$0xff]
      %v2733 = vld [vmem:[%s2719 + $0x68] sm:$0xff]
      %v2734 = vld [vmem:[%s2719 + $0x70] sm:$0xff]
      %v2735 = vld [vmem:[%s2719 + $0x78] sm:$0xff]
      %2736 = vrot.lane.b32.xlu0 %v301, 80
      %v2737 = vpop.permute.xlu0 %2736
      %2738 = vrot.lane.b32.xlu0 %v302, 80
      %v2739 = vpop.permute.xlu0 %2738
      %2740 = vrot.lane.b32.xlu0 %v303, 80
      %v2741 = vpop.permute.xlu0 %2740
      %2742 = vrot.lane.b32.xlu0 %v304, 80
      %v2743 = vpop.permute.xlu0 %2742
      %2744 = vrot.lane.b32.xlu0 %v305, 80
      %v2745 = vpop.permute.xlu0 %2744
      %2746 = vrot.lane.b32.xlu0 %v306, 80
      %v2747 = vpop.permute.xlu0 %2746
      %2748 = vrot.lane.b32.xlu0 %v307, 80
      %v2749 = vpop.permute.xlu0 %2748
      %2750 = vrot.lane.b32.xlu0 %v308, 80
      %v2751 = vpop.permute.xlu0 %2750
      %2752 = vrot.lane.b32.xlu0 %v309, 80
      %v2753 = vpop.permute.xlu0 %2752
      %2754 = vrot.lane.b32.xlu0 %v310, 80
      %v2755 = vpop.permute.xlu0 %2754
      %2756 = vrot.lane.b32.xlu0 %v311, 80
      %v2757 = vpop.permute.xlu0 %2756
      %2758 = vrot.lane.b32.xlu0 %v312, 80
      %v2759 = vpop.permute.xlu0 %2758
      %2760 = vrot.lane.b32.xlu0 %v313, 80
      %v2761 = vpop.permute.xlu0 %2760
      %2762 = vrot.lane.b32.xlu0 %v314, 80
      %v2763 = vpop.permute.xlu0 %2762
      %2764 = vrot.lane.b32.xlu0 %v315, 80
      %v2765 = vpop.permute.xlu0 %2764
      %2766 = vrot.lane.b32.xlu0 %v316, 80
      %v2767 = vpop.permute.xlu0 %2766
      %v2769 = vsel %vm365, %v2703, 0
      %v2772 = vsel %vm365, %v2704, 0
      %v2775 = vsel %vm365, %v2705, 0
      %v2778 = vsel %vm365, %v2706, 0
      %v2781 = vsel %vm365, %v2707, 0
      %v2784 = vsel %vm365, %v2708, 0
      %v2787 = vsel %vm365, %v2709, 0
      %v2790 = vsel %vm365, %v2710, 0
      %v2793 = vsel %vm365, %v2711, 0
      %v2796 = vsel %vm365, %v2712, 0
      %v2799 = vsel %vm365, %v2713, 0
      %v2802 = vsel %vm365, %v2714, 0
      %v2805 = vsel %vm365, %v2715, 0
      %v2808 = vsel %vm365, %v2716, 0
      %v2811 = vsel %vm365, %v2717, 0
      %v2814 = vsel %vm365, %v2718, 0
      %v2816 = vsel %vm365, %v2737, 0
      %v2818 = vsel %vm365, %v2739, 0
      %v2820 = vsel %vm365, %v2741, 0
      %v2822 = vsel %vm365, %v2743, 0
      %v2824 = vsel %vm365, %v2745, 0
      %v2826 = vsel %vm365, %v2747, 0
      %v2828 = vsel %vm365, %v2749, 0
      %v2830 = vsel %vm365, %v2751, 0
      %v2832 = vsel %vm365, %v2753, 0
      %v2834 = vsel %vm365, %v2755, 0
      %v2836 = vsel %vm365, %v2757, 0
      %v2838 = vsel %vm365, %v2759, 0
      %v2840 = vsel %vm365, %v2761, 0
      %v2842 = vsel %vm365, %v2763, 0
      %v2844 = vsel %vm365, %v2765, 0
      %v2846 = vsel %vm365, %v2767, 0
      %2848 = vmatpush.xpose.msra.mxu0 %v2846
      %2849 = vmatpush.xpose.msra.mxu0 %v2844
      %2850 = vmatpush.xpose.msra.mxu0 %v2842
      %2851 = vmatpush.xpose.msra.mxu0 %v2840
      %2852 = vmatpush.xpose.msra.mxu0 %v2838
      %2853 = vmatpush.xpose.msra.mxu0 %v2836
      %2854 = vmatpush.xpose.msra.mxu0 %v2834
      %2855 = vmatpush.xpose.msra.mxu0 %v2832
      %2856 = vmatpush.xpose.msra.mxu0 %v2830
      %2857 = vmatpush.xpose.msra.mxu0 %v2828
      %2858 = vmatpush.xpose.msra.mxu0 %v2826
      %2859 = vmatpush.xpose.msra.mxu0 %v2824
      %2860 = vmatpush.xpose.msra.mxu0 %v2822
      %2861 = vmatpush.xpose.msra.mxu0 %v2820
      %2862 = vmatpush.xpose.msra.mxu0 %v2818
      %2863 = vmatpush.xpose.msra.mxu0 %v2816
      %2864 = vmatmul.f32.gmra.mxu0 %v2769
      %v2865 = vpop.f32.mrf.mxu0
      %v2866 = vadd.f32 %v2720, %v2865
      %2867 = vmatmul.f32.gmra.mxu0 %v2772
      %v2868 = vpop.f32.mrf.mxu0
      %v2869 = vadd.f32 %v2721, %v2868
      %2870 = vmatmul.f32.gmra.mxu0 %v2775
      %v2871 = vpop.f32.mrf.mxu0
      %v2872 = vadd.f32 %v2722, %v2871
      %2873 = vmatmul.f32.gmra.mxu0 %v2778
      %v2874 = vpop.f32.mrf.mxu0
      %v2875 = vadd.f32 %v2723, %v2874
      %2876 = vmatmul.f32.gmra.mxu0 %v2781
      %v2877 = vpop.f32.mrf.mxu0
      %v2878 = vadd.f32 %v2724, %v2877
      %2879 = vmatmul.f32.gmra.mxu0 %v2784
      %v2880 = vpop.f32.mrf.mxu0
      %v2881 = vadd.f32 %v2725, %v2880
      %2882 = vmatmul.f32.gmra.mxu0 %v2787
      %v2883 = vpop.f32.mrf.mxu0
      %v2884 = vadd.f32 %v2726, %v2883
      %2885 = vmatmul.f32.gmra.mxu0 %v2790
      %v2886 = vpop.f32.mrf.mxu0
      %v2887 = vadd.f32 %v2727, %v2886
      %2888 = vmatmul.f32.gmra.mxu0 %v2793
      %v2889 = vpop.f32.mrf.mxu0
      %v2890 = vadd.f32 %v2728, %v2889
      %2891 = vmatmul.f32.gmra.mxu0 %v2796
      %v2892 = vpop.f32.mrf.mxu0
      %v2893 = vadd.f32 %v2729, %v2892
      %2894 = vmatmul.f32.gmra.mxu0 %v2799
      %v2895 = vpop.f32.mrf.mxu0
      %v2896 = vadd.f32 %v2730, %v2895
      %2897 = vmatmul.f32.gmra.mxu0 %v2802
      %v2898 = vpop.f32.mrf.mxu0
      %v2899 = vadd.f32 %v2731, %v2898
      %2900 = vmatmul.f32.gmra.mxu0 %v2805
      %v2901 = vpop.f32.mrf.mxu0
      %v2902 = vadd.f32 %v2732, %v2901
      %2903 = vmatmul.f32.gmra.mxu0 %v2808
      %v2904 = vpop.f32.mrf.mxu0
      %v2905 = vadd.f32 %v2733, %v2904
      %2906 = vmatmul.f32.gmra.mxu0 %v2811
      %v2907 = vpop.f32.mrf.mxu0
      %v2908 = vadd.f32 %v2734, %v2907
      %2909 = vmatmul.f32.gmra.mxu0 %v2814
      %v2910 = vpop.f32.mrf.mxu0
      %v2911 = vadd.f32 %v2735, %v2910
      %2912 = vdwg.mxu0
      %2913 = vmax.xlane.f32.xlu0 %v2866
      %v2914 = vpop.xlane.xlu0 %2913
      %2915 = vmax.xlane.f32.xlu0 %v2869
      %v2916 = vpop.xlane.xlu0 %2915
      %2917 = vmax.xlane.f32.xlu0 %v2872
      %v2918 = vpop.xlane.xlu0 %2917
      %2919 = vmax.xlane.f32.xlu0 %v2875
      %v2920 = vpop.xlane.xlu0 %2919
      %2921 = vmax.xlane.f32.xlu0 %v2878
      %v2922 = vpop.xlane.xlu0 %2921
      %2923 = vmax.xlane.f32.xlu0 %v2881
      %v2924 = vpop.xlane.xlu0 %2923
      %2925 = vmax.xlane.f32.xlu0 %v2884
      %v2926 = vpop.xlane.xlu0 %2925
      %2927 = vmax.xlane.f32.xlu0 %v2887
      %v2928 = vpop.xlane.xlu0 %2927
      %2929 = vmax.xlane.f32.xlu0 %v2890
      %v2930 = vpop.xlane.xlu0 %2929
      %2931 = vmax.xlane.f32.xlu0 %v2893
      %v2932 = vpop.xlane.xlu0 %2931
      %2933 = vmax.xlane.f32.xlu0 %v2896
      %v2934 = vpop.xlane.xlu0 %2933
      %2935 = vmax.xlane.f32.xlu0 %v2899
      %v2936 = vpop.xlane.xlu0 %2935
      %2937 = vmax.xlane.f32.xlu0 %v2902
      %v2938 = vpop.xlane.xlu0 %2937
      %2939 = vmax.xlane.f32.xlu0 %v2905
      %v2940 = vpop.xlane.xlu0 %2939
      %2941 = vmax.xlane.f32.xlu0 %v2908
      %v2942 = vpop.xlane.xlu0 %2941
      %2943 = vmax.xlane.f32.xlu0 %v2911
      %v2944 = vpop.xlane.xlu0 %2943
      %v2945 = vsub.f32 %v2866, %v2914
      %v2946 = vsub.f32 %v2869, %v2916
      %v2947 = vsub.f32 %v2872, %v2918
      %v2948 = vsub.f32 %v2875, %v2920
      %v2949 = vsub.f32 %v2878, %v2922
      %v2950 = vsub.f32 %v2881, %v2924
      %v2951 = vsub.f32 %v2884, %v2926
      %v2952 = vsub.f32 %v2887, %v2928
      %v2953 = vsub.f32 %v2890, %v2930
      %v2954 = vsub.f32 %v2893, %v2932
      %v2955 = vsub.f32 %v2896, %v2934
      %v2956 = vsub.f32 %v2899, %v2936
      %v2957 = vsub.f32 %v2902, %v2938
      %v2958 = vsub.f32 %v2905, %v2940
      %v2959 = vsub.f32 %v2908, %v2942
      %v2960 = vsub.f32 %v2911, %v2944
      %v2961 = vmul.f32 %v2945, 1.442695
      %v2962 = vpow.pop %v2961
      %v2963 = vmul.f32 %v2946, 1.442695
      %v2964 = vpow.pop %v2963
      %v2965 = vmul.f32 %v2947, 1.442695
      %v2966 = vpow.pop %v2965
      %v2967 = vmul.f32 %v2948, 1.442695
      %v2968 = vpow.pop %v2967
      %v2969 = vmul.f32 %v2949, 1.442695
      %v2970 = vpow.pop %v2969
      %v2971 = vmul.f32 %v2950, 1.442695
      %v2972 = vpow.pop %v2971
      %v2973 = vmul.f32 %v2951, 1.442695
      %v2974 = vpow.pop %v2973
      %v2975 = vmul.f32 %v2952, 1.442695
      %v2976 = vpow.pop %v2975
      %v2977 = vmul.f32 %v2953, 1.442695
      %v2978 = vpow.pop %v2977
      %v2979 = vmul.f32 %v2954, 1.442695
      %v2980 = vpow.pop %v2979
      %v2981 = vmul.f32 %v2955, 1.442695
      %v2982 = vpow.pop %v2981
      %v2983 = vmul.f32 %v2956, 1.442695
      %v2984 = vpow.pop %v2983
      %v2985 = vmul.f32 %v2957, 1.442695
      %v2986 = vpow.pop %v2985
      %v2987 = vmul.f32 %v2958, 1.442695
      %v2988 = vpow.pop %v2987
      %v2989 = vmul.f32 %v2959, 1.442695
      %v2990 = vpow.pop %v2989
      %v2991 = vmul.f32 %v2960, 1.442695
      %v2992 = vpow.pop %v2991
      %2993 = vadd.xlane.f32.xlu0 %v2962
      %v2994 = vpop.xlane.xlu0 %2993
      %2995 = vadd.xlane.f32.xlu0 %v2964
      %v2996 = vpop.xlane.xlu0 %2995
      %2997 = vadd.xlane.f32.xlu0 %v2966
      %v2998 = vpop.xlane.xlu0 %2997
      %2999 = vadd.xlane.f32.xlu0 %v2968
      %v3000 = vpop.xlane.xlu0 %2999
      %3001 = vadd.xlane.f32.xlu0 %v2970
      %v3002 = vpop.xlane.xlu0 %3001
      %3003 = vadd.xlane.f32.xlu0 %v2972
      %v3004 = vpop.xlane.xlu0 %3003
      %3005 = vadd.xlane.f32.xlu0 %v2974
      %v3006 = vpop.xlane.xlu0 %3005
      %3007 = vadd.xlane.f32.xlu0 %v2976
      %v3008 = vpop.xlane.xlu0 %3007
      %3009 = vadd.xlane.f32.xlu0 %v2978
      %v3010 = vpop.xlane.xlu0 %3009
      %3011 = vadd.xlane.f32.xlu0 %v2980
      %v3012 = vpop.xlane.xlu0 %3011
      %3013 = vadd.xlane.f32.xlu0 %v2982
      %v3014 = vpop.xlane.xlu0 %3013
      %3015 = vadd.xlane.f32.xlu0 %v2984
      %v3016 = vpop.xlane.xlu0 %3015
      %3017 = vadd.xlane.f32.xlu0 %v2986
      %v3018 = vpop.xlane.xlu0 %3017
      %3019 = vadd.xlane.f32.xlu0 %v2988
      %v3020 = vpop.xlane.xlu0 %3019
      %3021 = vadd.xlane.f32.xlu0 %v2990
      %v3022 = vpop.xlane.xlu0 %3021
      %3023 = vadd.xlane.f32.xlu0 %v2992
      %v3024 = vpop.xlane.xlu0 %3023
      %v3025 = vrcp.pop %v2994
      %v3026 = vrcp.pop %v2996
      %v3027 = vrcp.pop %v2998
      %v3028 = vrcp.pop %v3000
      %v3029 = vrcp.pop %v3002
      %v3030 = vrcp.pop %v3004
      %v3031 = vrcp.pop %v3006
      %v3032 = vrcp.pop %v3008
      %v3033 = vrcp.pop %v3010
      %v3034 = vrcp.pop %v3012
      %v3035 = vrcp.pop %v3014
      %v3036 = vrcp.pop %v3016
      %v3037 = vrcp.pop %v3018
      %v3038 = vrcp.pop %v3020
      %v3039 = vrcp.pop %v3022
      %v3040 = vrcp.pop %v3024
      %v3041 = vmul.f32 %v2962, %v3025
      %v3042 = vmul.f32 %v2964, %v3026
      %v3043 = vmul.f32 %v2966, %v3027
      %v3044 = vmul.f32 %v2968, %v3028
      %v3045 = vmul.f32 %v2970, %v3029
      %v3046 = vmul.f32 %v2972, %v3030
      %v3047 = vmul.f32 %v2974, %v3031
      %v3048 = vmul.f32 %v2976, %v3032
      %v3049 = vmul.f32 %v2978, %v3033
      %v3050 = vmul.f32 %v2980, %v3034
      %v3051 = vmul.f32 %v2982, %v3035
      %v3052 = vmul.f32 %v2984, %v3036
      %v3053 = vmul.f32 %v2986, %v3037
      %v3054 = vmul.f32 %v2988, %v3038
      %v3055 = vmul.f32 %v2990, %v3039
      %v3056 = vmul.f32 %v2992, %v3040
      %3057 = vrot.lane.b32.xlu0 %v317, 80
      %v3058 = vpop.permute.xlu0 %3057
      %3059 = vrot.lane.b32.xlu0 %v318, 80
      %v3060 = vpop.permute.xlu0 %3059
      %3061 = vrot.lane.b32.xlu0 %v319, 80
      %v3062 = vpop.permute.xlu0 %3061
      %3063 = vrot.lane.b32.xlu0 %v320, 80
      %v3064 = vpop.permute.xlu0 %3063
      %3065 = vrot.lane.b32.xlu0 %v321, 80
      %v3066 = vpop.permute.xlu0 %3065
      %3067 = vrot.lane.b32.xlu0 %v322, 80
      %v3068 = vpop.permute.xlu0 %3067
      %3069 = vrot.lane.b32.xlu0 %v323, 80
      %v3070 = vpop.permute.xlu0 %3069
      %3071 = vrot.lane.b32.xlu0 %v324, 80
      %v3072 = vpop.permute.xlu0 %3071
      %3073 = vrot.lane.b32.xlu0 %v325, 80
      %v3074 = vpop.permute.xlu0 %3073
      %3075 = vrot.lane.b32.xlu0 %v326, 80
      %v3076 = vpop.permute.xlu0 %3075
      %3077 = vrot.lane.b32.xlu0 %v327, 80
      %v3078 = vpop.permute.xlu0 %3077
      %3079 = vrot.lane.b32.xlu0 %v328, 80
      %v3080 = vpop.permute.xlu0 %3079
      %3081 = vrot.lane.b32.xlu0 %v329, 80
      %v3082 = vpop.permute.xlu0 %3081
      %3083 = vrot.lane.b32.xlu0 %v330, 80
      %v3084 = vpop.permute.xlu0 %3083
      %3085 = vrot.lane.b32.xlu0 %v331, 80
      %v3086 = vpop.permute.xlu0 %3085
      %3087 = vrot.lane.b32.xlu0 %v332, 80
      %v3088 = vpop.permute.xlu0 %3087
      %3105 = vmatpush.msra.mxu0 %v3088
      %3106 = vmatpush.msra.mxu0 %v3086
      %3107 = vmatpush.msra.mxu0 %v3084
      %3108 = vmatpush.msra.mxu0 %v3082
      %3109 = vmatpush.msra.mxu0 %v3080
      %3110 = vmatpush.msra.mxu0 %v3078
      %3111 = vmatpush.msra.mxu0 %v3076
      %3112 = vmatpush.msra.mxu0 %v3074
      %3113 = vmatpush.msra.mxu0 %v3072
      %3114 = vmatpush.msra.mxu0 %v3070
      %3115 = vmatpush.msra.mxu0 %v3068
      %3116 = vmatpush.msra.mxu0 %v3066
      %3117 = vmatpush.msra.mxu0 %v3064
      %3118 = vmatpush.msra.mxu0 %v3062
      %3119 = vmatpush.msra.mxu0 %v3060
      %3120 = vmatpush.msra.mxu0 %v3058
      %3121 = vmatmul.f32.gmra.mxu0 %v3041
      %v3122 = vpop.f32.mrf.mxu0
      %v3123 = vadd.f32 0.0, %v3122
      %3124 = vmatmul.f32.gmra.mxu0 %v3042
      %v3125 = vpop.f32.mrf.mxu0
      %v3126 = vadd.f32 0.0, %v3125
      %3127 = vmatmul.f32.gmra.mxu0 %v3043
      %v3128 = vpop.f32.mrf.mxu0
      %v3129 = vadd.f32 0.0, %v3128
      %3130 = vmatmul.f32.gmra.mxu0 %v3044
      %v3131 = vpop.f32.mrf.mxu0
      %v3132 = vadd.f32 0.0, %v3131
      %3133 = vmatmul.f32.gmra.mxu0 %v3045
      %v3134 = vpop.f32.mrf.mxu0
      %v3135 = vadd.f32 0.0, %v3134
      %3136 = vmatmul.f32.gmra.mxu0 %v3046
      %v3137 = vpop.f32.mrf.mxu0
      %v3138 = vadd.f32 0.0, %v3137
      %3139 = vmatmul.f32.gmra.mxu0 %v3047
      %v3140 = vpop.f32.mrf.mxu0
      %v3141 = vadd.f32 0.0, %v3140
      %3142 = vmatmul.f32.gmra.mxu0 %v3048
      %v3143 = vpop.f32.mrf.mxu0
      %v3144 = vadd.f32 0.0, %v3143
      %3145 = vmatmul.f32.gmra.mxu0 %v3049
      %v3146 = vpop.f32.mrf.mxu0
      %v3147 = vadd.f32 0.0, %v3146
      %3148 = vmatmul.f32.gmra.mxu0 %v3050
      %v3149 = vpop.f32.mrf.mxu0
      %v3150 = vadd.f32 0.0, %v3149
      %3151 = vmatmul.f32.gmra.mxu0 %v3051
      %v3152 = vpop.f32.mrf.mxu0
      %v3153 = vadd.f32 0.0, %v3152
      %3154 = vmatmul.f32.gmra.mxu0 %v3052
      %v3155 = vpop.f32.mrf.mxu0
      %v3156 = vadd.f32 0.0, %v3155
      %3157 = vmatmul.f32.gmra.mxu0 %v3053
      %v3158 = vpop.f32.mrf.mxu0
      %v3159 = vadd.f32 0.0, %v3158
      %3160 = vmatmul.f32.gmra.mxu0 %v3054
      %v3161 = vpop.f32.mrf.mxu0
      %v3162 = vadd.f32 0.0, %v3161
      %3163 = vmatmul.f32.gmra.mxu0 %v3055
      %v3164 = vpop.f32.mrf.mxu0
      %v3165 = vadd.f32 0.0, %v3164
      %3166 = vmatmul.f32.gmra.mxu0 %v3056
      %v3167 = vpop.f32.mrf.mxu0
      %v3168 = vadd.f32 0.0, %v3167
      %3169 = vdwg.mxu0
      %3170 = vrot.lane.b32.xlu0 %v736, 80
      %v3171 = vpop.permute.xlu0 %3170
      %3172 = vrot.lane.b32.xlu0 %v737, 80
      %v3173 = vpop.permute.xlu0 %3172
      %3174 = vrot.lane.b32.xlu0 %v738, 80
      %v3175 = vpop.permute.xlu0 %3174
      %3176 = vrot.lane.b32.xlu0 %v739, 80
      %v3177 = vpop.permute.xlu0 %3176
      %3178 = vrot.lane.b32.xlu0 %v740, 80
      %v3179 = vpop.permute.xlu0 %3178
      %3180 = vrot.lane.b32.xlu0 %v741, 80
      %v3181 = vpop.permute.xlu0 %3180
      %3182 = vrot.lane.b32.xlu0 %v742, 80
      %v3183 = vpop.permute.xlu0 %3182
      %3184 = vrot.lane.b32.xlu0 %v743, 80
      %v3185 = vpop.permute.xlu0 %3184
      %3186 = vrot.lane.b32.xlu0 %v744, 80
      %v3187 = vpop.permute.xlu0 %3186
      %3188 = vrot.lane.b32.xlu0 %v745, 80
      %v3189 = vpop.permute.xlu0 %3188
      %3190 = vrot.lane.b32.xlu0 %v746, 80
      %v3191 = vpop.permute.xlu0 %3190
      %3192 = vrot.lane.b32.xlu0 %v747, 80
      %v3193 = vpop.permute.xlu0 %3192
      %3194 = vrot.lane.b32.xlu0 %v748, 80
      %v3195 = vpop.permute.xlu0 %3194
      %3196 = vrot.lane.b32.xlu0 %v749, 80
      %v3197 = vpop.permute.xlu0 %3196
      %3198 = vrot.lane.b32.xlu0 %v750, 80
      %v3199 = vpop.permute.xlu0 %3198
      %3200 = vrot.lane.b32.xlu0 %v751, 80
      %v3201 = vpop.permute.xlu0 %3200
      %v3202 = vsel %vm365, %v3171, 0
      %v3204 = vsel %vm365, %v3173, 0
      %v3206 = vsel %vm365, %v3175, 0
      %v3208 = vsel %vm365, %v3177, 0
      %v3210 = vsel %vm365, %v3179, 0
      %v3212 = vsel %vm365, %v3181, 0
      %v3214 = vsel %vm365, %v3183, 0
      %v3216 = vsel %vm365, %v3185, 0
      %v3218 = vsel %vm365, %v3187, 0
      %v3220 = vsel %vm365, %v3189, 0
      %v3222 = vsel %vm365, %v3191, 0
      %v3224 = vsel %vm365, %v3193, 0
      %v3226 = vsel %vm365, %v3195, 0
      %v3228 = vsel %vm365, %v3197, 0
      %v3230 = vsel %vm365, %v3199, 0
      %v3232 = vsel %vm365, %v3201, 0
      %3234 = vmatpush.xpose.msra.mxu0 %v2814
      %3235 = vmatpush.xpose.msra.mxu0 %v2811
      %3236 = vmatpush.xpose.msra.mxu0 %v2808
      %3237 = vmatpush.xpose.msra.mxu0 %v2805
      %3238 = vmatpush.xpose.msra.mxu0 %v2802
      %3239 = vmatpush.xpose.msra.mxu0 %v2799
      %3240 = vmatpush.xpose.msra.mxu0 %v2796
      %3241 = vmatpush.xpose.msra.mxu0 %v2793
      %3242 = vmatpush.xpose.msra.mxu0 %v2790
      %3243 = vmatpush.xpose.msra.mxu0 %v2787
      %3244 = vmatpush.xpose.msra.mxu0 %v2784
      %3245 = vmatpush.xpose.msra.mxu0 %v2781
      %3246 = vmatpush.xpose.msra.mxu0 %v2778
      %3247 = vmatpush.xpose.msra.mxu0 %v2775
      %3248 = vmatpush.xpose.msra.mxu0 %v2772
      %3249 = vmatpush.xpose.msra.mxu0 %v2769
      %3250 = vmatmul.f32.gmra.mxu0 %v3202
      %v3251 = vpop.f32.mrf.mxu0
      %v3252 = vadd.f32 %v2720, %v3251
      %3253 = vmatmul.f32.gmra.mxu0 %v3204
      %v3254 = vpop.f32.mrf.mxu0
      %v3255 = vadd.f32 %v2721, %v3254
      %3256 = vmatmul.f32.gmra.mxu0 %v3206
      %v3257 = vpop.f32.mrf.mxu0
      %v3258 = vadd.f32 %v2722, %v3257
      %3259 = vmatmul.f32.gmra.mxu0 %v3208
      %v3260 = vpop.f32.mrf.mxu0
      %v3261 = vadd.f32 %v2723, %v3260
      %3262 = vmatmul.f32.gmra.mxu0 %v3210
      %v3263 = vpop.f32.mrf.mxu0
      %v3264 = vadd.f32 %v2724, %v3263
      %3265 = vmatmul.f32.gmra.mxu0 %v3212
      %v3266 = vpop.f32.mrf.mxu0
      %v3267 = vadd.f32 %v2725, %v3266
      %3268 = vmatmul.f32.gmra.mxu0 %v3214
      %v3269 = vpop.f32.mrf.mxu0
      %v3270 = vadd.f32 %v2726, %v3269
      %3271 = vmatmul.f32.gmra.mxu0 %v3216
      %v3272 = vpop.f32.mrf.mxu0
      %v3273 = vadd.f32 %v2727, %v3272
      %3274 = vmatmul.f32.gmra.mxu0 %v3218
      %v3275 = vpop.f32.mrf.mxu0
      %v3276 = vadd.f32 %v2728, %v3275
      %3277 = vmatmul.f32.gmra.mxu0 %v3220
      %v3278 = vpop.f32.mrf.mxu0
      %v3279 = vadd.f32 %v2729, %v3278
      %3280 = vmatmul.f32.gmra.mxu0 %v3222
      %v3281 = vpop.f32.mrf.mxu0
      %v3282 = vadd.f32 %v2730, %v3281
      %3283 = vmatmul.f32.gmra.mxu0 %v3224
      %v3284 = vpop.f32.mrf.mxu0
      %v3285 = vadd.f32 %v2731, %v3284
      %3286 = vmatmul.f32.gmra.mxu0 %v3226
      %v3287 = vpop.f32.mrf.mxu0
      %v3288 = vadd.f32 %v2732, %v3287
      %3289 = vmatmul.f32.gmra.mxu0 %v3228
      %v3290 = vpop.f32.mrf.mxu0
      %v3291 = vadd.f32 %v2733, %v3290
      %3292 = vmatmul.f32.gmra.mxu0 %v3230
      %v3293 = vpop.f32.mrf.mxu0
      %v3294 = vadd.f32 %v2734, %v3293
      %3295 = vmatmul.f32.gmra.mxu0 %v3232
      %v3296 = vpop.f32.mrf.mxu0
      %v3297 = vadd.f32 %v2735, %v3296
      %3298 = vdwg.mxu0
      %3299 = vmax.xlane.f32.xlu0 %v3252
      %v3300 = vpop.xlane.xlu0 %3299
      %3301 = vmax.xlane.f32.xlu0 %v3255
      %v3302 = vpop.xlane.xlu0 %3301
      %3303 = vmax.xlane.f32.xlu0 %v3258
      %v3304 = vpop.xlane.xlu0 %3303
      %3305 = vmax.xlane.f32.xlu0 %v3261
      %v3306 = vpop.xlane.xlu0 %3305
      %3307 = vmax.xlane.f32.xlu0 %v3264
      %v3308 = vpop.xlane.xlu0 %3307
      %3309 = vmax.xlane.f32.xlu0 %v3267
      %v3310 = vpop.xlane.xlu0 %3309
      %3311 = vmax.xlane.f32.xlu0 %v3270
      %v3312 = vpop.xlane.xlu0 %3311
      %3313 = vmax.xlane.f32.xlu0 %v3273
      %v3314 = vpop.xlane.xlu0 %3313
      %3315 = vmax.xlane.f32.xlu0 %v3276
      %v3316 = vpop.xlane.xlu0 %3315
      %3317 = vmax.xlane.f32.xlu0 %v3279
      %v3318 = vpop.xlane.xlu0 %3317
      %3319 = vmax.xlane.f32.xlu0 %v3282
      %v3320 = vpop.xlane.xlu0 %3319
      %3321 = vmax.xlane.f32.xlu0 %v3285
      %v3322 = vpop.xlane.xlu0 %3321
      %3323 = vmax.xlane.f32.xlu0 %v3288
      %v3324 = vpop.xlane.xlu0 %3323
      %3325 = vmax.xlane.f32.xlu0 %v3291
      %v3326 = vpop.xlane.xlu0 %3325
      %3327 = vmax.xlane.f32.xlu0 %v3294
      %v3328 = vpop.xlane.xlu0 %3327
      %3329 = vmax.xlane.f32.xlu0 %v3297
      %v3330 = vpop.xlane.xlu0 %3329
      %v3331 = vsub.f32 %v3252, %v3300
      %v3332 = vsub.f32 %v3255, %v3302
      %v3333 = vsub.f32 %v3258, %v3304
      %v3334 = vsub.f32 %v3261, %v3306
      %v3335 = vsub.f32 %v3264, %v3308
      %v3336 = vsub.f32 %v3267, %v3310
      %v3337 = vsub.f32 %v3270, %v3312
      %v3338 = vsub.f32 %v3273, %v3314
      %v3339 = vsub.f32 %v3276, %v3316
      %v3340 = vsub.f32 %v3279, %v3318
      %v3341 = vsub.f32 %v3282, %v3320
      %v3342 = vsub.f32 %v3285, %v3322
      %v3343 = vsub.f32 %v3288, %v3324
      %v3344 = vsub.f32 %v3291, %v3326
      %v3345 = vsub.f32 %v3294, %v3328
      %v3346 = vsub.f32 %v3297, %v3330
      %v3347 = vmul.f32 %v3331, 1.442695
      %v3348 = vpow.pop %v3347
      %v3349 = vmul.f32 %v3332, 1.442695
      %v3350 = vpow.pop %v3349
      %v3351 = vmul.f32 %v3333, 1.442695
      %v3352 = vpow.pop %v3351
      %v3353 = vmul.f32 %v3334, 1.442695
      %v3354 = vpow.pop %v3353
      %v3355 = vmul.f32 %v3335, 1.442695
      %v3356 = vpow.pop %v3355
      %v3357 = vmul.f32 %v3336, 1.442695
      %v3358 = vpow.pop %v3357
      %v3359 = vmul.f32 %v3337, 1.442695
      %v3360 = vpow.pop %v3359
      %v3361 = vmul.f32 %v3338, 1.442695
      %v3362 = vpow.pop %v3361
      %v3363 = vmul.f32 %v3339, 1.442695
      %v3364 = vpow.pop %v3363
      %v3365 = vmul.f32 %v3340, 1.442695
      %v3366 = vpow.pop %v3365
      %v3367 = vmul.f32 %v3341, 1.442695
      %v3368 = vpow.pop %v3367
      %v3369 = vmul.f32 %v3342, 1.442695
      %v3370 = vpow.pop %v3369
      %v3371 = vmul.f32 %v3343, 1.442695
      %v3372 = vpow.pop %v3371
      %v3373 = vmul.f32 %v3344, 1.442695
      %v3374 = vpow.pop %v3373
      %v3375 = vmul.f32 %v3345, 1.442695
      %v3376 = vpow.pop %v3375
      %v3377 = vmul.f32 %v3346, 1.442695
      %v3378 = vpow.pop %v3377
      %3379 = vadd.xlane.f32.xlu0 %v3348
      %v3380 = vpop.xlane.xlu0 %3379
      %3381 = vadd.xlane.f32.xlu0 %v3350
      %v3382 = vpop.xlane.xlu0 %3381
      %3383 = vadd.xlane.f32.xlu0 %v3352
      %v3384 = vpop.xlane.xlu0 %3383
      %3385 = vadd.xlane.f32.xlu0 %v3354
      %v3386 = vpop.xlane.xlu0 %3385
      %3387 = vadd.xlane.f32.xlu0 %v3356
      %v3388 = vpop.xlane.xlu0 %3387
      %3389 = vadd.xlane.f32.xlu0 %v3358
      %v3390 = vpop.xlane.xlu0 %3389
      %3391 = vadd.xlane.f32.xlu0 %v3360
      %v3392 = vpop.xlane.xlu0 %3391
      %3393 = vadd.xlane.f32.xlu0 %v3362
      %v3394 = vpop.xlane.xlu0 %3393
      %3395 = vadd.xlane.f32.xlu0 %v3364
      %v3396 = vpop.xlane.xlu0 %3395
      %3397 = vadd.xlane.f32.xlu0 %v3366
      %v3398 = vpop.xlane.xlu0 %3397
      %3399 = vadd.xlane.f32.xlu0 %v3368
      %v3400 = vpop.xlane.xlu0 %3399
      %3401 = vadd.xlane.f32.xlu0 %v3370
      %v3402 = vpop.xlane.xlu0 %3401
      %3403 = vadd.xlane.f32.xlu0 %v3372
      %v3404 = vpop.xlane.xlu0 %3403
      %3405 = vadd.xlane.f32.xlu0 %v3374
      %v3406 = vpop.xlane.xlu0 %3405
      %3407 = vadd.xlane.f32.xlu0 %v3376
      %v3408 = vpop.xlane.xlu0 %3407
      %3409 = vadd.xlane.f32.xlu0 %v3378
      %v3410 = vpop.xlane.xlu0 %3409
      %v3411 = vrcp.pop %v3380
      %v3412 = vrcp.pop %v3382
      %v3413 = vrcp.pop %v3384
      %v3414 = vrcp.pop %v3386
      %v3415 = vrcp.pop %v3388
      %v3416 = vrcp.pop %v3390
      %v3417 = vrcp.pop %v3392
      %v3418 = vrcp.pop %v3394
      %v3419 = vrcp.pop %v3396
      %v3420 = vrcp.pop %v3398
      %v3421 = vrcp.pop %v3400
      %v3422 = vrcp.pop %v3402
      %v3423 = vrcp.pop %v3404
      %v3424 = vrcp.pop %v3406
      %v3425 = vrcp.pop %v3408
      %v3426 = vrcp.pop %v3410
      %v3427 = vmul.f32 %v3348, %v3411
      %v3428 = vmul.f32 %v3350, %v3412
      %v3429 = vmul.f32 %v3352, %v3413
      %v3430 = vmul.f32 %v3354, %v3414
      %v3431 = vmul.f32 %v3356, %v3415
      %v3432 = vmul.f32 %v3358, %v3416
      %v3433 = vmul.f32 %v3360, %v3417
      %v3434 = vmul.f32 %v3362, %v3418
      %v3435 = vmul.f32 %v3364, %v3419
      %v3436 = vmul.f32 %v3366, %v3420
      %v3437 = vmul.f32 %v3368, %v3421
      %v3438 = vmul.f32 %v3370, %v3422
      %v3439 = vmul.f32 %v3372, %v3423
      %v3440 = vmul.f32 %v3374, %v3424
      %v3441 = vmul.f32 %v3376, %v3425
      %v3442 = vmul.f32 %v3378, %v3426
      %3443 = vmatpush.msra.mxu0 %v3168
      %3444 = vmatpush.msra.mxu0 %v3165
      %3445 = vmatpush.msra.mxu0 %v3162
      %3446 = vmatpush.msra.mxu0 %v3159
      %3447 = vmatpush.msra.mxu0 %v3156
      %3448 = vmatpush.msra.mxu0 %v3153
      %3449 = vmatpush.msra.mxu0 %v3150
      %3450 = vmatpush.msra.mxu0 %v3147
      %3451 = vmatpush.msra.mxu0 %v3144
      %3452 = vmatpush.msra.mxu0 %v3141
      %3453 = vmatpush.msra.mxu0 %v3138
      %3454 = vmatpush.msra.mxu0 %v3135
      %3455 = vmatpush.msra.mxu0 %v3132
      %3456 = vmatpush.msra.mxu0 %v3129
      %3457 = vmatpush.msra.mxu0 %v3126
      %3458 = vmatpush.msra.mxu0 %v3123
      %3459 = vmatmul.f32.gmra.mxu0 %v3427
      %v3460 = vpop.f32.mrf.mxu0
      %v3461 = vadd.f32 0.0, %v3460
      %3462 = vmatmul.f32.gmra.mxu0 %v3428
      %v3463 = vpop.f32.mrf.mxu0
      %v3464 = vadd.f32 0.0, %v3463
      %3465 = vmatmul.f32.gmra.mxu0 %v3429
      %v3466 = vpop.f32.mrf.mxu0
      %v3467 = vadd.f32 0.0, %v3466
      %3468 = vmatmul.f32.gmra.mxu0 %v3430
      %v3469 = vpop.f32.mrf.mxu0
      %v3470 = vadd.f32 0.0, %v3469
      %3471 = vmatmul.f32.gmra.mxu0 %v3431
      %v3472 = vpop.f32.mrf.mxu0
      %v3473 = vadd.f32 0.0, %v3472
      %3474 = vmatmul.f32.gmra.mxu0 %v3432
      %v3475 = vpop.f32.mrf.mxu0
      %v3476 = vadd.f32 0.0, %v3475
      %3477 = vmatmul.f32.gmra.mxu0 %v3433
      %v3478 = vpop.f32.mrf.mxu0
      %v3479 = vadd.f32 0.0, %v3478
      %3480 = vmatmul.f32.gmra.mxu0 %v3434
      %v3481 = vpop.f32.mrf.mxu0
      %v3482 = vadd.f32 0.0, %v3481
      %3483 = vmatmul.f32.gmra.mxu0 %v3435
      %v3484 = vpop.f32.mrf.mxu0
      %v3485 = vadd.f32 0.0, %v3484
      %3486 = vmatmul.f32.gmra.mxu0 %v3436
      %v3487 = vpop.f32.mrf.mxu0
      %v3488 = vadd.f32 0.0, %v3487
      %3489 = vmatmul.f32.gmra.mxu0 %v3437
      %v3490 = vpop.f32.mrf.mxu0
      %v3491 = vadd.f32 0.0, %v3490
      %3492 = vmatmul.f32.gmra.mxu0 %v3438
      %v3493 = vpop.f32.mrf.mxu0
      %v3494 = vadd.f32 0.0, %v3493
      %3495 = vmatmul.f32.gmra.mxu0 %v3439
      %v3496 = vpop.f32.mrf.mxu0
      %v3497 = vadd.f32 0.0, %v3496
      %3498 = vmatmul.f32.gmra.mxu0 %v3440
      %v3499 = vpop.f32.mrf.mxu0
      %v3500 = vadd.f32 0.0, %v3499
      %3501 = vmatmul.f32.gmra.mxu0 %v3441
      %v3502 = vpop.f32.mrf.mxu0
      %v3503 = vadd.f32 0.0, %v3502
      %3504 = vmatmul.f32.gmra.mxu0 %v3442
      %v3505 = vpop.f32.mrf.mxu0
      %v3506 = vadd.f32 0.0, %v3505
      %3507 = vdwg.mxu0
      %3524 = vrot.lane.b32.xlu0 %v1849, 16
      %v3525 = vpop.permute.xlu0 %3524
      %3526 = vrot.lane.b32.xlu0 %v1852, 16
      %v3527 = vpop.permute.xlu0 %3526
      %3528 = vrot.lane.b32.xlu0 %v1855, 16
      %v3529 = vpop.permute.xlu0 %3528
      %3530 = vrot.lane.b32.xlu0 %v1858, 16
      %v3531 = vpop.permute.xlu0 %3530
      %3532 = vrot.lane.b32.xlu0 %v1861, 16
      %v3533 = vpop.permute.xlu0 %3532
      %3534 = vrot.lane.b32.xlu0 %v1864, 16
      %v3535 = vpop.permute.xlu0 %3534
      %3536 = vrot.lane.b32.xlu0 %v1867, 16
      %v3537 = vpop.permute.xlu0 %3536
      %3538 = vrot.lane.b32.xlu0 %v1870, 16
      %v3539 = vpop.permute.xlu0 %3538
      %3540 = vrot.lane.b32.xlu0 %v1873, 16
      %v3541 = vpop.permute.xlu0 %3540
      %3542 = vrot.lane.b32.xlu0 %v1876, 16
      %v3543 = vpop.permute.xlu0 %3542
      %3544 = vrot.lane.b32.xlu0 %v1879, 16
      %v3545 = vpop.permute.xlu0 %3544
      %3546 = vrot.lane.b32.xlu0 %v1882, 16
      %v3547 = vpop.permute.xlu0 %3546
      %3548 = vrot.lane.b32.xlu0 %v1885, 16
      %v3549 = vpop.permute.xlu0 %3548
      %3550 = vrot.lane.b32.xlu0 %v1888, 16
      %v3551 = vpop.permute.xlu0 %3550
      %3552 = vrot.lane.b32.xlu0 %v1891, 16
      %v3553 = vpop.permute.xlu0 %3552
      %3554 = vrot.lane.b32.xlu0 %v1894, 16
      %v3555 = vpop.permute.xlu0 %3554
      %3588 = vrot.lane.b32.xlu0 %v2655, 32
      %v3589 = vpop.permute.xlu0 %3588
      %3590 = vrot.lane.b32.xlu0 %v2658, 32
      %v3591 = vpop.permute.xlu0 %3590
      %3592 = vrot.lane.b32.xlu0 %v2661, 32
      %v3593 = vpop.permute.xlu0 %3592
      %3594 = vrot.lane.b32.xlu0 %v2664, 32
      %v3595 = vpop.permute.xlu0 %3594
      %3596 = vrot.lane.b32.xlu0 %v2667, 32
      %v3597 = vpop.permute.xlu0 %3596
      %3598 = vrot.lane.b32.xlu0 %v2670, 32
      %v3599 = vpop.permute.xlu0 %3598
      %3600 = vrot.lane.b32.xlu0 %v2673, 32
      %v3601 = vpop.permute.xlu0 %3600
      %3602 = vrot.lane.b32.xlu0 %v2676, 32
      %v3603 = vpop.permute.xlu0 %3602
      %3604 = vrot.lane.b32.xlu0 %v2679, 32
      %v3605 = vpop.permute.xlu0 %3604
      %3606 = vrot.lane.b32.xlu0 %v2682, 32
      %v3607 = vpop.permute.xlu0 %3606
      %3608 = vrot.lane.b32.xlu0 %v2685, 32
      %v3609 = vpop.permute.xlu0 %3608
      %3610 = vrot.lane.b32.xlu0 %v2688, 32
      %v3611 = vpop.permute.xlu0 %3610
      %3612 = vrot.lane.b32.xlu0 %v2691, 32
      %v3613 = vpop.permute.xlu0 %3612
      %3614 = vrot.lane.b32.xlu0 %v2694, 32
      %v3615 = vpop.permute.xlu0 %3614
      %3616 = vrot.lane.b32.xlu0 %v2697, 32
      %v3617 = vpop.permute.xlu0 %3616
      %3618 = vrot.lane.b32.xlu0 %v2700, 32
      %v3619 = vpop.permute.xlu0 %3618
      %3652 = vrot.lane.b32.xlu0 %v3461, 48
      %v3653 = vpop.permute.xlu0 %3652
      %3654 = vrot.lane.b32.xlu0 %v3464, 48
      %v3655 = vpop.permute.xlu0 %3654
      %3656 = vrot.lane.b32.xlu0 %v3467, 48
      %v3657 = vpop.permute.xlu0 %3656
      %3658 = vrot.lane.b32.xlu0 %v3470, 48
      %v3659 = vpop.permute.xlu0 %3658
      %3660 = vrot.lane.b32.xlu0 %v3473, 48
      %v3661 = vpop.permute.xlu0 %3660
      %3662 = vrot.lane.b32.xlu0 %v3476, 48
      %v3663 = vpop.permute.xlu0 %3662
      %3664 = vrot.lane.b32.xlu0 %v3479, 48
      %v3665 = vpop.permute.xlu0 %3664
      %3666 = vrot.lane.b32.xlu0 %v3482, 48
      %v3667 = vpop.permute.xlu0 %3666
      %3668 = vrot.lane.b32.xlu0 %v3485, 48
      %v3669 = vpop.permute.xlu0 %3668
      %3670 = vrot.lane.b32.xlu0 %v3488, 48
      %v3671 = vpop.permute.xlu0 %3670
      %3672 = vrot.lane.b32.xlu0 %v3491, 48
      %v3673 = vpop.permute.xlu0 %3672
      %3674 = vrot.lane.b32.xlu0 %v3494, 48
      %v3675 = vpop.permute.xlu0 %3674
      %3676 = vrot.lane.b32.xlu0 %v3497, 48
      %v3677 = vpop.permute.xlu0 %3676
      %3678 = vrot.lane.b32.xlu0 %v3500, 48
      %v3679 = vpop.permute.xlu0 %3678
      %3680 = vrot.lane.b32.xlu0 %v3503, 48
      %v3681 = vpop.permute.xlu0 %3680
      %3682 = vrot.lane.b32.xlu0 %v3506, 48
      %v3683 = vpop.permute.xlu0 %3682
      %v3700 = vsel %vm365, %v1027, %v3525
      %v3701 = vsel %vm365, %v1030, %v3527
      %v3702 = vsel %vm365, %v1033, %v3529
      %v3703 = vsel %vm365, %v1036, %v3531
      %v3704 = vsel %vm365, %v1039, %v3533
      %v3705 = vsel %vm365, %v1042, %v3535
      %v3706 = vsel %vm365, %v1045, %v3537
      %v3707 = vsel %vm365, %v1048, %v3539
      %v3708 = vsel %vm365, %v1051, %v3541
      %v3709 = vsel %vm365, %v1054, %v3543
      %v3710 = vsel %vm365, %v1057, %v3545
      %v3711 = vsel %vm365, %v1060, %v3547
      %v3712 = vsel %vm365, %v1063, %v3549
      %v3713 = vsel %vm365, %v1066, %v3551
      %v3714 = vsel %vm365, %v1069, %v3553
      %v3715 = vsel %vm365, %v1072, %v3555
      %vm3716 = vcmask 261120
      %v3717 = vsel %vm3716, %v3700, %v3589
      %v3718 = vsel %vm3716, %v3701, %v3591
      %v3719 = vsel %vm3716, %v3702, %v3593
      %v3720 = vsel %vm3716, %v3703, %v3595
      %v3721 = vsel %vm3716, %v3704, %v3597
      %v3722 = vsel %vm3716, %v3705, %v3599
      %v3723 = vsel %vm3716, %v3706, %v3601
      %v3724 = vsel %vm3716, %v3707, %v3603
      %v3725 = vsel %vm3716, %v3708, %v3605
      %v3726 = vsel %vm3716, %v3709, %v3607
      %v3727 = vsel %vm3716, %v3710, %v3609
      %v3728 = vsel %vm3716, %v3711, %v3611
      %v3729 = vsel %vm3716, %v3712, %v3613
      %v3730 = vsel %vm3716, %v3713, %v3615
      %v3731 = vsel %vm3716, %v3714, %v3617
      %v3732 = vsel %vm3716, %v3715, %v3619
      %vm3733 = vcmask 392192
      %v3734 = vsel %vm3733, %v3717, %v3653
      %v3735 = vsel %vm3733, %v3718, %v3655
      %v3736 = vsel %vm3733, %v3719, %v3657
      %v3737 = vsel %vm3733, %v3720, %v3659
      %v3738 = vsel %vm3733, %v3721, %v3661
      %v3739 = vsel %vm3733, %v3722, %v3663
      %v3740 = vsel %vm3733, %v3723, %v3665
      %v3741 = vsel %vm3733, %v3724, %v3667
      %v3742 = vsel %vm3733, %v3725, %v3669
      %v3743 = vsel %vm3733, %v3726, %v3671
      %v3744 = vsel %vm3733, %v3727, %v3673
      %v3745 = vsel %vm3733, %v3728, %v3675
      %v3746 = vsel %vm3733, %v3729, %v3677
      %v3747 = vsel %vm3733, %v3730, %v3679
      %v3748 = vsel %vm3733, %v3731, %v3681
      %v3749 = vsel %vm3733, %v3732, %v3683
      %vm3750 = vcmask 523264
      %3751 = vst.msk [vmem:[%s284] sm:$0xff] %vm3750, %v3734
      %3752 = vst.msk [vmem:[%s284 + $0x8] sm:$0xff] %vm3750, %v3735
      %3753 = vst.msk [vmem:[%s284 + $0x10] sm:$0xff] %vm3750, %v3736
      %3754 = vst.msk [vmem:[%s284 + $0x18] sm:$0xff] %vm3750, %v3737
      %3755 = vst.msk [vmem:[%s284 + $0x20] sm:$0xff] %vm3750, %v3738
      %3756 = vst.msk [vmem:[%s284 + $0x28] sm:$0xff] %vm3750, %v3739
      %3757 = vst.msk [vmem:[%s284 + $0x30] sm:$0xff] %vm3750, %v3740
      %3758 = vst.msk [vmem:[%s284 + $0x38] sm:$0xff] %vm3750, %v3741
      %3759 = vst.msk [vmem:[%s284 + $0x40] sm:$0xff] %vm3750, %v3742
      %3760 = vst.msk [vmem:[%s284 + $0x48] sm:$0xff] %vm3750, %v3743
      %3761 = vst.msk [vmem:[%s284 + $0x50] sm:$0xff] %vm3750, %v3744
      %3762 = vst.msk [vmem:[%s284 + $0x58] sm:$0xff] %vm3750, %v3745
      %3763 = vst.msk [vmem:[%s284 + $0x60] sm:$0xff] %vm3750, %v3746
      %3764 = vst.msk [vmem:[%s284 + $0x68] sm:$0xff] %vm3750, %v3747
      %3765 = vst.msk [vmem:[%s284 + $0x70] sm:$0xff] %vm3750, %v3748
      %3766 = vst.msk [vmem:[%s284 + $0x78] sm:$0xff] %vm3750, %v3749
      %p3767 = scmp.lt.s32.totalorder %s16, 1
      %s3768 = scalar_select %p3767, %s16, 1
      %s3769 = smul.addr %s3768, 16
      %s3770 = smul.addr %s3769, 8
      %s3771 = scalar_lea.vmem %s5, %s3770
      // Predicated region
      $region41: #{agent_attention_forward.4} parent=39 // pred_check
        %p3772 = pneg %p159
      $region42: #{agent_attention_forward.4} parent=39 // pred_check_branch
        %3774 = sbr.rel (%p3772) target = $region44
      $region43: #{agent_attention_forward.4} parent=39 // pred_region
        _
      $region44: #{agent_attention_forward.4} parent=39 // pred_fallthru
        _
    $region40: #{agent_attention_forward.4} parent=5 // pred_fallthru
      _
    %p3775 = scmp.le.s32.totalorder 2, %s11
    // Predicated region
    $region45: #{agent_attention_forward.4} parent=5 // pred_check
      %p3776 = pneg %p3775
    $region46: #{agent_attention_forward.4} parent=5 // pred_check_branch
      %3778 = sbr.rel (%p3776) target = $region48
    $region47: #{agent_attention_forward.4} parent=5 // pred_region
      %s3779 = ssub.s32 %s11, 2
      // Predicated region
      $region49: #{agent_attention_forward.4} parent=47 // pred_check
        %p3780 = pneg %p165
      $region50: #{agent_attention_forward.4} parent=47 // pred_check_branch
        %3782 = sbr.rel (%p3780) target = $region52
      $region51: #{agent_attention_forward.4} parent=47 // pred_region
        %p3783 = scmp.lt.s32.totalorder %s17, 1
        %s3784 = scalar_select %p3783, %s17, 1
        %s3785 = smul.addr %s3784, 16
        %s3786 = smul.addr %s3785, 8
        %s3787 = scalar_lea.vmem %s5, %s3786
      $region52: #{agent_attention_forward.4} parent=47 // pred_fallthru
        _
    $region48: #{agent_attention_forward.4} parent=5 // pred_fallthru
      _
  $region6: #{agent_attention_forward.4} parent=0 // loop_footer
    %s15 = sadd.s32 1, %s11
  $region7: #{agent_attention_forward.4} parent=0 // loop_footer_branch
    %10 = sbr.rel target = $region3
  $region8: #{agent_attention_forward.4} parent=0 // loop_exit
    _

</llo_original>
